<compile_context>
chip_gen: v7x
topology: tpu7x:2x2x1
jax: 0.10.0
libtpu: 0.0.40
codegen_flags: <defaults>
</compile_context>

<pallas_src>
import functools

import jax
import jax.numpy as jnp
from jax import lax
from jax.experimental import pallas as pl
from jax.experimental.pallas import tpu as pltpu


def _round_up(v, m):
    return -(-v // m) * m


# --------------------------------------------------------------------------- #
# Generation detection & policy
# --------------------------------------------------------------------------- #
def _tpu_generation():
    try:
        kind = jax.devices()[0].device_kind.lower()
    except Exception:
        return "unknown"
    if ("v5 lite" in kind) or ("v5e" in kind) or ("v5lite" in kind):
        return "v5e"
    if "v6" in kind:
        return "v6e"
    if ("v7" in kind) or ("7x" in kind):
        return "v7x"
    if "v5" in kind:
        return "v5p"
    return "unknown"


# dw_dtype: depthwise compute dtype (bf16 only where the VPU has bf16 VALUs).
# budget: VMEM budget for the batch-block auto-sizer; vmem_limit: explicit
# scoped-VMEM limit passed to Mosaic; min_grid: >=2 on v7x so the parallel batch
# axis can be sharded across its two TensorCores.
_GEN_CFG = {
    "v5e":     dict(dw_dtype=jnp.float32,  budget=12 << 20, vmem_limit=32 << 20,  min_grid=1),
    "v5p":     dict(dw_dtype=jnp.float32,  budget=48 << 20, vmem_limit=96 << 20,  min_grid=1),
    "v6e":     dict(dw_dtype=jnp.bfloat16, budget=64 << 20, vmem_limit=100 << 20, min_grid=1),
    "v7x":     dict(dw_dtype=jnp.bfloat16, budget=28 << 20, vmem_limit=48 << 20,  min_grid=2),
    "unknown": dict(dw_dtype=jnp.float32,  budget=12 << 20, vmem_limit=32 << 20,  min_grid=1),
}


# --------------------------------------------------------------------------- #
# One-time pltpu.roll direction/support probe (mirrors the real 4-D sublane use)
# --------------------------------------------------------------------------- #
_ROLL_SIGN_CACHE = {}


def _roll_probe_kernel(x_ref, o_ref):
    o_ref[...] = pltpu.roll(x_ref[...], shift=1, axis=2)


def _detect_roll_sign(dtype):
    """+1: pltpu.roll matches jnp.roll; -1: reversed direction; 0: unsupported
    (callers fall back to ref-slice taps, which are always correct)."""
    key = jnp.dtype(dtype).name
    if key in _ROLL_SIGN_CACHE:
        return _ROLL_SIGN_CACHE[key]
    sign = 0
    try:
        x = lax.broadcasted_iota(jnp.float32, (1, 4, 24, 128), 2).astype(dtype)
        y = jax.block_until_ready(
            pl.pallas_call(_roll_probe_kernel,
                           out_shape=jax.ShapeDtypeStruct(x.shape, x.dtype))(x))
        if bool(jnp.array_equal(y, jnp.roll(x, 1, axis=2))):
            sign = 1
        elif bool(jnp.array_equal(y, jnp.roll(x, -1, axis=2))):
            sign = -1
    except Exception:
        sign = 0
    _ROLL_SIGN_CACHE[key] = sign
    return sign


# --------------------------------------------------------------------------- #
# Kernel
# --------------------------------------------------------------------------- #
def _inverted_block_kernel(x_ref, w1_ref, b1_ref, dw_ref, b2_ref, w3_ref, b3_ref,
                           o_ref, pad_ref, *, NB, H, W, stride, identity, roll_sign):
    hidden = w1_ref.shape[-1]            # padded to a multiple of 128
    oup = w3_ref.shape[-1]               # padded to a multiple of 128
    cin = x_ref.shape[-1]                # padded to a multiple of 128
    Hout = (H - 1) // stride + 1
    Wout = (W - 1) // stride + 1
    Wb = pad_ref.shape[2]                # round_up(W + 2, 8)
    cdt = pad_ref.dtype                  # depthwise compute dtype (bf16 on v6e/v7x)

    # (NB, H*W, Cin) -> (NB*H*W, Cin): fold batch into the matmul M dimension.
    x = x_ref[...].reshape(NB * H * W, cin)                         # bf16

    # ---- 1x1 expansion (MXU, bf16 in / f32 acc); BN scale folded into w1 ----
    h = jnp.dot(x, w1_ref[...], preferred_element_type=jnp.float32)
    h = jnp.maximum(h + b1_ref[...], 0.0)                           # (NB*H*W, hidden) f32

    # ---- stage into the zero-halo scratch (interior at row 1 / col 1) ----
    # Halo is re-zeroed every grid step (megacore-safe, no program_id==0 gate).
    # Columns >= W+2 are never read by any tap, so they are not zeroed.
    pad_ref[:, 0:1, :, :] = jnp.zeros((NB, 1, Wb, hidden), cdt)
    pad_ref[:, H + 1:H + 2, :, :] = jnp.zeros((NB, 1, Wb, hidden), cdt)
    pad_ref[:, 1:H + 1, 0:1, :] = jnp.zeros((NB, H, 1, hidden), cdt)
    pad_ref[:, 1:H + 1, W + 1:W + 2, :] = jnp.zeros((NB, H, 1, hidden), cdt)
    pad_ref[:, 1:H + 1, 1:1 + W, :] = h.reshape(NB, H, W, hidden).astype(cdt)

    # ---- depthwise 3x3, padding=1 (VPU); BN scale folded into dw ----
    dw = dw_ref[...]                                                # (9, hidden), hoisted
    acc = None
    if stride == 1:
        if roll_sign == 0:
            # Fallback: ref-slice per tap (dx=0/2 reads are sublane-misaligned).
            for dy in range(3):
                for dx in range(3):
                    win = pad_ref[:, dy:dy + Hout, dx:dx + Wout, :]
                    t = win * dw[dy * 3 + dx]
                    acc = t if acc is None else acc + t
        else:
            # One aligned band load per dy; the +dx W shift is realized with a
            # pltpu.roll on the in-register band (XLU), then an offset-0 slice.
            for dy in range(3):
                band = pad_ref[:, dy:dy + Hout, :, :]               # (NB, Hout, Wb, hidden)
                for dx in range(3):
                    if dx == 0:
                        sh = band
                    else:
                        amt = (Wb - dx) if roll_sign > 0 else dx
                        sh = pltpu.roll(band, shift=amt, axis=2)
                    t = sh[:, :, 0:Wout, :] * dw[dy * 3 + dx]
                    acc = t if acc is None else acc + t
    else:
        # TODO(synk): stride-2 should pre-split W into even/odd phases at staging
        # time so every tap is a contiguous aligned read; the value-level strided
        # slice below lowers to a sublane gather (not exercised by the test).
        region = pad_ref[...]
        for dy in range(3):
            for dx in range(3):
                win = lax.slice(
                    region, (0, dy, dx, 0),
                    (NB, dy + stride * (Hout - 1) + 1,
                     dx + stride * (Wout - 1) + 1, hidden),
                    (1, stride, stride, 1))
                t = win * dw[dy * 3 + dx]
                acc = t if acc is None else acc + t

    # bias + ReLU epilogue in the depthwise compute dtype (cast-free on bf16 path)
    h2 = jnp.maximum(acc + b2_ref[...].astype(cdt), 0.0)            # (NB, Hout, Wout, hidden)

    # ---- 1x1 projection (MXU, bf16 in / f32 acc); BN scale folded into w3 ----
    h2f = h2.reshape(NB * Hout * Wout, hidden).astype(w3_ref.dtype)
    y = jnp.dot(h2f, w3_ref[...], preferred_element_type=jnp.float32) + b3_ref[...]

    if identity:
        # residual add; Brevitas QuantIdentity output quant is an identity here
        y = y + x.astype(jnp.float32)

    o_ref[...] = y.reshape(NB, Hout * Wout, oup).astype(o_ref.dtype)


# --------------------------------------------------------------------------- #
# Batch-block auto-sizer (layout-padding-aware)
# --------------------------------------------------------------------------- #
def _pick_batch_block(N, H, W, cin_p, hidden_p, oup_p, stride, cdt_bytes,
                      budget_bytes, min_grid):
    """Largest NB dividing N (capped so the grid has >= min_grid steps) whose
    per-step VMEM footprint stays under budget.  Channel dims are already padded
    to 128 lanes; second-to-last dims are rounded to 8 sublanes."""
    Hout = (H - 1) // stride + 1
    Wout = (W - 1) // stride + 1
    Wb = _round_up(W + 2, 8)

    def footprint(nb):
        x_blk = nb * _round_up(H * W, 8) * cin_p * 2            # bf16 input block
        o_blk = nb * _round_up(Hout * Wout, 8) * oup_p * 2      # bf16 output block
        pad = nb * (H + 2) * Wb * hidden_p * cdt_bytes          # halo scratch
        tmp = 4 * nb * _round_up(H * W, 8) * hidden_p * 4       # h / acc / band temporaries
        return 2 * (x_blk + o_blk) + pad + tmp                  # x/out are double-buffered

    nb = max(1, N // max(min_grid, 1))
    while nb > 1 and (N % nb or footprint(nb) > budget_bytes):
        nb -= 1
    return max(nb, 1)


# --------------------------------------------------------------------------- #
# Wrapper
# --------------------------------------------------------------------------- #
def inverted_block_pallas(x_nchw, kparams, *, stride, batch_block=None):
    """x_nchw: (N, Cin, H, W) float32.  Returns (N, oup, Hout, Wout) float32."""
    N, Cin, H, W = x_nchw.shape
    w1, b1, dw, b2, w3, b3 = kparams["weights"]
    cin_true, oup_true = kparams["cin"], kparams["oup"]
    assert Cin == cin_true, (Cin, cin_true)
    cin_p, hidden_p = w1.shape
    oup_p = w3.shape[1]
    identity = (stride == 1) and (cin_true == oup_true)
    Hout = (H - 1) // stride + 1
    Wout = (W - 1) // stride + 1

    cfg = _GEN_CFG.get(_tpu_generation(), _GEN_CFG["unknown"])
    cdt = cfg["dw_dtype"]
    roll_sign = _detect_roll_sign(cdt) if stride == 1 else 0

    NB = batch_block or _pick_batch_block(
        N, H, W, cin_p, hidden_p, oup_p, stride,
        jnp.dtype(cdt).itemsize, cfg["budget"], cfg["min_grid"])
    assert N % NB == 0, (N, NB)
    Wb = _round_up(W + 2, 8)

    # NCHW -> (N, H*W, C_pad): channels on lanes (zero-padded to 128), bf16
    # activations halve HBM->VMEM DMA.
    x = jnp.transpose(x_nchw, (0, 2, 3, 1)).astype(jnp.bfloat16)
    if cin_p > Cin:
        x = jnp.pad(x, ((0, 0), (0, 0), (0, 0), (0, cin_p - Cin)))
    x = x.reshape(N, H * W, cin_p)

    dw_k = dw.astype(cdt)

    kernel = functools.partial(_inverted_block_kernel, NB=NB, H=H, W=W,
                               stride=stride, identity=identity,
                               roll_sign=roll_sign)

    def _full(a):
        return pl.BlockSpec(a.shape, lambda b, nd=a.ndim: (0,) * nd)

    out = pl.pallas_call(
        kernel,
        out_shape=jax.ShapeDtypeStruct((N, Hout * Wout, oup_p), jnp.bfloat16),
        grid=(N // NB,),
        in_specs=[
            pl.BlockSpec((NB, H * W, cin_p), lambda b: (b, 0, 0)),  # x (batch-folded)
            _full(w1), _full(b1),                                   # expansion
            _full(dw_k), _full(b2),                                 # depthwise
            _full(w3), _full(b3),                                   # projection
        ],
        out_specs=pl.BlockSpec((NB, Hout * Wout, oup_p), lambda b: (b, 0, 0)),
        scratch_shapes=[pltpu.VMEM((NB, H + 2, Wb, hidden_p), cdt)],
        compiler_params=pltpu.CompilerParams(
            dimension_semantics=("parallel",),
            vmem_limit_bytes=cfg["vmem_limit"]),
    )(x, w1, b1, dw_k, b2, w3, b3)

    # strip channel padding, back to f32 NCHW
    out = out.astype(jnp.float32)[:, :, :oup_true]
    return jnp.transpose(out.reshape(N, Hout, Wout, oup_true), (0, 3, 1, 2))


# --------------------------------------------------------------------------- #
# Parameter packing (BN folding + 128-lane channel padding)
# --------------------------------------------------------------------------- #
def _fold_bn(gamma, beta, mean, var, eps=1e-5):
    scale = gamma / jnp.sqrt(var + eps)
    return scale, beta - mean * scale


def make_params(key, inp, oup, expand_ratio):
    """Deterministic synthetic parameters mirroring the PyTorch module shapes."""
    # TODO(synk): expand_ratio == 1 variant (no expansion conv) is not implemented.
    hidden = int(round(inp * expand_ratio))
    cin_p = _round_up(inp, 128)
    hid_p = _round_up(hidden, 128)
    oup_p = _round_up(oup, 128)
    ks = jax.random.split(key, 12)
    w1_oihw = jax.random.normal(ks[0], (hidden, inp, 1, 1), jnp.float32) * 0.3
    dw_oihw = jax.random.normal(ks[1], (hidden, 1, 3, 3), jnp.float32) * 0.3
    w3_oihw = jax.random.normal(ks[2], (oup, hidden, 1, 1), jnp.float32) * 0.3

    def bn(kg, kb, km, kv, c):
        gamma = 1.0 + 0.1 * jax.random.normal(kg, (c,), jnp.float32)
        beta = 0.1 * jax.random.normal(kb, (c,), jnp.float32)
        mean = 0.1 * jax.random.normal(km, (c,), jnp.float32)
        var = jax.nn.softplus(jax.random.normal(kv, (c,), jnp.float32)) + 0.5
        return gamma, beta, mean, var

    bn1 = bn(ks[3], ks[4], ks[5], ks[6], hidden)
    bn2 = bn(ks[7], ks[8], ks[9], ks[10], hidden)
    bn3 = bn(*jax.random.split(ks[11], 4), oup)

    s1, b1d = _fold_bn(*bn1)
    s2, b2d = _fold_bn(*bn2)
    s3, b3d = _fold_bn(*bn3)

    # One-time host-side fold of BN scales into the weights + zero-padding of the
    # channel axes to 128-lane multiples.  1x1 weights in bf16 (MXU), depthwise
    # stays f32 here (cast to the per-generation compute dtype in the wrapper).
    w1 = jnp.zeros((cin_p, hid_p), jnp.float32)
    w1 = w1.at[:inp, :hidden].set(w1_oihw.reshape(hidden, inp).T * s1[None, :])
    w1 = w1.astype(jnp.bfloat16)
    b1 = jnp.zeros((1, hid_p), jnp.float32).at[0, :hidden].set(b1d)
    dw = jnp.zeros((9, hid_p), jnp.float32)
    dw = dw.at[:, :hidden].set(dw_oihw.reshape(hidden, 9).T * s2[None, :])
    b2 = jnp.zeros((1, hid_p), jnp.float32).at[0, :hidden].set(b2d)
    w3 = jnp.zeros((hid_p, oup_p), jnp.float32)
    w3 = w3.at[:hidden, :oup].set(w3_oihw.reshape(oup, hidden).T * s3[None, :])
    w3 = w3.astype(jnp.bfloat16)
    b3 = jnp.zeros((1, oup_p), jnp.float32).at[0, :oup].set(b3d)

    kernel_params = dict(weights=(w1, b1, dw, b2, w3, b3), cin=inp, oup=oup)
    torch_params = (w1_oihw, dw_oihw, w3_oihw, bn1, bn2, bn3)
    return kernel_params, torch_params


# --------------------------------------------------------------------------- #
# Pure-JAX/XLA f32 reference (quantizers = identity) and test
# --------------------------------------------------------------------------- #
def reference_forward(x, torch_params, *, stride):
    w1_oihw, dw_oihw, w3_oihw, bn1, bn2, bn3 = torch_params
    hidden = w1_oihw.shape[0]
    dn = ("NCHW", "OIHW", "NCHW")

    def apply_bn(y, bnp):
        g, b, m, v = bnp
        s = g / jnp.sqrt(v + 1e-5)
        return y * s[None, :, None, None] + (b - m * s)[None, :, None, None]

    y = lax.conv_general_dilated(x, w1_oihw, (1, 1), "VALID", dimension_numbers=dn)
    y = jnp.maximum(apply_bn(y, bn1), 0.0)
    y = lax.conv_general_dilated(y, dw_oihw, (stride, stride), ((1, 1), (1, 1)),
                                 dimension_numbers=dn, feature_group_count=hidden)
    y = jnp.maximum(apply_bn(y, bn2), 0.0)
    y = lax.conv_general_dilated(y, w3_oihw, (1, 1), "VALID", dimension_numbers=dn)
    y = apply_bn(y, bn3)
    identity = (stride == 1) and (x.shape[1] == w3_oihw.shape[0])
    return x + y if identity else y


if __name__ == "__main__":
    # Small InvertedBlock: inp=4, oup=4, stride=1, expand_ratio=2 -> hidden=8,
    # identity residual path active.
    N, inp, oup, H, W = 2, 4, 4, 16, 16
    stride, expand_ratio = 1, 2

    key = jax.random.PRNGKey(0)
    kx, kp = jax.random.split(key)
    x = jax.random.normal(kx, (N, inp, H, W), jnp.float32)

    kernel_params, torch_params = make_params(kp, inp, oup, expand_ratio)

    out = jax.block_until_ready(inverted_block_pallas(x, kernel_params, stride=stride))
    ref = jax.block_until_ready(reference_forward(x, torch_params, stride=stride))

    assert out.shape == ref.shape, (out.shape, ref.shape)
    # bf16 MXU inputs / bf16 depthwise (v6e/v7x) / bf16 output -> bf16-appropriate
    # normalized tolerance.
    err = float(jnp.max(jnp.abs(out - ref)))
    ref_scale = float(jnp.max(jnp.abs(ref)))
    assert err <= 4e-2 * ref_scale + 1e-2, (err, ref_scale)

    # TODO(synk): Brevitas fake-quantization (QuantConv2d weight quant, QuantReLU /
    # QuantIdentity act quant, shared_quant scale sharing) is modeled as identity.
    print("KERNEL_OK")
</pallas_src>

<mosaic_0001>
module attributes {stable_mosaic.version = 11 : i64} {
  func.func @_roll_probe_kernel(%arg0: memref<1x4x24x128xf32, #tpu.memory_space<vmem>>, %arg1: memref<1x4x24x128xf32, #tpu.memory_space<vmem>>) attributes {dimension_semantics = [], scalar_prefetch = 0 : i64, scratch_operands = 0 : i64, tpu.core_type = #tpu.core_type<tc>} {
    %c0 = arith.constant 0 : index
    %c0_0 = arith.constant 0 : index
    %c0_1 = arith.constant 0 : index
    %c0_2 = arith.constant 0 : index
    %0 = vector.load %arg0[%c0, %c0_0, %c0_1, %c0_2] : memref<1x4x24x128xf32, #tpu.memory_space<vmem>>, vector<1x4x24x128xf32>
    %c1_i32 = arith.constant 1 : i32
    %1 = tpu.dynamic_rotate %0 by %c1_i32 dim 2 : vector<1x4x24x128xf32>, i32 -> vector<1x4x24x128xf32>
    %c0_3 = arith.constant 0 : index
    %c0_4 = arith.constant 0 : index
    %c0_5 = arith.constant 0 : index
    %c0_6 = arith.constant 0 : index
    %2 = vector.load %arg1[%c0_3, %c0_4, %c0_5, %c0_6] : memref<1x4x24x128xf32, #tpu.memory_space<vmem>>, vector<1x4x24x128xf32>
    tpu.vector_store %arg1[%c0_3, %c0_4, %c0_5, %c0_6], %1 {strides = array<i32>} : memref<1x4x24x128xf32, #tpu.memory_space<vmem>>, vector<1x4x24x128xf32>,
    return
  }
}

module attributes {stable_mosaic.version = 11 : i64} {
  func.func @_inverted_block_kernel(%arg0: i32, %arg1: memref<2x256x128xbf16, #tpu.memory_space<vmem>>, %arg2: memref<128x128xbf16, #tpu.memory_space<vmem>>, %arg3: memref<1x128xf32, #tpu.memory_space<vmem>>, %arg4: memref<9x128xf32, #tpu.memory_space<vmem>>, %arg5: memref<1x128xf32, #tpu.memory_space<vmem>>, %arg6: memref<128x128xbf16, #tpu.memory_space<vmem>>, %arg7: memref<1x128xf32, #tpu.memory_space<vmem>>, %arg8: memref<2x256x128xbf16, #tpu.memory_space<vmem>>, %arg9: memref<2x18x24x128xf32, #tpu.memory_space<vmem>>) attributes {dimension_semantics = [#tpu.dimension_semantics<parallel>], iteration_bounds = array<i64: 1>, scalar_prefetch = 0 : i64, scratch_operands = 1 : i64, tpu.core_type = #tpu.core_type<tc>, window_params = [{transform_indices = @transform_0, window_bounds = array<i64: 2, 256, 128>}, {pipeline_mode = #tpu.pipeline_mode<synchronous>, transform_indices = @transform_1, window_bounds = array<i64: 128, 128>}, {pipeline_mode = #tpu.pipeline_mode<synchronous>, transform_indices = @transform_2, window_bounds = array<i64: 1, 128>}, {pipeline_mode = #tpu.pipeline_mode<synchronous>, transform_indices = @transform_3, window_bounds = array<i64: 9, 128>}, {pipeline_mode = #tpu.pipeline_mode<synchronous>, transform_indices = @transform_4, window_bounds = array<i64: 1, 128>}, {pipeline_mode = #tpu.pipeline_mode<synchronous>, transform_indices = @transform_5, window_bounds = array<i64: 128, 128>}, {pipeline_mode = #tpu.pipeline_mode<synchronous>, transform_indices = @transform_6, window_bounds = array<i64: 1, 128>}, {transform_indices = @transform_7, window_bounds = array<i64: 2, 256, 128>}]} {
    %c0 = arith.constant 0 : index
    %c0_0 = arith.constant 0 : index
    %c0_1 = arith.constant 0 : index
    %0 = vector.load %arg1[%c0, %c0_0, %c0_1] : memref<2x256x128xbf16, #tpu.memory_space<vmem>>, vector<2x256x128xbf16>
    %1 = vector.shape_cast %0 : vector<2x256x128xbf16> to vector<512x128xbf16>
    %c0_2 = arith.constant 0 : index
    %c0_3 = arith.constant 0 : index
    %2 = vector.load %arg2[%c0_2, %c0_3] : memref<128x128xbf16, #tpu.memory_space<vmem>>, vector<128x128xbf16>
    %cst = arith.constant dense<0.000000e+00> : vector<512x128xf32>
    %3 = tpu.matmul %1, %2, %cst {dimension_numbers = #tpu.dot_dimension_numbers<[1], [0], [0], [1], [0, 0, 1, 1], [], []>} : vector<512x128xbf16>, vector<128x128xbf16>, vector<512x128xf32> -> vector<512x128xf32>
    %c0_4 = arith.constant 0 : index
    %c0_5 = arith.constant 0 : index
    %4 = vector.load %arg3[%c0_4, %c0_5] : memref<1x128xf32, #tpu.memory_space<vmem>>, vector<1x128xf32>
    %5 = vector.broadcast %4 : vector<1x128xf32> to vector<512x128xf32>
    %6 = arith.addf %3, %5 : vector<512x128xf32>
    %cst_6 = arith.constant 0.000000e+00 : f32
    %7 = vector.broadcast %cst_6 : f32 to vector<512x128xf32>
    %8 = arith.maximumf %6, %7 : vector<512x128xf32>
    %cst_7 = arith.constant 0.000000e+00 : f32
    %9 = vector.broadcast %cst_7 : f32 to vector<2x1x24x128xf32>
    %c0_8 = arith.constant 0 : index
    %c0_9 = arith.constant 0 : index
    %c0_10 = arith.constant 0 : index
    %c0_11 = arith.constant 0 : index
    %10 = vector.load %arg9[%c0_8, %c0_9, %c0_10, %c0_11] : memref<2x18x24x128xf32, #tpu.memory_space<vmem>>, vector<2x1x24x128xf32>
    tpu.vector_store %arg9[%c0_8, %c0_9, %c0_10, %c0_11], %9 {strides = array<i32>} : memref<2x18x24x128xf32, #tpu.memory_space<vmem>>, vector<2x1x24x128xf32>,
    %cst_12 = arith.constant 0.000000e+00 : f32
    %11 = vector.broadcast %cst_12 : f32 to vector<2x1x24x128xf32>
    %c0_13 = arith.constant 0 : index
    %c17 = arith.constant 17 : index
    %c0_14 = arith.constant 0 : index
    %c0_15 = arith.constant 0 : index
    %12 = vector.load %arg9[%c0_13, %c17, %c0_14, %c0_15] : memref<2x18x24x128xf32, #tpu.memory_space<vmem>>, vector<2x1x24x128xf32>
    tpu.vector_store %arg9[%c0_13, %c17, %c0_14, %c0_15], %11 {strides = array<i32>} : memref<2x18x24x128xf32, #tpu.memory_space<vmem>>, vector<2x1x24x128xf32>,
    %cst_16 = arith.constant 0.000000e+00 : f32
    %13 = vector.broadcast %cst_16 : f32 to vector<2x16x1x128xf32>
    %c0_17 = arith.constant 0 : index
    %c1 = arith.constant 1 : index
    %c0_18 = arith.constant 0 : index
    %c0_19 = arith.constant 0 : index
    %14 = vector.load %arg9[%c0_17, %c1, %c0_18, %c0_19] : memref<2x18x24x128xf32, #tpu.memory_space<vmem>>, vector<2x16x1x128xf32>
    tpu.vector_store %arg9[%c0_17, %c1, %c0_18, %c0_19], %13 {strides = array<i32>} : memref<2x18x24x128xf32, #tpu.memory_space<vmem>>, vector<2x16x1x128xf32>,
    %cst_20 = arith.constant 0.000000e+00 : f32
    %15 = vector.broadcast %cst_20 : f32 to vector<2x16x1x128xf32>
    %c0_21 = arith.constant 0 : index
    %c1_22 = arith.constant 1 : index
    %c17_23 = arith.constant 17 : index
    %c0_24 = arith.constant 0 : index
    %16 = vector.load %arg9[%c0_21, %c1_22, %c17_23, %c0_24] : memref<2x18x24x128xf32, #tpu.memory_space<vmem>>, vector<2x16x1x128xf32>
    tpu.vector_store %arg9[%c0_21, %c1_22, %c17_23, %c0_24], %15 {strides = array<i32>} : memref<2x18x24x128xf32, #tpu.memory_space<vmem>>, vector<2x16x1x128xf32>,
    %17 = vector.shape_cast %8 : vector<512x128xf32> to vector<2x16x16x128xf32>
    %c0_25 = arith.constant 0 : index
    %c1_26 = arith.constant 1 : index
    %c1_27 = arith.constant 1 : index
    %c0_28 = arith.constant 0 : index
    %18 = vector.load %arg9[%c0_25, %c1_26, %c1_27, %c0_28] : memref<2x18x24x128xf32, #tpu.memory_space<vmem>>, vector<2x16x16x128xf32>
    tpu.vector_store %arg9[%c0_25, %c1_26, %c1_27, %c0_28], %17 {strides = array<i32>} : memref<2x18x24x128xf32, #tpu.memory_space<vmem>>, vector<2x16x16x128xf32>,
    %c0_29 = arith.constant 0 : index
    %c0_30 = arith.constant 0 : index
    %19 = vector.load %arg4[%c0_29, %c0_30] : memref<9x128xf32, #tpu.memory_space<vmem>>, vector<9x128xf32>
    %c0_31 = arith.constant 0 : index
    %c0_32 = arith.constant 0 : index
    %c0_33 = arith.constant 0 : index
    %c0_34 = arith.constant 0 : index
    %20 = vector.load %arg9[%c0_31, %c0_32, %c0_33, %c0_34] : memref<2x18x24x128xf32, #tpu.memory_space<vmem>>, vector<2x16x16x128xf32>
    %21 = vector.extract_strided_slice %19 {offsets = [0, 0], sizes = [1, 128], strides = [1, 1]} : vector<9x128xf32> to vector<1x128xf32>
    %22 = vector.shape_cast %21 : vector<1x128xf32> to vector<128xf32>
    %23 = vector.shape_cast %22 : vector<128xf32> to vector<1x1x1x128xf32>
    %24 = vector.broadcast %23 : vector<1x1x1x128xf32> to vector<2x16x16x128xf32>
    %25 = arith.mulf %20, %24 : vector<2x16x16x128xf32>
    %c0_35 = arith.constant 0 : index
    %c0_36 = arith.constant 0 : index
    %c1_37 = arith.constant 1 : index
    %c0_38 = arith.constant 0 : index
    %26 = vector.load %arg9[%c0_35, %c0_36, %c1_37, %c0_38] : memref<2x18x24x128xf32, #tpu.memory_space<vmem>>, vector<2x16x16x128xf32>
    %27 = vector.extract_strided_slice %19 {offsets = [1, 0], sizes = [1, 128], strides = [1, 1]} : vector<9x128xf32> to vector<1x128xf32>
    %28 = vector.shape_cast %27 : vector<1x128xf32> to vector<128xf32>
    %29 = vector.shape_cast %28 : vector<128xf32> to vector<1x1x1x128xf32>
    %30 = vector.broadcast %29 : vector<1x1x1x128xf32> to vector<2x16x16x128xf32>
    %31 = arith.mulf %26, %30 : vector<2x16x16x128xf32>
    %32 = arith.addf %25, %31 : vector<2x16x16x128xf32>
    %c0_39 = arith.constant 0 : index
    %c0_40 = arith.constant 0 : index
    %c2 = arith.constant 2 : index
    %c0_41 = arith.constant 0 : index
    %33 = vector.load %arg9[%c0_39, %c0_40, %c2, %c0_41] : memref<2x18x24x128xf32, #tpu.memory_space<vmem>>, vector<2x16x16x128xf32>
    %34 = vector.extract_strided_slice %19 {offsets = [2, 0], sizes = [1, 128], strides = [1, 1]} : vector<9x128xf32> to vector<1x128xf32>
    %35 = vector.shape_cast %34 : vector<1x128xf32> to vector<128xf32>
    %36 = vector.shape_cast %35 : vector<128xf32> to vector<1x1x1x128xf32>
    %37 = vector.broadcast %36 : vector<1x1x1x128xf32> to vector<2x16x16x128xf32>
    %38 = arith.mulf %33, %37 : vector<2x16x16x128xf32>
    %39 = arith.addf %32, %38 : vector<2x16x16x128xf32>
    %c0_42 = arith.constant 0 : index
    %c1_43 = arith.constant 1 : index
    %c0_44 = arith.constant 0 : index
    %c0_45 = arith.constant 0 : index
    %40 = vector.load %arg9[%c0_42, %c1_43, %c0_44, %c0_45] : memref<2x18x24x128xf32, #tpu.memory_space<vmem>>, vector<2x16x16x128xf32>
    %41 = vector.extract_strided_slice %19 {offsets = [3, 0], sizes = [1, 128], strides = [1, 1]} : vector<9x128xf32> to vector<1x128xf32>
    %42 = vector.shape_cast %41 : vector<1x128xf32> to vector<128xf32>
    %43 = vector.shape_cast %42 : vector<128xf32> to vector<1x1x1x128xf32>
    %44 = vector.broadcast %43 : vector<1x1x1x128xf32> to vector<2x16x16x128xf32>
    %45 = arith.mulf %40, %44 : vector<2x16x16x128xf32>
    %46 = arith.addf %39, %45 : vector<2x16x16x128xf32>
    %c0_46 = arith.constant 0 : index
    %c1_47 = arith.constant 1 : index
    %c1_48 = arith.constant 1 : index
    %c0_49 = arith.constant 0 : index
    %47 = vector.load %arg9[%c0_46, %c1_47, %c1_48, %c0_49] : memref<2x18x24x128xf32, #tpu.memory_space<vmem>>, vector<2x16x16x128xf32>
    %48 = vector.extract_strided_slice %19 {offsets = [4, 0], sizes = [1, 128], strides = [1, 1]} : vector<9x128xf32> to vector<1x128xf32>
    %49 = vector.shape_cast %48 : vector<1x128xf32> to vector<128xf32>
    %50 = vector.shape_cast %49 : vector<128xf32> to vector<1x1x1x128xf32>
    %51 = vector.broadcast %50 : vector<1x1x1x128xf32> to vector<2x16x16x128xf32>
    %52 = arith.mulf %47, %51 : vector<2x16x16x128xf32>
    %53 = arith.addf %46, %52 : vector<2x16x16x128xf32>
    %c0_50 = arith.constant 0 : index
    %c1_51 = arith.constant 1 : index
    %c2_52 = arith.constant 2 : index
    %c0_53 = arith.constant 0 : index
    %54 = vector.load %arg9[%c0_50, %c1_51, %c2_52, %c0_53] : memref<2x18x24x128xf32, #tpu.memory_space<vmem>>, vector<2x16x16x128xf32>
    %55 = vector.extract_strided_slice %19 {offsets = [5, 0], sizes = [1, 128], strides = [1, 1]} : vector<9x128xf32> to vector<1x128xf32>
    %56 = vector.shape_cast %55 : vector<1x128xf32> to vector<128xf32>
    %57 = vector.shape_cast %56 : vector<128xf32> to vector<1x1x1x128xf32>
    %58 = vector.broadcast %57 : vector<1x1x1x128xf32> to vector<2x16x16x128xf32>
    %59 = arith.mulf %54, %58 : vector<2x16x16x128xf32>
    %60 = arith.addf %53, %59 : vector<2x16x16x128xf32>
    %c0_54 = arith.constant 0 : index
    %c2_55 = arith.constant 2 : index
    %c0_56 = arith.constant 0 : index
    %c0_57 = arith.constant 0 : index
    %61 = vector.load %arg9[%c0_54, %c2_55, %c0_56, %c0_57] : memref<2x18x24x128xf32, #tpu.memory_space<vmem>>, vector<2x16x16x128xf32>
    %62 = vector.extract_strided_slice %19 {offsets = [6, 0], sizes = [1, 128], strides = [1, 1]} : vector<9x128xf32> to vector<1x128xf32>
    %63 = vector.shape_cast %62 : vector<1x128xf32> to vector<128xf32>
    %64 = vector.shape_cast %63 : vector<128xf32> to vector<1x1x1x128xf32>
    %65 = vector.broadcast %64 : vector<1x1x1x128xf32> to vector<2x16x16x128xf32>
    %66 = arith.mulf %61, %65 : vector<2x16x16x128xf32>
    %67 = arith.addf %60, %66 : vector<2x16x16x128xf32>
    %c0_58 = arith.constant 0 : index
    %c2_59 = arith.constant 2 : index
    %c1_60 = arith.constant 1 : index
    %c0_61 = arith.constant 0 : index
    %68 = vector.load %arg9[%c0_58, %c2_59, %c1_60, %c0_61] : memref<2x18x24x128xf32, #tpu.memory_space<vmem>>, vector<2x16x16x128xf32>
    %69 = vector.extract_strided_slice %19 {offsets = [7, 0], sizes = [1, 128], strides = [1, 1]} : vector<9x128xf32> to vector<1x128xf32>
    %70 = vector.shape_cast %69 : vector<1x128xf32> to vector<128xf32>
    %71 = vector.shape_cast %70 : vector<128xf32> to vector<1x1x1x128xf32>
    %72 = vector.broadcast %71 : vector<1x1x1x128xf32> to vector<2x16x16x128xf32>
    %73 = arith.mulf %68, %72 : vector<2x16x16x128xf32>
    %74 = arith.addf %67, %73 : vector<2x16x16x128xf32>
    %c0_62 = arith.constant 0 : index
    %c2_63 = arith.constant 2 : index
    %c2_64 = arith.constant 2 : index
    %c0_65 = arith.constant 0 : index
    %75 = vector.load %arg9[%c0_62, %c2_63, %c2_64, %c0_65] : memref<2x18x24x128xf32, #tpu.memory_space<vmem>>, vector<2x16x16x128xf32>
    %76 = vector.extract_strided_slice %19 {offsets = [8, 0], sizes = [1, 128], strides = [1, 1]} : vector<9x128xf32> to vector<1x128xf32>
    %77 = vector.shape_cast %76 : vector<1x128xf32> to vector<128xf32>
    %78 = vector.shape_cast %77 : vector<128xf32> to vector<1x1x1x128xf32>
    %79 = vector.broadcast %78 : vector<1x1x1x128xf32> to vector<2x16x16x128xf32>
    %80 = arith.mulf %75, %79 : vector<2x16x16x128xf32>
    %81 = arith.addf %74, %80 : vector<2x16x16x128xf32>
    %c0_66 = arith.constant 0 : index
    %c0_67 = arith.constant 0 : index
    %82 = vector.load %arg5[%c0_66, %c0_67] : memref<1x128xf32, #tpu.memory_space<vmem>>, vector<1x128xf32>
    %83 = vector.shape_cast %82 : vector<1x128xf32> to vector<1x1x1x128xf32>
    %84 = vector.broadcast %83 : vector<1x1x1x128xf32> to vector<2x16x16x128xf32>
    %85 = arith.addf %81, %84 : vector<2x16x16x128xf32>
    %cst_68 = arith.constant 0.000000e+00 : f32
    %86 = vector.broadcast %cst_68 : f32 to vector<2x16x16x128xf32>
    %87 = arith.maximumf %85, %86 : vector<2x16x16x128xf32>
    %88 = vector.shape_cast %87 : vector<2x16x16x128xf32> to vector<512x128xf32>
    %89 = arith.truncf %88 : vector<512x128xf32> to vector<512x128xbf16>
    %c0_69 = arith.constant 0 : index
    %c0_70 = arith.constant 0 : index
    %90 = vector.load %arg6[%c0_69, %c0_70] : memref<128x128xbf16, #tpu.memory_space<vmem>>, vector<128x128xbf16>
    %cst_71 = arith.constant dense<0.000000e+00> : vector<512x128xf32>
    %91 = tpu.matmul %89, %90, %cst_71 {dimension_numbers = #tpu.dot_dimension_numbers<[1], [0], [0], [1], [0, 0, 1, 1], [], []>} : vector<512x128xbf16>, vector<128x128xbf16>, vector<512x128xf32> -> vector<512x128xf32>
    %c0_72 = arith.constant 0 : index
    %c0_73 = arith.constant 0 : index
    %92 = vector.load %arg7[%c0_72, %c0_73] : memref<1x128xf32, #tpu.memory_space<vmem>>, vector<1x128xf32>
    %93 = vector.broadcast %92 : vector<1x128xf32> to vector<512x128xf32>
    %94 = arith.addf %91, %93 : vector<512x128xf32>
    %95 = arith.extf %1 : vector<512x128xbf16> to vector<512x128xf32>
    %96 = arith.addf %94, %95 : vector<512x128xf32>
    %97 = vector.shape_cast %96 : vector<512x128xf32> to vector<2x256x128xf32>
    %98 = arith.truncf %97 : vector<2x256x128xf32> to vector<2x256x128xbf16>
    %c0_74 = arith.constant 0 : index
    %c0_75 = arith.constant 0 : index
    %c0_76 = arith.constant 0 : index
    %99 = vector.load %arg8[%c0_74, %c0_75, %c0_76] : memref<2x256x128xbf16, #tpu.memory_space<vmem>>, vector<2x256x128xbf16>
    tpu.vector_store %arg8[%c0_74, %c0_75, %c0_76], %98 {strides = array<i32>} : memref<2x256x128xbf16, #tpu.memory_space<vmem>>, vector<2x256x128xbf16>,
    return
  }
  func.func @transform_0(%arg0: i32) -> (i32, i32, i32) {
    %c0_i32 = arith.constant 0 : i32
    %c0_i32_0 = arith.constant 0 : i32
    %c0_i32_1 = arith.constant 0 : i32
    return %arg0, %c0_i32, %c0_i32_0 : i32, i32, i32
  }
  func.func @transform_1(%arg0: i32) -> (i32, i32) {
    %c0_i32 = arith.constant 0 : i32
    %c0_i32_0 = arith.constant 0 : i32
    %c0_i32_1 = arith.constant 0 : i32
    return %c0_i32, %c0_i32_0 : i32, i32
  }
  func.func @transform_2(%arg0: i32) -> (i32, i32) {
    %c0_i32 = arith.constant 0 : i32
    %c0_i32_0 = arith.constant 0 : i32
    %c0_i32_1 = arith.constant 0 : i32
    return %c0_i32, %c0_i32_0 : i32, i32
  }
  func.func @transform_3(%arg0: i32) -> (i32, i32) {
    %c0_i32 = arith.constant 0 : i32
    %c0_i32_0 = arith.constant 0 : i32
    %c0_i32_1 = arith.constant 0 : i32
    return %c0_i32, %c0_i32_0 : i32, i32
  }
  func.func @transform_4(%arg0: i32) -> (i32, i32) {
    %c0_i32 = arith.constant 0 : i32
    %c0_i32_0 = arith.constant 0 : i32
    %c0_i32_1 = arith.constant 0 : i32
    return %c0_i32, %c0_i32_0 : i32, i32
  }
  func.func @transform_5(%arg0: i32) -> (i32, i32) {
    %c0_i32 = arith.constant 0 : i32
    %c0_i32_0 = arith.constant 0 : i32
    %c0_i32_1 = arith.constant 0 : i32
    return %c0_i32, %c0_i32_0 : i32, i32
  }
  func.func @transform_6(%arg0: i32) -> (i32, i32) {
    %c0_i32 = arith.constant 0 : i32
    %c0_i32_0 = arith.constant 0 : i32
    %c0_i32_1 = arith.constant 0 : i32
    return %c0_i32, %c0_i32_0 : i32, i32
  }
  func.func @transform_7(%arg0: i32) -> (i32, i32, i32) {
    %c0_i32 = arith.constant 0 : i32
    %c0_i32_0 = arith.constant 0 : i32
    %c0_i32_1 = arith.constant 0 : i32
    return %arg0, %c0_i32, %c0_i32_0 : i32, i32, i32
  }
}

</mosaic_0001>

<llo_original>
// kernel: tpu_custom_call.1
$region0: #{tpu_custom_call.1}
  #allocation0 [shape = 'u32[]', space=smem, size = 0x4, offset = 0x4, fixed_abs, tag = 'smem constant byte address 0x4 - core index']
  #allocation1 [shape = 'u32[144,128]{1,0:T(1,128)}', space=vmem, size = 0x12000, scoped, tag = 'internal scratch']
  %s0 = inlined_call_operand.hbm [shape: f32[1,4,24,128], index: 0, kind: input, shape index: {}]
  %s1 = inlined_call_operand.hbm [shape: f32[1,4,24,128], index: 1, kind: output, shape index: {}]
  %s2 = sld [smem:[#allocation0]]
  $region18: #{tpu_custom_call.1} parent=0
    _
  %s4 = ssub.s32 1, %s2
  %s5 = scalar_select 0, %s4, %s2
  $region1: #{tpu_custom_call.1} parent=0
    #allocation2 [shape = 'u8[49152]{0}', space=vmem, size = 0xc000, scoped, tag = 'input window, operand 0, single buffered']
    #allocation3 [shape = 's32[1]{0}', space=sflag, size = 0x4, scoped, tag = 'scoped memory for tpu_custom_call.1']
    #allocation4 [shape = 's32[1]{0}', space=sflag, size = 0x4, scoped, tag = 'scoped memory for tpu_custom_call.1']
    #allocation5 [shape = 'u8[49152]{0}', space=vmem, size = 0xc000, scoped, tag = 'output window, operand 0, single buffered']
    %6 = vsyncpa [#allocation3], 0
    %7 = vsyncpa [#allocation4], 0
    // Predicated region
    $region2: #{tpu_custom_call.1} parent=1 // pred_check
      _
    $region3: #{tpu_custom_call.1} parent=1 // pred_check_branch
      %9 = sbr.rel (0) target = $region5
    $region4: #{tpu_custom_call.1} parent=1 // pred_region
      %s11 = ssub.s32 1536, 1536
      %12 = vsyncadd [#allocation3], %s11
      %s13 = sshll.u32 [#allocation2], 4
      %s14 = int_to_ptr.vmem [resolvable:$true] %s13
      %19 = dma.hbm_to_vmem [thread:$0]  %s0, 1536, %s14, [#allocation3], 128, 128, 8
    $region5: #{tpu_custom_call.1} parent=1 // pred_fallthru
      _
    // Predicated region
    $region6: #{tpu_custom_call.1} parent=1 // pred_check
      _
    $region7: #{tpu_custom_call.1} parent=1 // pred_check_branch
      %21 = sbr.rel (0) target = $region9
    $region8: #{tpu_custom_call.1} parent=1 // pred_region
      %22 = dma.done [#allocation3], 1536
    $region9: #{tpu_custom_call.1} parent=1 // pred_fallthru
      _
    %v23 = vld [vmem:[#allocation2] sm:$0xff]
    %v24 = vld [vmem:[#allocation2 + $0x8] sm:$0xff]
    %v25 = vld [vmem:[#allocation2 + $0x10] sm:$0xff]
    %v26 = vld [vmem:[#allocation2 + $0x18] sm:$0xff]
    %v27 = vld [vmem:[#allocation2 + $0x20] sm:$0xff]
    %v28 = vld [vmem:[#allocation2 + $0x28] sm:$0xff]
    %v29 = vld [vmem:[#allocation2 + $0x30] sm:$0xff]
    %v30 = vld [vmem:[#allocation2 + $0x38] sm:$0xff]
    %v31 = vld [vmem:[#allocation2 + $0x40] sm:$0xff]
    %v32 = vld [vmem:[#allocation2 + $0x48] sm:$0xff]
    %v33 = vld [vmem:[#allocation2 + $0x50] sm:$0xff]
    %v34 = vld [vmem:[#allocation2 + $0x58] sm:$0xff]
    %v35 = vrot.slane %v23, 7
    %v36 = vrot.slane %v26, 7
    %v37 = vrot.slane %v29, 7
    %v38 = vrot.slane %v32, 7
    %v39 = vrot.slane %v24, 7
    %v40 = vrot.slane %v27, 7
    %v41 = vrot.slane %v30, 7
    %v42 = vrot.slane %v33, 7
    %v43 = vrot.slane %v25, 7
    %v44 = vrot.slane %v28, 7
    %v45 = vrot.slane %v31, 7
    %v46 = vrot.slane %v34, 7
    %v47 = vlaneseq
    %v48 = vshrl.u32 %v47, 7
    %vm49 = vcmp.lt.s32.totalorder %v48, 1
    %v50 = vsel %vm49, %v39, %v43
    %v51 = vsel %vm49, %v40, %v44
    %v52 = vsel %vm49, %v41, %v45
    %v53 = vsel %vm49, %v42, %v46
    %v54 = vsel %vm49, %v35, %v39
    %v55 = vsel %vm49, %v36, %v40
    %v56 = vsel %vm49, %v37, %v41
    %v57 = vsel %vm49, %v38, %v42
    %v58 = vsel %vm49, %v43, %v35
    %v59 = vsel %vm49, %v44, %v36
    %v60 = vsel %vm49, %v45, %v37
    %v61 = vsel %vm49, %v46, %v38
    %62 = vst [vmem:[#allocation5] sm:$0xff] %v58
    %63 = vst [vmem:[#allocation5 + $0x8] sm:$0xff] %v54
    %64 = vst [vmem:[#allocation5 + $0x10] sm:$0xff] %v50
    %65 = vst [vmem:[#allocation5 + $0x18] sm:$0xff] %v59
    %66 = vst [vmem:[#allocation5 + $0x20] sm:$0xff] %v55
    %67 = vst [vmem:[#allocation5 + $0x28] sm:$0xff] %v51
    %68 = vst [vmem:[#allocation5 + $0x30] sm:$0xff] %v60
    %69 = vst [vmem:[#allocation5 + $0x38] sm:$0xff] %v56
    %70 = vst [vmem:[#allocation5 + $0x40] sm:$0xff] %v52
    %71 = vst [vmem:[#allocation5 + $0x48] sm:$0xff] %v61
    %72 = vst [vmem:[#allocation5 + $0x50] sm:$0xff] %v57
    %73 = vst [vmem:[#allocation5 + $0x58] sm:$0xff] %v53
    // Predicated region
    $region10: #{tpu_custom_call.1} parent=1 // pred_check
      _
    $region11: #{tpu_custom_call.1} parent=1 // pred_check_branch
      %75 = sbr.rel (0) target = $region13
    $region12: #{tpu_custom_call.1} parent=1 // pred_region
      %s77 = ssub.s32 1536, 1536
      %78 = vsyncadd [#allocation4], %s77
      %s79 = sshll.u32 [#allocation5], 4
      %s80 = int_to_ptr.vmem [resolvable:$true] %s79
      %85 = dma.vmem_to_hbm [thread:$0]  %s80, 1536, %s1, [#allocation4], 128, 128, 8
    $region13: #{tpu_custom_call.1} parent=1 // pred_fallthru
      _
    // Predicated region
    $region14: #{tpu_custom_call.1} parent=1 // pred_check
      _
    $region15: #{tpu_custom_call.1} parent=1 // pred_check_branch
      %87 = sbr.rel (0) target = $region17
    $region16: #{tpu_custom_call.1} parent=1 // pred_region
      %88 = dma.done [#allocation4], 1536
    $region17: #{tpu_custom_call.1} parent=1 // pred_fallthru
      _
    %89 = vsyncpa [#allocation3], 1
    %90 = vsyncpa [#allocation4], 1

// kernel: tpu_custom_call.1
$region0: #{tpu_custom_call.1}
  #allocation0 [shape = 'u32[]', space=smem, size = 0x4, offset = 0x4, fixed_abs, tag = 'smem constant byte address 0x4 - core index']
  #allocation1 [shape = 'u32[144,128]{1,0:T(1,128)}', space=vmem, size = 0x12000, scoped, tag = 'internal scratch']
  #allocation2 [shape = 'f32[2,18,24,128]{3,2,1,0:T(8,128)}', space=vmem, size = 0x6c000, scoped, tag = 'scratch operand']
  %s0 = inlined_call_operand.hbm [shape: bf16[2,256,128], index: 0, kind: input, shape index: {}]
  %s1 = inlined_call_operand.hbm [shape: bf16[128,128], index: 1, kind: input, shape index: {}]
  %s2 = inlined_call_operand.vmem [shape: f32[1,128], index: 2, kind: input, shape index: {}]
  %s3 = inlined_call_operand.hbm [shape: f32[9,128], index: 3, kind: input, shape index: {}]
  %s4 = inlined_call_operand.vmem [shape: f32[1,128], index: 4, kind: input, shape index: {}]
  %s5 = inlined_call_operand.hbm [shape: bf16[128,128], index: 5, kind: input, shape index: {}]
  %s6 = inlined_call_operand.vmem [shape: f32[1,128], index: 6, kind: input, shape index: {}]
  %s7 = inlined_call_operand.hbm [shape: bf16[2,256,128], index: 7, kind: output, shape index: {}]
  %s8 = sld [smem:[#allocation0]]
  $region54: #{tpu_custom_call.1} parent=0
    _
  %s10 = ssub.s32 1, %s8
  %s11 = scalar_select 0, %s10, %s8
  $region1: #{tpu_custom_call.1} parent=0
    #allocation3 [shape = 'u8[131072]{0}', space=vmem, size = 0x20000, scoped, tag = 'input window, operand 0, single buffered']
    #allocation4 [shape = 's32[1]{0}', space=sflag, size = 0x4, scoped, tag = 'scoped memory for tpu_custom_call.1']
    #allocation5 [shape = 's32[1]{0}', space=sflag, size = 0x4, scoped, tag = 'scoped memory for tpu_custom_call.1']
    #allocation6 [shape = 'u8[32768]{0}', space=vmem, size = 0x8000, scoped, tag = 'input window, operand 1, single buffered']
    #allocation7 [shape = 's32[1]{0}', space=sflag, size = 0x4, scoped, tag = 'scoped memory for tpu_custom_call.1']
    #allocation8 [shape = 'u8[8192]{0}', space=vmem, size = 0x2000, scoped, tag = 'input window, operand 3, single buffered']
    #allocation9 [shape = 'u8[32768]{0}', space=vmem, size = 0x8000, scoped, tag = 'input window, operand 5, single buffered']
    #allocation10 [shape = 's32[1]{0}', space=sflag, size = 0x4, scoped, tag = 'scoped memory for tpu_custom_call.1']
    #allocation11 [shape = 'u8[131072]{0}', space=vmem, size = 0x20000, scoped, tag = 'output window, operand 0, single buffered']
    %12 = vsyncpa [#allocation4], 0
    %13 = vsyncpa [#allocation7], 0
    %14 = vsyncpa [#allocation10], 0
    %15 = vsyncpa [#allocation5], 0
    // Predicated region
    $region2: #{tpu_custom_call.1} parent=1 // pred_check
      _
    $region3: #{tpu_custom_call.1} parent=1 // pred_check_branch
      %17 = sbr.rel (0) target = $region5
    $region4: #{tpu_custom_call.1} parent=1 // pred_region
      %s19 = ssub.s32 4096, 4096
      %20 = vsyncadd [#allocation4], %s19
      %s21 = sshll.u32 [#allocation3], 4
      %s22 = int_to_ptr.vmem [resolvable:$true] %s21
      %27 = dma.hbm_to_vmem [thread:$0]  %s0, 4096, %s22, [#allocation4], 64, 64, 4
    $region5: #{tpu_custom_call.1} parent=1 // pred_fallthru
      _
    // Predicated region
    $region6: #{tpu_custom_call.1} parent=1 // pred_check
      _
    $region7: #{tpu_custom_call.1} parent=1 // pred_check_branch
      %29 = sbr.rel (0) target = $region9
    $region8: #{tpu_custom_call.1} parent=1 // pred_region
      %s31 = ssub.s32 1024, 1024
      %32 = vsyncadd [#allocation7], %s31
      %s33 = sshll.u32 [#allocation6], 4
      %s34 = int_to_ptr.vmem [resolvable:$true] %s33
      %39 = dma.hbm_to_vmem [thread:$0]  %s1, 1024, %s34, [#allocation7], 64, 64, 4
    $region9: #{tpu_custom_call.1} parent=1 // pred_fallthru
      _
    // Predicated region
    $region10: #{tpu_custom_call.1} parent=1 // pred_check
      _
    $region11: #{tpu_custom_call.1} parent=1 // pred_check_branch
      %41 = sbr.rel (0) target = $region13
    $region12: #{tpu_custom_call.1} parent=1 // pred_region
      _
    $region13: #{tpu_custom_call.1} parent=1 // pred_fallthru
      _
    // Predicated region
    $region14: #{tpu_custom_call.1} parent=1 // pred_check
      _
    $region15: #{tpu_custom_call.1} parent=1 // pred_check_branch
      %43 = sbr.rel (0) target = $region17
    $region16: #{tpu_custom_call.1} parent=1 // pred_region
      %s45 = ssub.s32 256, 256
      %46 = vsyncadd [#allocation7], %s45
      %s47 = sshll.u32 [#allocation8], 4
      %s48 = int_to_ptr.vmem [resolvable:$true] %s47
      %53 = dma.hbm_to_vmem [thread:$0]  %s3, 256, %s48, [#allocation7], 128, 128, 8
    $region17: #{tpu_custom_call.1} parent=1 // pred_fallthru
      _
    // Predicated region
    $region18: #{tpu_custom_call.1} parent=1 // pred_check
      _
    $region19: #{tpu_custom_call.1} parent=1 // pred_check_branch
      %55 = sbr.rel (0) target = $region21
    $region20: #{tpu_custom_call.1} parent=1 // pred_region
      _
    $region21: #{tpu_custom_call.1} parent=1 // pred_fallthru
      _
    // Predicated region
    $region22: #{tpu_custom_call.1} parent=1 // pred_check
      _
    $region23: #{tpu_custom_call.1} parent=1 // pred_check_branch
      %57 = sbr.rel (0) target = $region25
    $region24: #{tpu_custom_call.1} parent=1 // pred_region
      %s59 = ssub.s32 1024, 1024
      %60 = vsyncadd [#allocation10], %s59
      %s61 = sshll.u32 [#allocation9], 4
      %s62 = int_to_ptr.vmem [resolvable:$true] %s61
      %67 = dma.hbm_to_vmem [thread:$0]  %s5, 1024, %s62, [#allocation10], 64, 64, 4
    $region25: #{tpu_custom_call.1} parent=1 // pred_fallthru
      _
    // Predicated region
    $region26: #{tpu_custom_call.1} parent=1 // pred_check
      _
    $region27: #{tpu_custom_call.1} parent=1 // pred_check_branch
      %69 = sbr.rel (0) target = $region29
    $region28: #{tpu_custom_call.1} parent=1 // pred_region
      _
    $region29: #{tpu_custom_call.1} parent=1 // pred_fallthru
      _
    // Predicated region
    $region30: #{tpu_custom_call.1} parent=1 // pred_check
      _
    $region31: #{tpu_custom_call.1} parent=1 // pred_check_branch
      %71 = sbr.rel (0) target = $region33
    $region32: #{tpu_custom_call.1} parent=1 // pred_region
      %72 = dma.done [#allocation4], 4096
    $region33: #{tpu_custom_call.1} parent=1 // pred_fallthru
      _
    // Predicated region
    $region34: #{tpu_custom_call.1} parent=1 // pred_check
      _
    $region35: #{tpu_custom_call.1} parent=1 // pred_check_branch
      %74 = sbr.rel (0) target = $region37
    $region36: #{tpu_custom_call.1} parent=1 // pred_region
      %75 = dma.done [#allocation7], 1024
    $region37: #{tpu_custom_call.1} parent=1 // pred_fallthru
      _
    // Predicated region
    $region38: #{tpu_custom_call.1} parent=1 // pred_check
      _
    $region39: #{tpu_custom_call.1} parent=1 // pred_check_branch
      %77 = sbr.rel (0) target = $region41
    $region40: #{tpu_custom_call.1} parent=1 // pred_region
      %78 = dma.done [#allocation7], 256
    $region41: #{tpu_custom_call.1} parent=1 // pred_fallthru
      _
    // Predicated region
    $region42: #{tpu_custom_call.1} parent=1 // pred_check
      _
    $region43: #{tpu_custom_call.1} parent=1 // pred_check_branch
      %80 = sbr.rel (0) target = $region45
    $region44: #{tpu_custom_call.1} parent=1 // pred_region
      %81 = dma.done [#allocation10], 1024
    $region45: #{tpu_custom_call.1} parent=1 // pred_fallthru
      _
    %v83 = vld [vmem:[#allocation3] sm:$0xf]
    %v84 = vld [vmem:[#allocation3 + $0x4] sm:$0xf]
    %v85 = vld [vmem:[#allocation3 + $0x8] sm:$0xf]
    %v86 = vld [vmem:[#allocation3 + $0xc] sm:$0xf]
    %v87 = vld [vmem:[#allocation3 + $0x10] sm:$0xf]
    %v88 = vld [vmem:[#allocation3 + $0x14] sm:$0xf]
    %v89 = vld [vmem:[#allocation3 + $0x18] sm:$0xf]
    %v90 = vld [vmem:[#allocation3 + $0x1c] sm:$0xf]
    %v91 = vld [vmem:[#allocation3 + $0x20] sm:$0xf]
    %v92 = vld [vmem:[#allocation3 + $0x24] sm:$0xf]
    %v93 = vld [vmem:[#allocation3 + $0x28] sm:$0xf]
    %v94 = vld [vmem:[#allocation3 + $0x2c] sm:$0xf]
    %v95 = vld [vmem:[#allocation3 + $0x30] sm:$0xf]
    %v96 = vld [vmem:[#allocation3 + $0x34] sm:$0xf]
    %v97 = vld [vmem:[#allocation3 + $0x38] sm:$0xf]
    %v98 = vld [vmem:[#allocation3 + $0x3c] sm:$0xf]
    %v99 = vld [vmem:[#allocation3 + $0x40] sm:$0xf]
    %v100 = vld [vmem:[#allocation3 + $0x44] sm:$0xf]
    %v101 = vld [vmem:[#allocation3 + $0x48] sm:$0xf]
    %v102 = vld [vmem:[#allocation3 + $0x4c] sm:$0xf]
    %v103 = vld [vmem:[#allocation3 + $0x50] sm:$0xf]
    %v104 = vld [vmem:[#allocation3 + $0x54] sm:$0xf]
    %v105 = vld [vmem:[#allocation3 + $0x58] sm:$0xf]
    %v106 = vld [vmem:[#allocation3 + $0x5c] sm:$0xf]
    %v107 = vld [vmem:[#allocation3 + $0x60] sm:$0xf]
    %v108 = vld [vmem:[#allocation3 + $0x64] sm:$0xf]
    %v109 = vld [vmem:[#allocation3 + $0x68] sm:$0xf]
    %v110 = vld [vmem:[#allocation3 + $0x6c] sm:$0xf]
    %v111 = vld [vmem:[#allocation3 + $0x70] sm:$0xf]
    %v112 = vld [vmem:[#allocation3 + $0x74] sm:$0xf]
    %v113 = vld [vmem:[#allocation3 + $0x78] sm:$0xf]
    %v114 = vld [vmem:[#allocation3 + $0x7c] sm:$0xf]
    %v115 = vld [vmem:[#allocation3 + $0x80] sm:$0xf]
    %v116 = vld [vmem:[#allocation3 + $0x84] sm:$0xf]
    %v117 = vld [vmem:[#allocation3 + $0x88] sm:$0xf]
    %v118 = vld [vmem:[#allocation3 + $0x8c] sm:$0xf]
    %v119 = vld [vmem:[#allocation3 + $0x90] sm:$0xf]
    %v120 = vld [vmem:[#allocation3 + $0x94] sm:$0xf]
    %v121 = vld [vmem:[#allocation3 + $0x98] sm:$0xf]
    %v122 = vld [vmem:[#allocation3 + $0x9c] sm:$0xf]
    %v123 = vld [vmem:[#allocation3 + $0xa0] sm:$0xf]
    %v124 = vld [vmem:[#allocation3 + $0xa4] sm:$0xf]
    %v125 = vld [vmem:[#allocation3 + $0xa8] sm:$0xf]
    %v126 = vld [vmem:[#allocation3 + $0xac] sm:$0xf]
    %v127 = vld [vmem:[#allocation3 + $0xb0] sm:$0xf]
    %v128 = vld [vmem:[#allocation3 + $0xb4] sm:$0xf]
    %v129 = vld [vmem:[#allocation3 + $0xb8] sm:$0xf]
    %v130 = vld [vmem:[#allocation3 + $0xbc] sm:$0xf]
    %v131 = vld [vmem:[#allocation3 + $0xc0] sm:$0xf]
    %v132 = vld [vmem:[#allocation3 + $0xc4] sm:$0xf]
    %v133 = vld [vmem:[#allocation3 + $0xc8] sm:$0xf]
    %v134 = vld [vmem:[#allocation3 + $0xcc] sm:$0xf]
    %v135 = vld [vmem:[#allocation3 + $0xd0] sm:$0xf]
    %v136 = vld [vmem:[#allocation3 + $0xd4] sm:$0xf]
    %v137 = vld [vmem:[#allocation3 + $0xd8] sm:$0xf]
    %v138 = vld [vmem:[#allocation3 + $0xdc] sm:$0xf]
    %v139 = vld [vmem:[#allocation3 + $0xe0] sm:$0xf]
    %v140 = vld [vmem:[#allocation3 + $0xe4] sm:$0xf]
    %v141 = vld [vmem:[#allocation3 + $0xe8] sm:$0xf]
    %v142 = vld [vmem:[#allocation3 + $0xec] sm:$0xf]
    %v143 = vld [vmem:[#allocation3 + $0xf0] sm:$0xf]
    %v144 = vld [vmem:[#allocation3 + $0xf4] sm:$0xf]
    %v145 = vld [vmem:[#allocation3 + $0xf8] sm:$0xf]
    %v146 = vld [vmem:[#allocation3 + $0xfc] sm:$0xf]
    %v147 = vld [vmem:[#allocation6] sm:$0xf]
    %v148 = vld [vmem:[#allocation6 + $0x4] sm:$0xf]
    %v149 = vld [vmem:[#allocation6 + $0x8] sm:$0xf]
    %v150 = vld [vmem:[#allocation6 + $0xc] sm:$0xf]
    %v151 = vld [vmem:[#allocation6 + $0x10] sm:$0xf]
    %v152 = vld [vmem:[#allocation6 + $0x14] sm:$0xf]
    %v153 = vld [vmem:[#allocation6 + $0x18] sm:$0xf]
    %v154 = vld [vmem:[#allocation6 + $0x1c] sm:$0xf]
    %v155 = vld [vmem:[#allocation6 + $0x20] sm:$0xf]
    %v156 = vld [vmem:[#allocation6 + $0x24] sm:$0xf]
    %v157 = vld [vmem:[#allocation6 + $0x28] sm:$0xf]
    %v158 = vld [vmem:[#allocation6 + $0x2c] sm:$0xf]
    %v159 = vld [vmem:[#allocation6 + $0x30] sm:$0xf]
    %v160 = vld [vmem:[#allocation6 + $0x34] sm:$0xf]
    %v161 = vld [vmem:[#allocation6 + $0x38] sm:$0xf]
    %v162 = vld [vmem:[#allocation6 + $0x3c] sm:$0xf]
    %v163 = vld [vmem:[%s2] sm:$0x1]
    %v165 = vlaneseq
    %v166 = vshrl.u32 %v165, 7
    %v167 = vsub.s32 0, %v166
    %v168 = vrot.slane %v163, %v167
    %v234 = vunpack.c.l.b16 %v83
    %v235 = vunpack.c.l.b16 %v84
    %v236 = vunpack.c.l.b16 %v85
    %v237 = vunpack.c.l.b16 %v86
    %v238 = vunpack.c.l.b16 %v87
    %v239 = vunpack.c.l.b16 %v88
    %v240 = vunpack.c.l.b16 %v89
    %v241 = vunpack.c.l.b16 %v90
    %v242 = vunpack.c.l.b16 %v91
    %v243 = vunpack.c.l.b16 %v92
    %v244 = vunpack.c.l.b16 %v93
    %v245 = vunpack.c.l.b16 %v94
    %v246 = vunpack.c.l.b16 %v95
    %v247 = vunpack.c.l.b16 %v96
    %v248 = vunpack.c.l.b16 %v97
    %v249 = vunpack.c.l.b16 %v98
    %v250 = vunpack.c.l.b16 %v99
    %v251 = vunpack.c.l.b16 %v100
    %v252 = vunpack.c.l.b16 %v101
    %v253 = vunpack.c.l.b16 %v102
    %v254 = vunpack.c.l.b16 %v103
    %v255 = vunpack.c.l.b16 %v104
    %v256 = vunpack.c.l.b16 %v105
    %v257 = vunpack.c.l.b16 %v106
    %v258 = vunpack.c.l.b16 %v107
    %v259 = vunpack.c.l.b16 %v108
    %v260 = vunpack.c.l.b16 %v109
    %v261 = vunpack.c.l.b16 %v110
    %v262 = vunpack.c.l.b16 %v111
    %v263 = vunpack.c.l.b16 %v112
    %v264 = vunpack.c.l.b16 %v113
    %v265 = vunpack.c.l.b16 %v114
    %v266 = vunpack.c.l.b16 %v115
    %v267 = vunpack.c.l.b16 %v116
    %v268 = vunpack.c.l.b16 %v117
    %v269 = vunpack.c.l.b16 %v118
    %v270 = vunpack.c.l.b16 %v119
    %v271 = vunpack.c.l.b16 %v120
    %v272 = vunpack.c.l.b16 %v121
    %v273 = vunpack.c.l.b16 %v122
    %v274 = vunpack.c.l.b16 %v123
    %v275 = vunpack.c.l.b16 %v124
    %v276 = vunpack.c.l.b16 %v125
    %v277 = vunpack.c.l.b16 %v126
    %v278 = vunpack.c.l.b16 %v127
    %v279 = vunpack.c.l.b16 %v128
    %v280 = vunpack.c.l.b16 %v129
    %v281 = vunpack.c.l.b16 %v130
    %v282 = vunpack.c.l.b16 %v131
    %v283 = vunpack.c.l.b16 %v132
    %v284 = vunpack.c.l.b16 %v133
    %v285 = vunpack.c.l.b16 %v134
    %v286 = vunpack.c.l.b16 %v135
    %v287 = vunpack.c.l.b16 %v136
    %v288 = vunpack.c.l.b16 %v137
    %v289 = vunpack.c.l.b16 %v138
    %v290 = vunpack.c.l.b16 %v139
    %v291 = vunpack.c.l.b16 %v140
    %v292 = vunpack.c.l.b16 %v141
    %v293 = vunpack.c.l.b16 %v142
    %v294 = vunpack.c.l.b16 %v143
    %v295 = vunpack.c.l.b16 %v144
    %v296 = vunpack.c.l.b16 %v145
    %v297 = vunpack.c.l.b16 %v146
    %v298 = vpack.c.b16 %v235, %v234
    %v299 = vpack.c.b16 %v237, %v236
    %v300 = vpack.c.b16 %v239, %v238
    %v301 = vpack.c.b16 %v241, %v240
    %v302 = vpack.c.b16 %v243, %v242
    %v303 = vpack.c.b16 %v245, %v244
    %v304 = vpack.c.b16 %v247, %v246
    %v305 = vpack.c.b16 %v249, %v248
    %v306 = vpack.c.b16 %v251, %v250
    %v307 = vpack.c.b16 %v253, %v252
    %v308 = vpack.c.b16 %v255, %v254
    %v309 = vpack.c.b16 %v257, %v256
    %v310 = vpack.c.b16 %v259, %v258
    %v311 = vpack.c.b16 %v261, %v260
    %v312 = vpack.c.b16 %v263, %v262
    %v313 = vpack.c.b16 %v265, %v264
    %v314 = vpack.c.b16 %v267, %v266
    %v315 = vpack.c.b16 %v269, %v268
    %v316 = vpack.c.b16 %v271, %v270
    %v317 = vpack.c.b16 %v273, %v272
    %v318 = vpack.c.b16 %v275, %v274
    %v319 = vpack.c.b16 %v277, %v276
    %v320 = vpack.c.b16 %v279, %v278
    %v321 = vpack.c.b16 %v281, %v280
    %v322 = vpack.c.b16 %v283, %v282
    %v323 = vpack.c.b16 %v285, %v284
    %v324 = vpack.c.b16 %v287, %v286
    %v325 = vpack.c.b16 %v289, %v288
    %v326 = vpack.c.b16 %v291, %v290
    %v327 = vpack.c.b16 %v293, %v292
    %v328 = vpack.c.b16 %v295, %v294
    %v329 = vpack.c.b16 %v297, %v296
    %v378 = vunpack.c.l.b16 %v147
    %v379 = vunpack.c.l.b16 %v148
    %v380 = vunpack.c.l.b16 %v149
    %v381 = vunpack.c.l.b16 %v150
    %v382 = vunpack.c.l.b16 %v151
    %v383 = vunpack.c.l.b16 %v152
    %v384 = vunpack.c.l.b16 %v153
    %v385 = vunpack.c.l.b16 %v154
    %v386 = vunpack.c.l.b16 %v155
    %v387 = vunpack.c.l.b16 %v156
    %v388 = vunpack.c.l.b16 %v157
    %v389 = vunpack.c.l.b16 %v158
    %v390 = vunpack.c.l.b16 %v159
    %v391 = vunpack.c.l.b16 %v160
    %v392 = vunpack.c.l.b16 %v161
    %v393 = vunpack.c.l.b16 %v162
    %v394 = vpack.c.b16 %v379, %v378
    %v395 = vpack.c.b16 %v381, %v380
    %v396 = vpack.c.b16 %v383, %v382
    %v397 = vpack.c.b16 %v385, %v384
    %v398 = vpack.c.b16 %v387, %v386
    %v399 = vpack.c.b16 %v389, %v388
    %v400 = vpack.c.b16 %v391, %v390
    %v401 = vpack.c.b16 %v393, %v392
    %410 = vmatprep.subr.bf16.mxu0 0
    %411 = vmatpush1.bf16.msra.mxu0 %v394
    %412 = vmatprep.subr.bf16.mxu0 0
    %413 = vmatpush1.bf16.msra.mxu0 %v395
    %414 = vmatprep.subr.bf16.mxu0 0
    %415 = vmatpush1.bf16.msra.mxu0 %v396
    %416 = vmatprep.subr.bf16.mxu0 0
    %417 = vmatpush1.bf16.msra.mxu0 %v397
    %418 = vmatprep.subr.bf16.mxu0 0
    %419 = vmatpush1.bf16.msra.mxu0 %v398
    %420 = vmatprep.subr.bf16.mxu0 0
    %421 = vmatpush1.bf16.msra.mxu0 %v399
    %422 = vmatprep.subr.bf16.mxu0 0
    %423 = vmatpush1.bf16.msra.mxu0 %v400
    %424 = vmatprep.subr.bf16.mxu0 0
    %425 = vmatpush1.bf16.msra.mxu0 %v401
    %426 = vmatprep.subr.bf16.mxu0 0
    %427 = vmatpush1.bf16.msra.mxu0 0
    %428 = vmatprep.subr.bf16.mxu0 0
    %429 = vmatpush1.bf16.msra.mxu0 0
    %430 = vmatprep.subr.bf16.mxu0 0
    %431 = vmatpush1.bf16.msra.mxu0 0
    %432 = vmatprep.subr.bf16.mxu0 0
    %433 = vmatpush1.bf16.msra.mxu0 0
    %434 = vmatprep.subr.bf16.mxu0 0
    %435 = vmatpush1.bf16.msra.mxu0 0
    %436 = vmatprep.subr.bf16.mxu0 0
    %437 = vmatpush1.bf16.msra.mxu0 0
    %438 = vmatprep.subr.bf16.mxu0 0
    %439 = vmatpush1.bf16.msra.mxu0 0
    %440 = vmatprep.subr.bf16.mxu0 0
    %441 = vmatpush1.bf16.msra.mxu0 0
    %442 = vmatprep.mubr.bf16.mxu0 0
    %443 = vmatmul.mubr.bf16.gmra.mrb[0].mxu0 %v298
    %v444 = vpop.f32.mrb[0].mxu0
    %v445 = vadd.f32 %v168, %v444
    %v446 = vpop.f32.mrb[0].mxu0
    %v447 = vpop.f32.mrb[0].mxu0
    %v448 = vadd.f32 %v168, %v447
    %v449 = vpop.f32.mrb[0].mxu0
    %450 = vmatprep.mubr.bf16.mxu0 0
    %451 = vmatmul.mubr.bf16.gmra.mrb[0].mxu0 %v299
    %v452 = vpop.f32.mrb[0].mxu0
    %v453 = vadd.f32 %v168, %v452
    %v454 = vpop.f32.mrb[0].mxu0
    %v455 = vpop.f32.mrb[0].mxu0
    %v456 = vadd.f32 %v168, %v455
    %v457 = vpop.f32.mrb[0].mxu0
    %458 = vmatprep.mubr.bf16.mxu0 0
    %459 = vmatmul.mubr.bf16.gmra.mrb[0].mxu0 %v300
    %v460 = vpop.f32.mrb[0].mxu0
    %v461 = vadd.f32 %v168, %v460
    %v462 = vpop.f32.mrb[0].mxu0
    %v463 = vpop.f32.mrb[0].mxu0
    %v464 = vadd.f32 %v168, %v463
    %v465 = vpop.f32.mrb[0].mxu0
    %466 = vmatprep.mubr.bf16.mxu0 0
    %467 = vmatmul.mubr.bf16.gmra.mrb[0].mxu0 %v301
    %v468 = vpop.f32.mrb[0].mxu0
    %v469 = vadd.f32 %v168, %v468
    %v470 = vpop.f32.mrb[0].mxu0
    %v471 = vpop.f32.mrb[0].mxu0
    %v472 = vadd.f32 %v168, %v471
    %v473 = vpop.f32.mrb[0].mxu0
    %474 = vmatprep.mubr.bf16.mxu0 0
    %475 = vmatmul.mubr.bf16.gmra.mrb[0].mxu0 %v302
    %v476 = vpop.f32.mrb[0].mxu0
    %v477 = vadd.f32 %v168, %v476
    %v478 = vpop.f32.mrb[0].mxu0
    %v479 = vpop.f32.mrb[0].mxu0
    %v480 = vadd.f32 %v168, %v479
    %v481 = vpop.f32.mrb[0].mxu0
    %482 = vmatprep.mubr.bf16.mxu0 0
    %483 = vmatmul.mubr.bf16.gmra.mrb[0].mxu0 %v303
    %v484 = vpop.f32.mrb[0].mxu0
    %v485 = vadd.f32 %v168, %v484
    %v486 = vpop.f32.mrb[0].mxu0
    %v487 = vpop.f32.mrb[0].mxu0
    %v488 = vadd.f32 %v168, %v487
    %v489 = vpop.f32.mrb[0].mxu0
    %490 = vmatprep.mubr.bf16.mxu0 0
    %491 = vmatmul.mubr.bf16.gmra.mrb[0].mxu0 %v304
    %v492 = vpop.f32.mrb[0].mxu0
    %v493 = vadd.f32 %v168, %v492
    %v494 = vpop.f32.mrb[0].mxu0
    %v495 = vpop.f32.mrb[0].mxu0
    %v496 = vadd.f32 %v168, %v495
    %v497 = vpop.f32.mrb[0].mxu0
    %498 = vmatprep.mubr.bf16.mxu0 0
    %499 = vmatmul.mubr.bf16.gmra.mrb[0].mxu0 %v305
    %v500 = vpop.f32.mrb[0].mxu0
    %v501 = vadd.f32 %v168, %v500
    %v502 = vpop.f32.mrb[0].mxu0
    %v503 = vpop.f32.mrb[0].mxu0
    %v504 = vadd.f32 %v168, %v503
    %v505 = vpop.f32.mrb[0].mxu0
    %506 = vmatprep.mubr.bf16.mxu0 0
    %507 = vmatmul.mubr.bf16.gmra.mrb[0].mxu0 %v306
    %v508 = vpop.f32.mrb[0].mxu0
    %v509 = vadd.f32 %v168, %v508
    %v510 = vpop.f32.mrb[0].mxu0
    %v511 = vpop.f32.mrb[0].mxu0
    %v512 = vadd.f32 %v168, %v511
    %v513 = vpop.f32.mrb[0].mxu0
    %514 = vmatprep.mubr.bf16.mxu0 0
    %515 = vmatmul.mubr.bf16.gmra.mrb[0].mxu0 %v307
    %v516 = vpop.f32.mrb[0].mxu0
    %v517 = vadd.f32 %v168, %v516
    %v518 = vpop.f32.mrb[0].mxu0
    %v519 = vpop.f32.mrb[0].mxu0
    %v520 = vadd.f32 %v168, %v519
    %v521 = vpop.f32.mrb[0].mxu0
    %522 = vmatprep.mubr.bf16.mxu0 0
    %523 = vmatmul.mubr.bf16.gmra.mrb[0].mxu0 %v308
    %v524 = vpop.f32.mrb[0].mxu0
    %v525 = vadd.f32 %v168, %v524
    %v526 = vpop.f32.mrb[0].mxu0
    %v527 = vpop.f32.mrb[0].mxu0
    %v528 = vadd.f32 %v168, %v527
    %v529 = vpop.f32.mrb[0].mxu0
    %530 = vmatprep.mubr.bf16.mxu0 0
    %531 = vmatmul.mubr.bf16.gmra.mrb[0].mxu0 %v309
    %v532 = vpop.f32.mrb[0].mxu0
    %v533 = vadd.f32 %v168, %v532
    %v534 = vpop.f32.mrb[0].mxu0
    %v535 = vpop.f32.mrb[0].mxu0
    %v536 = vadd.f32 %v168, %v535
    %v537 = vpop.f32.mrb[0].mxu0
    %538 = vmatprep.mubr.bf16.mxu0 0
    %539 = vmatmul.mubr.bf16.gmra.mrb[0].mxu0 %v310
    %v540 = vpop.f32.mrb[0].mxu0
    %v541 = vadd.f32 %v168, %v540
    %v542 = vpop.f32.mrb[0].mxu0
    %v543 = vpop.f32.mrb[0].mxu0
    %v544 = vadd.f32 %v168, %v543
    %v545 = vpop.f32.mrb[0].mxu0
    %546 = vmatprep.mubr.bf16.mxu0 0
    %547 = vmatmul.mubr.bf16.gmra.mrb[0].mxu0 %v311
    %v548 = vpop.f32.mrb[0].mxu0
    %v549 = vadd.f32 %v168, %v548
    %v550 = vpop.f32.mrb[0].mxu0
    %v551 = vpop.f32.mrb[0].mxu0
    %v552 = vadd.f32 %v168, %v551
    %v553 = vpop.f32.mrb[0].mxu0
    %554 = vmatprep.mubr.bf16.mxu0 0
    %555 = vmatmul.mubr.bf16.gmra.mrb[0].mxu0 %v312
    %v556 = vpop.f32.mrb[0].mxu0
    %v557 = vadd.f32 %v168, %v556
    %v558 = vpop.f32.mrb[0].mxu0
    %v559 = vpop.f32.mrb[0].mxu0
    %v560 = vadd.f32 %v168, %v559
    %v561 = vpop.f32.mrb[0].mxu0
    %562 = vmatprep.mubr.bf16.mxu0 0
    %563 = vmatmul.mubr.bf16.gmra.mrb[0].mxu0 %v313
    %v564 = vpop.f32.mrb[0].mxu0
    %v565 = vadd.f32 %v168, %v564
    %v566 = vpop.f32.mrb[0].mxu0
    %v567 = vpop.f32.mrb[0].mxu0
    %v568 = vadd.f32 %v168, %v567
    %v569 = vpop.f32.mrb[0].mxu0
    %570 = vmatprep.mubr.bf16.mxu0 0
    %571 = vmatmul.mubr.bf16.gmra.mrb[0].mxu0 %v314
    %v572 = vpop.f32.mrb[0].mxu0
    %v573 = vadd.f32 %v168, %v572
    %v574 = vpop.f32.mrb[0].mxu0
    %v575 = vpop.f32.mrb[0].mxu0
    %v576 = vadd.f32 %v168, %v575
    %v577 = vpop.f32.mrb[0].mxu0
    %578 = vmatprep.mubr.bf16.mxu0 0
    %579 = vmatmul.mubr.bf16.gmra.mrb[0].mxu0 %v315
    %v580 = vpop.f32.mrb[0].mxu0
    %v581 = vadd.f32 %v168, %v580
    %v582 = vpop.f32.mrb[0].mxu0
    %v583 = vpop.f32.mrb[0].mxu0
    %v584 = vadd.f32 %v168, %v583
    %v585 = vpop.f32.mrb[0].mxu0
    %586 = vmatprep.mubr.bf16.mxu0 0
    %587 = vmatmul.mubr.bf16.gmra.mrb[0].mxu0 %v316
    %v588 = vpop.f32.mrb[0].mxu0
    %v589 = vadd.f32 %v168, %v588
    %v590 = vpop.f32.mrb[0].mxu0
    %v591 = vpop.f32.mrb[0].mxu0
    %v592 = vadd.f32 %v168, %v591
    %v593 = vpop.f32.mrb[0].mxu0
    %594 = vmatprep.mubr.bf16.mxu0 0
    %595 = vmatmul.mubr.bf16.gmra.mrb[0].mxu0 %v317
    %v596 = vpop.f32.mrb[0].mxu0
    %v597 = vadd.f32 %v168, %v596
    %v598 = vpop.f32.mrb[0].mxu0
    %v599 = vpop.f32.mrb[0].mxu0
    %v600 = vadd.f32 %v168, %v599
    %v601 = vpop.f32.mrb[0].mxu0
    %602 = vmatprep.mubr.bf16.mxu0 0
    %603 = vmatmul.mubr.bf16.gmra.mrb[0].mxu0 %v318
    %v604 = vpop.f32.mrb[0].mxu0
    %v605 = vadd.f32 %v168, %v604
    %v606 = vpop.f32.mrb[0].mxu0
    %v607 = vpop.f32.mrb[0].mxu0
    %v608 = vadd.f32 %v168, %v607
    %v609 = vpop.f32.mrb[0].mxu0
    %610 = vmatprep.mubr.bf16.mxu0 0
    %611 = vmatmul.mubr.bf16.gmra.mrb[0].mxu0 %v319
    %v612 = vpop.f32.mrb[0].mxu0
    %v613 = vadd.f32 %v168, %v612
    %v614 = vpop.f32.mrb[0].mxu0
    %v615 = vpop.f32.mrb[0].mxu0
    %v616 = vadd.f32 %v168, %v615
    %v617 = vpop.f32.mrb[0].mxu0
    %618 = vmatprep.mubr.bf16.mxu0 0
    %619 = vmatmul.mubr.bf16.gmra.mrb[0].mxu0 %v320
    %v620 = vpop.f32.mrb[0].mxu0
    %v621 = vadd.f32 %v168, %v620
    %v622 = vpop.f32.mrb[0].mxu0
    %v623 = vpop.f32.mrb[0].mxu0
    %v624 = vadd.f32 %v168, %v623
    %v625 = vpop.f32.mrb[0].mxu0
    %626 = vmatprep.mubr.bf16.mxu0 0
    %627 = vmatmul.mubr.bf16.gmra.mrb[0].mxu0 %v321
    %v628 = vpop.f32.mrb[0].mxu0
    %v629 = vadd.f32 %v168, %v628
    %v630 = vpop.f32.mrb[0].mxu0
    %v631 = vpop.f32.mrb[0].mxu0
    %v632 = vadd.f32 %v168, %v631
    %v633 = vpop.f32.mrb[0].mxu0
    %634 = vmatprep.mubr.bf16.mxu0 0
    %635 = vmatmul.mubr.bf16.gmra.mrb[0].mxu0 %v322
    %v636 = vpop.f32.mrb[0].mxu0
    %v637 = vadd.f32 %v168, %v636
    %v638 = vpop.f32.mrb[0].mxu0
    %v639 = vpop.f32.mrb[0].mxu0
    %v640 = vadd.f32 %v168, %v639
    %v641 = vpop.f32.mrb[0].mxu0
    %642 = vmatprep.mubr.bf16.mxu0 0
    %643 = vmatmul.mubr.bf16.gmra.mrb[0].mxu0 %v323
    %v644 = vpop.f32.mrb[0].mxu0
    %v645 = vadd.f32 %v168, %v644
    %v646 = vpop.f32.mrb[0].mxu0
    %v647 = vpop.f32.mrb[0].mxu0
    %v648 = vadd.f32 %v168, %v647
    %v649 = vpop.f32.mrb[0].mxu0
    %650 = vmatprep.mubr.bf16.mxu0 0
    %651 = vmatmul.mubr.bf16.gmra.mrb[0].mxu0 %v324
    %v652 = vpop.f32.mrb[0].mxu0
    %v653 = vadd.f32 %v168, %v652
    %v654 = vpop.f32.mrb[0].mxu0
    %v655 = vpop.f32.mrb[0].mxu0
    %v656 = vadd.f32 %v168, %v655
    %v657 = vpop.f32.mrb[0].mxu0
    %658 = vmatprep.mubr.bf16.mxu0 0
    %659 = vmatmul.mubr.bf16.gmra.mrb[0].mxu0 %v325
    %v660 = vpop.f32.mrb[0].mxu0
    %v661 = vadd.f32 %v168, %v660
    %v662 = vpop.f32.mrb[0].mxu0
    %v663 = vpop.f32.mrb[0].mxu0
    %v664 = vadd.f32 %v168, %v663
    %v665 = vpop.f32.mrb[0].mxu0
    %666 = vmatprep.mubr.bf16.mxu0 0
    %667 = vmatmul.mubr.bf16.gmra.mrb[0].mxu0 %v326
    %v668 = vpop.f32.mrb[0].mxu0
    %v669 = vadd.f32 %v168, %v668
    %v670 = vpop.f32.mrb[0].mxu0
    %v671 = vpop.f32.mrb[0].mxu0
    %v672 = vadd.f32 %v168, %v671
    %v673 = vpop.f32.mrb[0].mxu0
    %674 = vmatprep.mubr.bf16.mxu0 0
    %675 = vmatmul.mubr.bf16.gmra.mrb[0].mxu0 %v327
    %v676 = vpop.f32.mrb[0].mxu0
    %v677 = vadd.f32 %v168, %v676
    %v678 = vpop.f32.mrb[0].mxu0
    %v679 = vpop.f32.mrb[0].mxu0
    %v680 = vadd.f32 %v168, %v679
    %v681 = vpop.f32.mrb[0].mxu0
    %682 = vmatprep.mubr.bf16.mxu0 0
    %683 = vmatmul.mubr.bf16.gmra.mrb[0].mxu0 %v328
    %v684 = vpop.f32.mrb[0].mxu0
    %v685 = vadd.f32 %v168, %v684
    %v686 = vpop.f32.mrb[0].mxu0
    %v687 = vpop.f32.mrb[0].mxu0
    %v688 = vadd.f32 %v168, %v687
    %v689 = vpop.f32.mrb[0].mxu0
    %690 = vmatprep.mubr.bf16.mxu0 0
    %691 = vmatmul.mubr.bf16.gmra.mrb[0].mxu0 %v329
    %v692 = vpop.f32.mrb[0].mxu0
    %v693 = vadd.f32 %v168, %v692
    %v694 = vpop.f32.mrb[0].mxu0
    %v695 = vpop.f32.mrb[0].mxu0
    %v696 = vadd.f32 %v168, %v695
    %v697 = vpop.f32.mrb[0].mxu0
    %698 = vdwg.mxu0
    %v699 = vmax.f32 %v445, 0.0
    %v700 = vmax.f32 %v448, 0.0
    %v701 = vmax.f32 %v453, 0.0
    %v702 = vmax.f32 %v456, 0.0
    %v703 = vmax.f32 %v461, 0.0
    %v704 = vmax.f32 %v464, 0.0
    %v705 = vmax.f32 %v469, 0.0
    %v706 = vmax.f32 %v472, 0.0
    %v707 = vmax.f32 %v477, 0.0
    %v708 = vmax.f32 %v480, 0.0
    %v709 = vmax.f32 %v485, 0.0
    %v710 = vmax.f32 %v488, 0.0
    %v711 = vmax.f32 %v493, 0.0
    %v712 = vmax.f32 %v496, 0.0
    %v713 = vmax.f32 %v501, 0.0
    %v714 = vmax.f32 %v504, 0.0
    %v715 = vmax.f32 %v509, 0.0
    %v716 = vmax.f32 %v512, 0.0
    %v717 = vmax.f32 %v517, 0.0
    %v718 = vmax.f32 %v520, 0.0
    %v719 = vmax.f32 %v525, 0.0
    %v720 = vmax.f32 %v528, 0.0
    %v721 = vmax.f32 %v533, 0.0
    %v722 = vmax.f32 %v536, 0.0
    %v723 = vmax.f32 %v541, 0.0
    %v724 = vmax.f32 %v544, 0.0
    %v725 = vmax.f32 %v549, 0.0
    %v726 = vmax.f32 %v552, 0.0
    %v727 = vmax.f32 %v557, 0.0
    %v728 = vmax.f32 %v560, 0.0
    %v729 = vmax.f32 %v565, 0.0
    %v730 = vmax.f32 %v568, 0.0
    %v731 = vmax.f32 %v573, 0.0
    %v732 = vmax.f32 %v576, 0.0
    %v733 = vmax.f32 %v581, 0.0
    %v734 = vmax.f32 %v584, 0.0
    %v735 = vmax.f32 %v589, 0.0
    %v736 = vmax.f32 %v592, 0.0
    %v737 = vmax.f32 %v597, 0.0
    %v738 = vmax.f32 %v600, 0.0
    %v739 = vmax.f32 %v605, 0.0
    %v740 = vmax.f32 %v608, 0.0
    %v741 = vmax.f32 %v613, 0.0
    %v742 = vmax.f32 %v616, 0.0
    %v743 = vmax.f32 %v621, 0.0
    %v744 = vmax.f32 %v624, 0.0
    %v745 = vmax.f32 %v629, 0.0
    %v746 = vmax.f32 %v632, 0.0
    %v747 = vmax.f32 %v637, 0.0
    %v748 = vmax.f32 %v640, 0.0
    %v749 = vmax.f32 %v645, 0.0
    %v750 = vmax.f32 %v648, 0.0
    %v751 = vmax.f32 %v653, 0.0
    %v752 = vmax.f32 %v656, 0.0
    %v753 = vmax.f32 %v661, 0.0
    %v754 = vmax.f32 %v664, 0.0
    %v755 = vmax.f32 %v669, 0.0
    %v756 = vmax.f32 %v672, 0.0
    %v757 = vmax.f32 %v677, 0.0
    %v758 = vmax.f32 %v680, 0.0
    %v759 = vmax.f32 %v685, 0.0
    %v760 = vmax.f32 %v688, 0.0
    %v761 = vmax.f32 %v693, 0.0
    %v762 = vmax.f32 %v696, 0.0
    %763 = vst [vmem:[#allocation2] sm:$0xff] 0.0
    %764 = vst [vmem:[#allocation2 + $0x8] sm:$0xff] 0.0
    %765 = vst [vmem:[#allocation2 + $0x10] sm:$0xff] 0.0
    %766 = vst [vmem:[#allocation2 + $0x1b0] sm:$0xff] 0.0
    %767 = vst [vmem:[#allocation2 + $0x1b8] sm:$0xff] 0.0
    %768 = vst [vmem:[#allocation2 + $0x1c0] sm:$0xff] 0.0
    %s769 = scalar_lea.vmem [#allocation2], 408
    %770 = vst [vmem:[%s769] sm:$0xff] 0.0
    %771 = vst [vmem:[%s769 + $0x8] sm:$0xff] 0.0
    %772 = vst [vmem:[%s769 + $0x10] sm:$0xff] 0.0
    %773 = vst [vmem:[%s769 + $0x1b0] sm:$0xff] 0.0
    %774 = vst [vmem:[%s769 + $0x1b8] sm:$0xff] 0.0
    %775 = vst [vmem:[%s769 + $0x1c0] sm:$0xff] 0.0
    %s776 = scalar_lea.vmem [#allocation2], 24
    %777 = vst [vmem:[%s776] sm:$0x1] 0.0
    %778 = vst [vmem:[%s776 + $0x18] sm:$0x1] 0.0
    %779 = vst [vmem:[%s776 + $0x30] sm:$0x1] 0.0
    %780 = vst [vmem:[%s776 + $0x48] sm:$0x1] 0.0
    %781 = vst [vmem:[%s776 + $0x60] sm:$0x1] 0.0
    %782 = vst [vmem:[%s776 + $0x78] sm:$0x1] 0.0
    %783 = vst [vmem:[%s776 + $0x90] sm:$0x1] 0.0
    %784 = vst [vmem:[%s776 + $0xa8] sm:$0x1] 0.0
    %785 = vst [vmem:[%s776 + $0xc0] sm:$0x1] 0.0
    %786 = vst [vmem:[%s776 + $0xd8] sm:$0x1] 0.0
    %787 = vst [vmem:[%s776 + $0xf0] sm:$0x1] 0.0
    %788 = vst [vmem:[%s776 + $0x108] sm:$0x1] 0.0
    %789 = vst [vmem:[%s776 + $0x120] sm:$0x1] 0.0
    %790 = vst [vmem:[%s776 + $0x138] sm:$0x1] 0.0
    %791 = vst [vmem:[%s776 + $0x150] sm:$0x1] 0.0
    %792 = vst [vmem:[%s776 + $0x168] sm:$0x1] 0.0
    %793 = vst [vmem:[%s776 + $0x1b0] sm:$0x1] 0.0
    %794 = vst [vmem:[%s776 + $0x1c8] sm:$0x1] 0.0
    %795 = vst [vmem:[%s776 + $0x1e0] sm:$0x1] 0.0
    %796 = vst [vmem:[%s776 + $0x1f8] sm:$0x1] 0.0
    %797 = vst [vmem:[%s776 + $0x210] sm:$0x1] 0.0
    %798 = vst [vmem:[%s776 + $0x228] sm:$0x1] 0.0
    %799 = vst [vmem:[%s776 + $0x240] sm:$0x1] 0.0
    %800 = vst [vmem:[%s776 + $0x258] sm:$0x1] 0.0
    %801 = vst [vmem:[%s776 + $0x270] sm:$0x1] 0.0
    %802 = vst [vmem:[%s776 + $0x288] sm:$0x1] 0.0
    %803 = vst [vmem:[%s776 + $0x2a0] sm:$0x1] 0.0
    %804 = vst [vmem:[%s776 + $0x2b8] sm:$0x1] 0.0
    %805 = vst [vmem:[%s776 + $0x2d0] sm:$0x1] 0.0
    %806 = vst [vmem:[%s776 + $0x2e8] sm:$0x1] 0.0
    %807 = vst [vmem:[%s776 + $0x300] sm:$0x1] 0.0
    %808 = vst [vmem:[%s776 + $0x318] sm:$0x1] 0.0
    %809 = vst [vmem:[%s776 + $0x11] sm:$0x1] 0.0
    %810 = vst [vmem:[%s776 + $0x29] sm:$0x1] 0.0
    %811 = vst [vmem:[%s776 + $0x41] sm:$0x1] 0.0
    %812 = vst [vmem:[%s776 + $0x59] sm:$0x1] 0.0
    %813 = vst [vmem:[%s776 + $0x71] sm:$0x1] 0.0
    %814 = vst [vmem:[%s776 + $0x89] sm:$0x1] 0.0
    %815 = vst [vmem:[%s776 + $0xa1] sm:$0x1] 0.0
    %816 = vst [vmem:[%s776 + $0xb9] sm:$0x1] 0.0
    %817 = vst [vmem:[%s776 + $0xd1] sm:$0x1] 0.0
    %818 = vst [vmem:[%s776 + $0xe9] sm:$0x1] 0.0
    %819 = vst [vmem:[%s776 + $0x101] sm:$0x1] 0.0
    %820 = vst [vmem:[%s776 + $0x119] sm:$0x1] 0.0
    %821 = vst [vmem:[%s776 + $0x131] sm:$0x1] 0.0
    %822 = vst [vmem:[%s776 + $0x149] sm:$0x1] 0.0
    %823 = vst [vmem:[%s776 + $0x161] sm:$0x1] 0.0
    %824 = vst [vmem:[%s776 + $0x179] sm:$0x1] 0.0
    %825 = vst [vmem:[%s776 + $0x1c1] sm:$0x1] 0.0
    %826 = vst [vmem:[%s776 + $0x1d9] sm:$0x1] 0.0
    %827 = vst [vmem:[%s776 + $0x1f1] sm:$0x1] 0.0
    %828 = vst [vmem:[%s776 + $0x209] sm:$0x1] 0.0
    %829 = vst [vmem:[%s776 + $0x221] sm:$0x1] 0.0
    %830 = vst [vmem:[%s776 + $0x239] sm:$0x1] 0.0
    %831 = vst [vmem:[%s776 + $0x251] sm:$0x1] 0.0
    %832 = vst [vmem:[%s776 + $0x269] sm:$0x1] 0.0
    %833 = vst [vmem:[%s776 + $0x281] sm:$0x1] 0.0
    %834 = vst [vmem:[%s776 + $0x299] sm:$0x1] 0.0
    %835 = vst [vmem:[%s776 + $0x2b1] sm:$0x1] 0.0
    %836 = vst [vmem:[%s776 + $0x2c9] sm:$0x1] 0.0
    %837 = vst [vmem:[%s776 + $0x2e1] sm:$0x1] 0.0
    %838 = vst [vmem:[%s776 + $0x2f9] sm:$0x1] 0.0
    %839 = vst [vmem:[%s776 + $0x311] sm:$0x1] 0.0
    %840 = vst [vmem:[%s776 + $0x329] sm:$0x1] 0.0
    %841 = vst [vmem:[%s776 + $0x1] sm:$0xff] %v699
    %842 = vst [vmem:[%s776 + $0x9] sm:$0xff] %v700
    %843 = vst [vmem:[%s776 + $0x19] sm:$0xff] %v701
    %844 = vst [vmem:[%s776 + $0x21] sm:$0xff] %v702
    %845 = vst [vmem:[%s776 + $0x31] sm:$0xff] %v703
    %846 = vst [vmem:[%s776 + $0x39] sm:$0xff] %v704
    %847 = vst [vmem:[%s776 + $0x49] sm:$0xff] %v705
    %848 = vst [vmem:[%s776 + $0x51] sm:$0xff] %v706
    %849 = vst [vmem:[%s776 + $0x61] sm:$0xff] %v707
    %850 = vst [vmem:[%s776 + $0x69] sm:$0xff] %v708
    %851 = vst [vmem:[%s776 + $0x79] sm:$0xff] %v709
    %852 = vst [vmem:[%s776 + $0x81] sm:$0xff] %v710
    %853 = vst [vmem:[%s776 + $0x91] sm:$0xff] %v711
    %854 = vst [vmem:[%s776 + $0x99] sm:$0xff] %v712
    %855 = vst [vmem:[%s776 + $0xa9] sm:$0xff] %v713
    %856 = vst [vmem:[%s776 + $0xb1] sm:$0xff] %v714
    %857 = vst [vmem:[%s776 + $0xc1] sm:$0xff] %v715
    %858 = vst [vmem:[%s776 + $0xc9] sm:$0xff] %v716
    %859 = vst [vmem:[%s776 + $0xd9] sm:$0xff] %v717
    %860 = vst [vmem:[%s776 + $0xe1] sm:$0xff] %v718
    %861 = vst [vmem:[%s776 + $0xf1] sm:$0xff] %v719
    %862 = vst [vmem:[%s776 + $0xf9] sm:$0xff] %v720
    %863 = vst [vmem:[%s776 + $0x109] sm:$0xff] %v721
    %864 = vst [vmem:[%s776 + $0x111] sm:$0xff] %v722
    %865 = vst [vmem:[%s776 + $0x121] sm:$0xff] %v723
    %866 = vst [vmem:[%s776 + $0x129] sm:$0xff] %v724
    %867 = vst [vmem:[%s776 + $0x139] sm:$0xff] %v725
    %868 = vst [vmem:[%s776 + $0x141] sm:$0xff] %v726
    %869 = vst [vmem:[%s776 + $0x151] sm:$0xff] %v727
    %870 = vst [vmem:[%s776 + $0x159] sm:$0xff] %v728
    %871 = vst [vmem:[%s776 + $0x169] sm:$0xff] %v729
    %872 = vst [vmem:[%s776 + $0x171] sm:$0xff] %v730
    %873 = vst [vmem:[%s776 + $0x1b1] sm:$0xff] %v731
    %874 = vst [vmem:[%s776 + $0x1b9] sm:$0xff] %v732
    %875 = vst [vmem:[%s776 + $0x1c9] sm:$0xff] %v733
    %876 = vst [vmem:[%s776 + $0x1d1] sm:$0xff] %v734
    %877 = vst [vmem:[%s776 + $0x1e1] sm:$0xff] %v735
    %878 = vst [vmem:[%s776 + $0x1e9] sm:$0xff] %v736
    %879 = vst [vmem:[%s776 + $0x1f9] sm:$0xff] %v737
    %880 = vst [vmem:[%s776 + $0x201] sm:$0xff] %v738
    %881 = vst [vmem:[%s776 + $0x211] sm:$0xff] %v739
    %882 = vst [vmem:[%s776 + $0x219] sm:$0xff] %v740
    %883 = vst [vmem:[%s776 + $0x229] sm:$0xff] %v741
    %884 = vst [vmem:[%s776 + $0x231] sm:$0xff] %v742
    %885 = vst [vmem:[%s776 + $0x241] sm:$0xff] %v743
    %886 = vst [vmem:[%s776 + $0x249] sm:$0xff] %v744
    %887 = vst [vmem:[%s776 + $0x259] sm:$0xff] %v745
    %888 = vst [vmem:[%s776 + $0x261] sm:$0xff] %v746
    %889 = vst [vmem:[%s776 + $0x271] sm:$0xff] %v747
    %890 = vst [vmem:[%s776 + $0x279] sm:$0xff] %v748
    %891 = vst [vmem:[%s776 + $0x289] sm:$0xff] %v749
    %892 = vst [vmem:[%s776 + $0x291] sm:$0xff] %v750
    %893 = vst [vmem:[%s776 + $0x2a1] sm:$0xff] %v751
    %894 = vst [vmem:[%s776 + $0x2a9] sm:$0xff] %v752
    %895 = vst [vmem:[%s776 + $0x2b9] sm:$0xff] %v753
    %896 = vst [vmem:[%s776 + $0x2c1] sm:$0xff] %v754
    %897 = vst [vmem:[%s776 + $0x2d1] sm:$0xff] %v755
    %898 = vst [vmem:[%s776 + $0x2d9] sm:$0xff] %v756
    %899 = vst [vmem:[%s776 + $0x2e9] sm:$0xff] %v757
    %900 = vst [vmem:[%s776 + $0x2f1] sm:$0xff] %v758
    %901 = vst [vmem:[%s776 + $0x301] sm:$0xff] %v759
    %902 = vst [vmem:[%s776 + $0x309] sm:$0xff] %v760
    %903 = vst [vmem:[%s776 + $0x319] sm:$0xff] %v761
    %904 = vst [vmem:[%s776 + $0x321] sm:$0xff] %v762
    %v905 = vld [vmem:[#allocation8] sm:$0xff]
    %v906 = vld [vmem:[#allocation8 + $0x8] sm:$0x1]
    %v907 = vld [vmem:[#allocation2] sm:$0xff]
    %v908 = vld [vmem:[#allocation2 + $0x8] sm:$0xff]
    %v909 = vld [vmem:[#allocation2 + $0x18] sm:$0xff]
    %v910 = vld [vmem:[#allocation2 + $0x20] sm:$0xff]
    %v911 = vld [vmem:[#allocation2 + $0x30] sm:$0xff]
    %v912 = vld [vmem:[#allocation2 + $0x38] sm:$0xff]
    %v913 = vld [vmem:[#allocation2 + $0x48] sm:$0xff]
    %v914 = vld [vmem:[#allocation2 + $0x50] sm:$0xff]
    %v915 = vld [vmem:[#allocation2 + $0x60] sm:$0xff]
    %v916 = vld [vmem:[#allocation2 + $0x68] sm:$0xff]
    %v917 = vld [vmem:[#allocation2 + $0x78] sm:$0xff]
    %v918 = vld [vmem:[#allocation2 + $0x80] sm:$0xff]
    %v919 = vld [vmem:[#allocation2 + $0x90] sm:$0xff]
    %v920 = vld [vmem:[#allocation2 + $0x98] sm:$0xff]
    %v921 = vld [vmem:[#allocation2 + $0xa8] sm:$0xff]
    %v922 = vld [vmem:[#allocation2 + $0xb0] sm:$0xff]
    %v923 = vld [vmem:[#allocation2 + $0xc0] sm:$0xff]
    %v924 = vld [vmem:[#allocation2 + $0xc8] sm:$0xff]
    %v925 = vld [vmem:[#allocation2 + $0xd8] sm:$0xff]
    %v926 = vld [vmem:[#allocation2 + $0xe0] sm:$0xff]
    %v927 = vld [vmem:[#allocation2 + $0xf0] sm:$0xff]
    %v928 = vld [vmem:[#allocation2 + $0xf8] sm:$0xff]
    %v929 = vld [vmem:[#allocation2 + $0x108] sm:$0xff]
    %v930 = vld [vmem:[#allocation2 + $0x110] sm:$0xff]
    %v931 = vld [vmem:[#allocation2 + $0x120] sm:$0xff]
    %v932 = vld [vmem:[#allocation2 + $0x128] sm:$0xff]
    %v933 = vld [vmem:[#allocation2 + $0x138] sm:$0xff]
    %v934 = vld [vmem:[#allocation2 + $0x140] sm:$0xff]
    %v935 = vld [vmem:[#allocation2 + $0x150] sm:$0xff]
    %v936 = vld [vmem:[#allocation2 + $0x158] sm:$0xff]
    %v937 = vld [vmem:[#allocation2 + $0x168] sm:$0xff]
    %v938 = vld [vmem:[#allocation2 + $0x170] sm:$0xff]
    %v939 = vld [vmem:[#allocation2 + $0x1b0] sm:$0xff]
    %v940 = vld [vmem:[#allocation2 + $0x1b8] sm:$0xff]
    %v941 = vld [vmem:[#allocation2 + $0x1c8] sm:$0xff]
    %v942 = vld [vmem:[#allocation2 + $0x1d0] sm:$0xff]
    %v943 = vld [vmem:[#allocation2 + $0x1e0] sm:$0xff]
    %v944 = vld [vmem:[#allocation2 + $0x1e8] sm:$0xff]
    %v945 = vld [vmem:[#allocation2 + $0x1f8] sm:$0xff]
    %v946 = vld [vmem:[#allocation2 + $0x200] sm:$0xff]
    %v947 = vld [vmem:[#allocation2 + $0x210] sm:$0xff]
    %v948 = vld [vmem:[#allocation2 + $0x218] sm:$0xff]
    %v949 = vld [vmem:[#allocation2 + $0x228] sm:$0xff]
    %v950 = vld [vmem:[#allocation2 + $0x230] sm:$0xff]
    %v951 = vld [vmem:[#allocation2 + $0x240] sm:$0xff]
    %v952 = vld [vmem:[#allocation2 + $0x248] sm:$0xff]
    %v953 = vld [vmem:[#allocation2 + $0x258] sm:$0xff]
    %v954 = vld [vmem:[#allocation2 + $0x260] sm:$0xff]
    %v955 = vld [vmem:[#allocation2 + $0x270] sm:$0xff]
    %v956 = vld [vmem:[#allocation2 + $0x278] sm:$0xff]
    %v957 = vld [vmem:[#allocation2 + $0x288] sm:$0xff]
    %v958 = vld [vmem:[#allocation2 + $0x290] sm:$0xff]
    %v959 = vld [vmem:[#allocation2 + $0x2a0] sm:$0xff]
    %v960 = vld [vmem:[#allocation2 + $0x2a8] sm:$0xff]
    %v961 = vld [vmem:[#allocation2 + $0x2b8] sm:$0xff]
    %v962 = vld [vmem:[#allocation2 + $0x2c0] sm:$0xff]
    %v963 = vld [vmem:[#allocation2 + $0x2d0] sm:$0xff]
    %v964 = vld [vmem:[#allocation2 + $0x2d8] sm:$0xff]
    %v965 = vld [vmem:[#allocation2 + $0x2e8] sm:$0xff]
    %v966 = vld [vmem:[#allocation2 + $0x2f0] sm:$0xff]
    %v967 = vld [vmem:[#allocation2 + $0x300] sm:$0xff]
    %v968 = vld [vmem:[#allocation2 + $0x308] sm:$0xff]
    %v969 = vld [vmem:[#allocation2 + $0x318] sm:$0xff]
    %v970 = vld [vmem:[#allocation2 + $0x320] sm:$0xff]
    %v971 = vlaneseq
    %v972 = vshrl.u32 %v971, 7
    %v973 = vsub.s32 0, %v972
    %v974 = vrot.slane %v905, %v973
    %v975 = vmul.f32 %v907, %v974
    %v976 = vmul.f32 %v908, %v974
    %v977 = vmul.f32 %v909, %v974
    %v978 = vmul.f32 %v910, %v974
    %v979 = vmul.f32 %v911, %v974
    %v980 = vmul.f32 %v912, %v974
    %v981 = vmul.f32 %v913, %v974
    %v982 = vmul.f32 %v914, %v974
    %v983 = vmul.f32 %v915, %v974
    %v984 = vmul.f32 %v916, %v974
    %v985 = vmul.f32 %v917, %v974
    %v986 = vmul.f32 %v918, %v974
    %v987 = vmul.f32 %v919, %v974
    %v988 = vmul.f32 %v920, %v974
    %v989 = vmul.f32 %v921, %v974
    %v990 = vmul.f32 %v922, %v974
    %v991 = vmul.f32 %v923, %v974
    %v992 = vmul.f32 %v924, %v974
    %v993 = vmul.f32 %v925, %v974
    %v994 = vmul.f32 %v926, %v974
    %v995 = vmul.f32 %v927, %v974
    %v996 = vmul.f32 %v928, %v974
    %v997 = vmul.f32 %v929, %v974
    %v998 = vmul.f32 %v930, %v974
    %v999 = vmul.f32 %v931, %v974
    %v1000 = vmul.f32 %v932, %v974
    %v1001 = vmul.f32 %v933, %v974
    %v1002 = vmul.f32 %v934, %v974
    %v1003 = vmul.f32 %v935, %v974
    %v1004 = vmul.f32 %v936, %v974
    %v1005 = vmul.f32 %v937, %v974
    %v1006 = vmul.f32 %v938, %v974
    %v1007 = vmul.f32 %v939, %v974
    %v1008 = vmul.f32 %v940, %v974
    %v1009 = vmul.f32 %v941, %v974
    %v1010 = vmul.f32 %v942, %v974
    %v1011 = vmul.f32 %v943, %v974
    %v1012 = vmul.f32 %v944, %v974
    %v1013 = vmul.f32 %v945, %v974
    %v1014 = vmul.f32 %v946, %v974
    %v1015 = vmul.f32 %v947, %v974
    %v1016 = vmul.f32 %v948, %v974
    %v1017 = vmul.f32 %v949, %v974
    %v1018 = vmul.f32 %v950, %v974
    %v1019 = vmul.f32 %v951, %v974
    %v1020 = vmul.f32 %v952, %v974
    %v1021 = vmul.f32 %v953, %v974
    %v1022 = vmul.f32 %v954, %v974
    %v1023 = vmul.f32 %v955, %v974
    %v1024 = vmul.f32 %v956, %v974
    %v1025 = vmul.f32 %v957, %v974
    %v1026 = vmul.f32 %v958, %v974
    %v1027 = vmul.f32 %v959, %v974
    %v1028 = vmul.f32 %v960, %v974
    %v1029 = vmul.f32 %v961, %v974
    %v1030 = vmul.f32 %v962, %v974
    %v1031 = vmul.f32 %v963, %v974
    %v1032 = vmul.f32 %v964, %v974
    %v1033 = vmul.f32 %v965, %v974
    %v1034 = vmul.f32 %v966, %v974
    %v1035 = vmul.f32 %v967, %v974
    %v1036 = vmul.f32 %v968, %v974
    %v1037 = vmul.f32 %v969, %v974
    %v1038 = vmul.f32 %v970, %v974
    %v1039 = vld [vmem:[#allocation2 + $0x1] sm:$0xff]
    %v1040 = vld [vmem:[#allocation2 + $0x9] sm:$0xff]
    %v1041 = vld [vmem:[#allocation2 + $0x19] sm:$0xff]
    %v1042 = vld [vmem:[#allocation2 + $0x21] sm:$0xff]
    %v1043 = vld [vmem:[#allocation2 + $0x31] sm:$0xff]
    %v1044 = vld [vmem:[#allocation2 + $0x39] sm:$0xff]
    %v1045 = vld [vmem:[#allocation2 + $0x49] sm:$0xff]
    %v1046 = vld [vmem:[#allocation2 + $0x51] sm:$0xff]
    %v1047 = vld [vmem:[#allocation2 + $0x61] sm:$0xff]
    %v1048 = vld [vmem:[#allocation2 + $0x69] sm:$0xff]
    %v1049 = vld [vmem:[#allocation2 + $0x79] sm:$0xff]
    %v1050 = vld [vmem:[#allocation2 + $0x81] sm:$0xff]
    %v1051 = vld [vmem:[#allocation2 + $0x91] sm:$0xff]
    %v1052 = vld [vmem:[#allocation2 + $0x99] sm:$0xff]
    %v1053 = vld [vmem:[#allocation2 + $0xa9] sm:$0xff]
    %v1054 = vld [vmem:[#allocation2 + $0xb1] sm:$0xff]
    %v1055 = vld [vmem:[#allocation2 + $0xc1] sm:$0xff]
    %v1056 = vld [vmem:[#allocation2 + $0xc9] sm:$0xff]
    %v1057 = vld [vmem:[#allocation2 + $0xd9] sm:$0xff]
    %v1058 = vld [vmem:[#allocation2 + $0xe1] sm:$0xff]
    %v1059 = vld [vmem:[#allocation2 + $0xf1] sm:$0xff]
    %v1060 = vld [vmem:[#allocation2 + $0xf9] sm:$0xff]
    %v1061 = vld [vmem:[#allocation2 + $0x109] sm:$0xff]
    %v1062 = vld [vmem:[#allocation2 + $0x111] sm:$0xff]
    %v1063 = vld [vmem:[#allocation2 + $0x121] sm:$0xff]
    %v1064 = vld [vmem:[#allocation2 + $0x129] sm:$0xff]
    %v1065 = vld [vmem:[#allocation2 + $0x139] sm:$0xff]
    %v1066 = vld [vmem:[#allocation2 + $0x141] sm:$0xff]
    %v1067 = vld [vmem:[#allocation2 + $0x151] sm:$0xff]
    %v1068 = vld [vmem:[#allocation2 + $0x159] sm:$0xff]
    %v1069 = vld [vmem:[#allocation2 + $0x169] sm:$0xff]
    %v1070 = vld [vmem:[#allocation2 + $0x171] sm:$0xff]
    %v1071 = vld [vmem:[#allocation2 + $0x1b1] sm:$0xff]
    %v1072 = vld [vmem:[#allocation2 + $0x1b9] sm:$0xff]
    %v1073 = vld [vmem:[#allocation2 + $0x1c9] sm:$0xff]
    %v1074 = vld [vmem:[#allocation2 + $0x1d1] sm:$0xff]
    %v1075 = vld [vmem:[#allocation2 + $0x1e1] sm:$0xff]
    %v1076 = vld [vmem:[#allocation2 + $0x1e9] sm:$0xff]
    %v1077 = vld [vmem:[#allocation2 + $0x1f9] sm:$0xff]
    %v1078 = vld [vmem:[#allocation2 + $0x201] sm:$0xff]
    %v1079 = vld [vmem:[#allocation2 + $0x211] sm:$0xff]
    %v1080 = vld [vmem:[#allocation2 + $0x219] sm:$0xff]
    %v1081 = vld [vmem:[#allocation2 + $0x229] sm:$0xff]
    %v1082 = vld [vmem:[#allocation2 + $0x231] sm:$0xff]
    %v1083 = vld [vmem:[#allocation2 + $0x241] sm:$0xff]
    %v1084 = vld [vmem:[#allocation2 + $0x249] sm:$0xff]
    %v1085 = vld [vmem:[#allocation2 + $0x259] sm:$0xff]
    %v1086 = vld [vmem:[#allocation2 + $0x261] sm:$0xff]
    %v1087 = vld [vmem:[#allocation2 + $0x271] sm:$0xff]
    %v1088 = vld [vmem:[#allocation2 + $0x279] sm:$0xff]
    %v1089 = vld [vmem:[#allocation2 + $0x289] sm:$0xff]
    %v1090 = vld [vmem:[#allocation2 + $0x291] sm:$0xff]
    %v1091 = vld [vmem:[#allocation2 + $0x2a1] sm:$0xff]
    %v1092 = vld [vmem:[#allocation2 + $0x2a9] sm:$0xff]
    %v1093 = vld [vmem:[#allocation2 + $0x2b9] sm:$0xff]
    %v1094 = vld [vmem:[#allocation2 + $0x2c1] sm:$0xff]
    %v1095 = vld [vmem:[#allocation2 + $0x2d1] sm:$0xff]
    %v1096 = vld [vmem:[#allocation2 + $0x2d9] sm:$0xff]
    %v1097 = vld [vmem:[#allocation2 + $0x2e9] sm:$0xff]
    %v1098 = vld [vmem:[#allocation2 + $0x2f1] sm:$0xff]
    %v1099 = vld [vmem:[#allocation2 + $0x301] sm:$0xff]
    %v1100 = vld [vmem:[#allocation2 + $0x309] sm:$0xff]
    %v1101 = vld [vmem:[#allocation2 + $0x319] sm:$0xff]
    %v1102 = vld [vmem:[#allocation2 + $0x321] sm:$0xff]
    %v1103 = vlaneseq
    %v1104 = vshrl.u32 %v1103, 7
    %v1105 = vsub.s32 1, %v1104
    %v1106 = vrot.slane %v905, %v1105
    %v1107 = vmul.f32 %v1039, %v1106
    %v1108 = vmul.f32 %v1040, %v1106
    %v1109 = vmul.f32 %v1041, %v1106
    %v1110 = vmul.f32 %v1042, %v1106
    %v1111 = vmul.f32 %v1043, %v1106
    %v1112 = vmul.f32 %v1044, %v1106
    %v1113 = vmul.f32 %v1045, %v1106
    %v1114 = vmul.f32 %v1046, %v1106
    %v1115 = vmul.f32 %v1047, %v1106
    %v1116 = vmul.f32 %v1048, %v1106
    %v1117 = vmul.f32 %v1049, %v1106
    %v1118 = vmul.f32 %v1050, %v1106
    %v1119 = vmul.f32 %v1051, %v1106
    %v1120 = vmul.f32 %v1052, %v1106
    %v1121 = vmul.f32 %v1053, %v1106
    %v1122 = vmul.f32 %v1054, %v1106
    %v1123 = vmul.f32 %v1055, %v1106
    %v1124 = vmul.f32 %v1056, %v1106
    %v1125 = vmul.f32 %v1057, %v1106
    %v1126 = vmul.f32 %v1058, %v1106
    %v1127 = vmul.f32 %v1059, %v1106
    %v1128 = vmul.f32 %v1060, %v1106
    %v1129 = vmul.f32 %v1061, %v1106
    %v1130 = vmul.f32 %v1062, %v1106
    %v1131 = vmul.f32 %v1063, %v1106
    %v1132 = vmul.f32 %v1064, %v1106
    %v1133 = vmul.f32 %v1065, %v1106
    %v1134 = vmul.f32 %v1066, %v1106
    %v1135 = vmul.f32 %v1067, %v1106
    %v1136 = vmul.f32 %v1068, %v1106
    %v1137 = vmul.f32 %v1069, %v1106
    %v1138 = vmul.f32 %v1070, %v1106
    %v1139 = vmul.f32 %v1071, %v1106
    %v1140 = vmul.f32 %v1072, %v1106
    %v1141 = vmul.f32 %v1073, %v1106
    %v1142 = vmul.f32 %v1074, %v1106
    %v1143 = vmul.f32 %v1075, %v1106
    %v1144 = vmul.f32 %v1076, %v1106
    %v1145 = vmul.f32 %v1077, %v1106
    %v1146 = vmul.f32 %v1078, %v1106
    %v1147 = vmul.f32 %v1079, %v1106
    %v1148 = vmul.f32 %v1080, %v1106
    %v1149 = vmul.f32 %v1081, %v1106
    %v1150 = vmul.f32 %v1082, %v1106
    %v1151 = vmul.f32 %v1083, %v1106
    %v1152 = vmul.f32 %v1084, %v1106
    %v1153 = vmul.f32 %v1085, %v1106
    %v1154 = vmul.f32 %v1086, %v1106
    %v1155 = vmul.f32 %v1087, %v1106
    %v1156 = vmul.f32 %v1088, %v1106
    %v1157 = vmul.f32 %v1089, %v1106
    %v1158 = vmul.f32 %v1090, %v1106
    %v1159 = vmul.f32 %v1091, %v1106
    %v1160 = vmul.f32 %v1092, %v1106
    %v1161 = vmul.f32 %v1093, %v1106
    %v1162 = vmul.f32 %v1094, %v1106
    %v1163 = vmul.f32 %v1095, %v1106
    %v1164 = vmul.f32 %v1096, %v1106
    %v1165 = vmul.f32 %v1097, %v1106
    %v1166 = vmul.f32 %v1098, %v1106
    %v1167 = vmul.f32 %v1099, %v1106
    %v1168 = vmul.f32 %v1100, %v1106
    %v1169 = vmul.f32 %v1101, %v1106
    %v1170 = vmul.f32 %v1102, %v1106
    %v1171 = vadd.f32 %v975, %v1107
    %v1172 = vadd.f32 %v976, %v1108
    %v1173 = vadd.f32 %v977, %v1109
    %v1174 = vadd.f32 %v978, %v1110
    %v1175 = vadd.f32 %v979, %v1111
    %v1176 = vadd.f32 %v980, %v1112
    %v1177 = vadd.f32 %v981, %v1113
    %v1178 = vadd.f32 %v982, %v1114
    %v1179 = vadd.f32 %v983, %v1115
    %v1180 = vadd.f32 %v984, %v1116
    %v1181 = vadd.f32 %v985, %v1117
    %v1182 = vadd.f32 %v986, %v1118
    %v1183 = vadd.f32 %v987, %v1119
    %v1184 = vadd.f32 %v988, %v1120
    %v1185 = vadd.f32 %v989, %v1121
    %v1186 = vadd.f32 %v990, %v1122
    %v1187 = vadd.f32 %v991, %v1123
    %v1188 = vadd.f32 %v992, %v1124
    %v1189 = vadd.f32 %v993, %v1125
    %v1190 = vadd.f32 %v994, %v1126
    %v1191 = vadd.f32 %v995, %v1127
    %v1192 = vadd.f32 %v996, %v1128
    %v1193 = vadd.f32 %v997, %v1129
    %v1194 = vadd.f32 %v998, %v1130
    %v1195 = vadd.f32 %v999, %v1131
    %v1196 = vadd.f32 %v1000, %v1132
    %v1197 = vadd.f32 %v1001, %v1133
    %v1198 = vadd.f32 %v1002, %v1134
    %v1199 = vadd.f32 %v1003, %v1135
    %v1200 = vadd.f32 %v1004, %v1136
    %v1201 = vadd.f32 %v1005, %v1137
    %v1202 = vadd.f32 %v1006, %v1138
    %v1203 = vadd.f32 %v1007, %v1139
    %v1204 = vadd.f32 %v1008, %v1140
    %v1205 = vadd.f32 %v1009, %v1141
    %v1206 = vadd.f32 %v1010, %v1142
    %v1207 = vadd.f32 %v1011, %v1143
    %v1208 = vadd.f32 %v1012, %v1144
    %v1209 = vadd.f32 %v1013, %v1145
    %v1210 = vadd.f32 %v1014, %v1146
    %v1211 = vadd.f32 %v1015, %v1147
    %v1212 = vadd.f32 %v1016, %v1148
    %v1213 = vadd.f32 %v1017, %v1149
    %v1214 = vadd.f32 %v1018, %v1150
    %v1215 = vadd.f32 %v1019, %v1151
    %v1216 = vadd.f32 %v1020, %v1152
    %v1217 = vadd.f32 %v1021, %v1153
    %v1218 = vadd.f32 %v1022, %v1154
    %v1219 = vadd.f32 %v1023, %v1155
    %v1220 = vadd.f32 %v1024, %v1156
    %v1221 = vadd.f32 %v1025, %v1157
    %v1222 = vadd.f32 %v1026, %v1158
    %v1223 = vadd.f32 %v1027, %v1159
    %v1224 = vadd.f32 %v1028, %v1160
    %v1225 = vadd.f32 %v1029, %v1161
    %v1226 = vadd.f32 %v1030, %v1162
    %v1227 = vadd.f32 %v1031, %v1163
    %v1228 = vadd.f32 %v1032, %v1164
    %v1229 = vadd.f32 %v1033, %v1165
    %v1230 = vadd.f32 %v1034, %v1166
    %v1231 = vadd.f32 %v1035, %v1167
    %v1232 = vadd.f32 %v1036, %v1168
    %v1233 = vadd.f32 %v1037, %v1169
    %v1234 = vadd.f32 %v1038, %v1170
    %v1235 = vld [vmem:[#allocation2 + $0x2] sm:$0xff]
    %v1236 = vld [vmem:[#allocation2 + $0xa] sm:$0xff]
    %v1237 = vld [vmem:[#allocation2 + $0x1a] sm:$0xff]
    %v1238 = vld [vmem:[#allocation2 + $0x22] sm:$0xff]
    %v1239 = vld [vmem:[#allocation2 + $0x32] sm:$0xff]
    %v1240 = vld [vmem:[#allocation2 + $0x3a] sm:$0xff]
    %v1241 = vld [vmem:[#allocation2 + $0x4a] sm:$0xff]
    %v1242 = vld [vmem:[#allocation2 + $0x52] sm:$0xff]
    %v1243 = vld [vmem:[#allocation2 + $0x62] sm:$0xff]
    %v1244 = vld [vmem:[#allocation2 + $0x6a] sm:$0xff]
    %v1245 = vld [vmem:[#allocation2 + $0x7a] sm:$0xff]
    %v1246 = vld [vmem:[#allocation2 + $0x82] sm:$0xff]
    %v1247 = vld [vmem:[#allocation2 + $0x92] sm:$0xff]
    %v1248 = vld [vmem:[#allocation2 + $0x9a] sm:$0xff]
    %v1249 = vld [vmem:[#allocation2 + $0xaa] sm:$0xff]
    %v1250 = vld [vmem:[#allocation2 + $0xb2] sm:$0xff]
    %v1251 = vld [vmem:[#allocation2 + $0xc2] sm:$0xff]
    %v1252 = vld [vmem:[#allocation2 + $0xca] sm:$0xff]
    %v1253 = vld [vmem:[#allocation2 + $0xda] sm:$0xff]
    %v1254 = vld [vmem:[#allocation2 + $0xe2] sm:$0xff]
    %v1255 = vld [vmem:[#allocation2 + $0xf2] sm:$0xff]
    %v1256 = vld [vmem:[#allocation2 + $0xfa] sm:$0xff]
    %v1257 = vld [vmem:[#allocation2 + $0x10a] sm:$0xff]
    %v1258 = vld [vmem:[#allocation2 + $0x112] sm:$0xff]
    %v1259 = vld [vmem:[#allocation2 + $0x122] sm:$0xff]
    %v1260 = vld [vmem:[#allocation2 + $0x12a] sm:$0xff]
    %v1261 = vld [vmem:[#allocation2 + $0x13a] sm:$0xff]
    %v1262 = vld [vmem:[#allocation2 + $0x142] sm:$0xff]
    %v1263 = vld [vmem:[#allocation2 + $0x152] sm:$0xff]
    %v1264 = vld [vmem:[#allocation2 + $0x15a] sm:$0xff]
    %v1265 = vld [vmem:[#allocation2 + $0x16a] sm:$0xff]
    %v1266 = vld [vmem:[#allocation2 + $0x172] sm:$0xff]
    %v1267 = vld [vmem:[#allocation2 + $0x1b2] sm:$0xff]
    %v1268 = vld [vmem:[#allocation2 + $0x1ba] sm:$0xff]
    %v1269 = vld [vmem:[#allocation2 + $0x1ca] sm:$0xff]
    %v1270 = vld [vmem:[#allocation2 + $0x1d2] sm:$0xff]
    %v1271 = vld [vmem:[#allocation2 + $0x1e2] sm:$0xff]
    %v1272 = vld [vmem:[#allocation2 + $0x1ea] sm:$0xff]
    %v1273 = vld [vmem:[#allocation2 + $0x1fa] sm:$0xff]
    %v1274 = vld [vmem:[#allocation2 + $0x202] sm:$0xff]
    %v1275 = vld [vmem:[#allocation2 + $0x212] sm:$0xff]
    %v1276 = vld [vmem:[#allocation2 + $0x21a] sm:$0xff]
    %v1277 = vld [vmem:[#allocation2 + $0x22a] sm:$0xff]
    %v1278 = vld [vmem:[#allocation2 + $0x232] sm:$0xff]
    %v1279 = vld [vmem:[#allocation2 + $0x242] sm:$0xff]
    %v1280 = vld [vmem:[#allocation2 + $0x24a] sm:$0xff]
    %v1281 = vld [vmem:[#allocation2 + $0x25a] sm:$0xff]
    %v1282 = vld [vmem:[#allocation2 + $0x262] sm:$0xff]
    %v1283 = vld [vmem:[#allocation2 + $0x272] sm:$0xff]
    %v1284 = vld [vmem:[#allocation2 + $0x27a] sm:$0xff]
    %v1285 = vld [vmem:[#allocation2 + $0x28a] sm:$0xff]
    %v1286 = vld [vmem:[#allocation2 + $0x292] sm:$0xff]
    %v1287 = vld [vmem:[#allocation2 + $0x2a2] sm:$0xff]
    %v1288 = vld [vmem:[#allocation2 + $0x2aa] sm:$0xff]
    %v1289 = vld [vmem:[#allocation2 + $0x2ba] sm:$0xff]
    %v1290 = vld [vmem:[#allocation2 + $0x2c2] sm:$0xff]
    %v1291 = vld [vmem:[#allocation2 + $0x2d2] sm:$0xff]
    %v1292 = vld [vmem:[#allocation2 + $0x2da] sm:$0xff]
    %v1293 = vld [vmem:[#allocation2 + $0x2ea] sm:$0xff]
    %v1294 = vld [vmem:[#allocation2 + $0x2f2] sm:$0xff]
    %v1295 = vld [vmem:[#allocation2 + $0x302] sm:$0xff]
    %v1296 = vld [vmem:[#allocation2 + $0x30a] sm:$0xff]
    %v1297 = vld [vmem:[#allocation2 + $0x31a] sm:$0xff]
    %v1298 = vld [vmem:[#allocation2 + $0x322] sm:$0xff]
    %v1299 = vlaneseq
    %v1300 = vshrl.u32 %v1299, 7
    %v1301 = vsub.s32 2, %v1300
    %v1302 = vrot.slane %v905, %v1301
    %v1303 = vmul.f32 %v1235, %v1302
    %v1304 = vmul.f32 %v1236, %v1302
    %v1305 = vmul.f32 %v1237, %v1302
    %v1306 = vmul.f32 %v1238, %v1302
    %v1307 = vmul.f32 %v1239, %v1302
    %v1308 = vmul.f32 %v1240, %v1302
    %v1309 = vmul.f32 %v1241, %v1302
    %v1310 = vmul.f32 %v1242, %v1302
    %v1311 = vmul.f32 %v1243, %v1302
    %v1312 = vmul.f32 %v1244, %v1302
    %v1313 = vmul.f32 %v1245, %v1302
    %v1314 = vmul.f32 %v1246, %v1302
    %v1315 = vmul.f32 %v1247, %v1302
    %v1316 = vmul.f32 %v1248, %v1302
    %v1317 = vmul.f32 %v1249, %v1302
    %v1318 = vmul.f32 %v1250, %v1302
    %v1319 = vmul.f32 %v1251, %v1302
    %v1320 = vmul.f32 %v1252, %v1302
    %v1321 = vmul.f32 %v1253, %v1302
    %v1322 = vmul.f32 %v1254, %v1302
    %v1323 = vmul.f32 %v1255, %v1302
    %v1324 = vmul.f32 %v1256, %v1302
    %v1325 = vmul.f32 %v1257, %v1302
    %v1326 = vmul.f32 %v1258, %v1302
    %v1327 = vmul.f32 %v1259, %v1302
    %v1328 = vmul.f32 %v1260, %v1302
    %v1329 = vmul.f32 %v1261, %v1302
    %v1330 = vmul.f32 %v1262, %v1302
    %v1331 = vmul.f32 %v1263, %v1302
    %v1332 = vmul.f32 %v1264, %v1302
    %v1333 = vmul.f32 %v1265, %v1302
    %v1334 = vmul.f32 %v1266, %v1302
    %v1335 = vmul.f32 %v1267, %v1302
    %v1336 = vmul.f32 %v1268, %v1302
    %v1337 = vmul.f32 %v1269, %v1302
    %v1338 = vmul.f32 %v1270, %v1302
    %v1339 = vmul.f32 %v1271, %v1302
    %v1340 = vmul.f32 %v1272, %v1302
    %v1341 = vmul.f32 %v1273, %v1302
    %v1342 = vmul.f32 %v1274, %v1302
    %v1343 = vmul.f32 %v1275, %v1302
    %v1344 = vmul.f32 %v1276, %v1302
    %v1345 = vmul.f32 %v1277, %v1302
    %v1346 = vmul.f32 %v1278, %v1302
    %v1347 = vmul.f32 %v1279, %v1302
    %v1348 = vmul.f32 %v1280, %v1302
    %v1349 = vmul.f32 %v1281, %v1302
    %v1350 = vmul.f32 %v1282, %v1302
    %v1351 = vmul.f32 %v1283, %v1302
    %v1352 = vmul.f32 %v1284, %v1302
    %v1353 = vmul.f32 %v1285, %v1302
    %v1354 = vmul.f32 %v1286, %v1302
    %v1355 = vmul.f32 %v1287, %v1302
    %v1356 = vmul.f32 %v1288, %v1302
    %v1357 = vmul.f32 %v1289, %v1302
    %v1358 = vmul.f32 %v1290, %v1302
    %v1359 = vmul.f32 %v1291, %v1302
    %v1360 = vmul.f32 %v1292, %v1302
    %v1361 = vmul.f32 %v1293, %v1302
    %v1362 = vmul.f32 %v1294, %v1302
    %v1363 = vmul.f32 %v1295, %v1302
    %v1364 = vmul.f32 %v1296, %v1302
    %v1365 = vmul.f32 %v1297, %v1302
    %v1366 = vmul.f32 %v1298, %v1302
    %v1367 = vadd.f32 %v1171, %v1303
    %v1368 = vadd.f32 %v1172, %v1304
    %v1369 = vadd.f32 %v1173, %v1305
    %v1370 = vadd.f32 %v1174, %v1306
    %v1371 = vadd.f32 %v1175, %v1307
    %v1372 = vadd.f32 %v1176, %v1308
    %v1373 = vadd.f32 %v1177, %v1309
    %v1374 = vadd.f32 %v1178, %v1310
    %v1375 = vadd.f32 %v1179, %v1311
    %v1376 = vadd.f32 %v1180, %v1312
    %v1377 = vadd.f32 %v1181, %v1313
    %v1378 = vadd.f32 %v1182, %v1314
    %v1379 = vadd.f32 %v1183, %v1315
    %v1380 = vadd.f32 %v1184, %v1316
    %v1381 = vadd.f32 %v1185, %v1317
    %v1382 = vadd.f32 %v1186, %v1318
    %v1383 = vadd.f32 %v1187, %v1319
    %v1384 = vadd.f32 %v1188, %v1320
    %v1385 = vadd.f32 %v1189, %v1321
    %v1386 = vadd.f32 %v1190, %v1322
    %v1387 = vadd.f32 %v1191, %v1323
    %v1388 = vadd.f32 %v1192, %v1324
    %v1389 = vadd.f32 %v1193, %v1325
    %v1390 = vadd.f32 %v1194, %v1326
    %v1391 = vadd.f32 %v1195, %v1327
    %v1392 = vadd.f32 %v1196, %v1328
    %v1393 = vadd.f32 %v1197, %v1329
    %v1394 = vadd.f32 %v1198, %v1330
    %v1395 = vadd.f32 %v1199, %v1331
    %v1396 = vadd.f32 %v1200, %v1332
    %v1397 = vadd.f32 %v1201, %v1333
    %v1398 = vadd.f32 %v1202, %v1334
    %v1399 = vadd.f32 %v1203, %v1335
    %v1400 = vadd.f32 %v1204, %v1336
    %v1401 = vadd.f32 %v1205, %v1337
    %v1402 = vadd.f32 %v1206, %v1338
    %v1403 = vadd.f32 %v1207, %v1339
    %v1404 = vadd.f32 %v1208, %v1340
    %v1405 = vadd.f32 %v1209, %v1341
    %v1406 = vadd.f32 %v1210, %v1342
    %v1407 = vadd.f32 %v1211, %v1343
    %v1408 = vadd.f32 %v1212, %v1344
    %v1409 = vadd.f32 %v1213, %v1345
    %v1410 = vadd.f32 %v1214, %v1346
    %v1411 = vadd.f32 %v1215, %v1347
    %v1412 = vadd.f32 %v1216, %v1348
    %v1413 = vadd.f32 %v1217, %v1349
    %v1414 = vadd.f32 %v1218, %v1350
    %v1415 = vadd.f32 %v1219, %v1351
    %v1416 = vadd.f32 %v1220, %v1352
    %v1417 = vadd.f32 %v1221, %v1353
    %v1418 = vadd.f32 %v1222, %v1354
    %v1419 = vadd.f32 %v1223, %v1355
    %v1420 = vadd.f32 %v1224, %v1356
    %v1421 = vadd.f32 %v1225, %v1357
    %v1422 = vadd.f32 %v1226, %v1358
    %v1423 = vadd.f32 %v1227, %v1359
    %v1424 = vadd.f32 %v1228, %v1360
    %v1425 = vadd.f32 %v1229, %v1361
    %v1426 = vadd.f32 %v1230, %v1362
    %v1427 = vadd.f32 %v1231, %v1363
    %v1428 = vadd.f32 %v1232, %v1364
    %v1429 = vadd.f32 %v1233, %v1365
    %v1430 = vadd.f32 %v1234, %v1366
    %v1431 = vld [vmem:[%s776] sm:$0xff]
    %v1432 = vld [vmem:[%s776 + $0x8] sm:$0xff]
    %v1433 = vld [vmem:[%s776 + $0x18] sm:$0xff]
    %v1434 = vld [vmem:[%s776 + $0x20] sm:$0xff]
    %v1435 = vld [vmem:[%s776 + $0x30] sm:$0xff]
    %v1436 = vld [vmem:[%s776 + $0x38] sm:$0xff]
    %v1437 = vld [vmem:[%s776 + $0x48] sm:$0xff]
    %v1438 = vld [vmem:[%s776 + $0x50] sm:$0xff]
    %v1439 = vld [vmem:[%s776 + $0x60] sm:$0xff]
    %v1440 = vld [vmem:[%s776 + $0x68] sm:$0xff]
    %v1441 = vld [vmem:[%s776 + $0x78] sm:$0xff]
    %v1442 = vld [vmem:[%s776 + $0x80] sm:$0xff]
    %v1443 = vld [vmem:[%s776 + $0x90] sm:$0xff]
    %v1444 = vld [vmem:[%s776 + $0x98] sm:$0xff]
    %v1445 = vld [vmem:[%s776 + $0xa8] sm:$0xff]
    %v1446 = vld [vmem:[%s776 + $0xb0] sm:$0xff]
    %v1447 = vld [vmem:[%s776 + $0xc0] sm:$0xff]
    %v1448 = vld [vmem:[%s776 + $0xc8] sm:$0xff]
    %v1449 = vld [vmem:[%s776 + $0xd8] sm:$0xff]
    %v1450 = vld [vmem:[%s776 + $0xe0] sm:$0xff]
    %v1451 = vld [vmem:[%s776 + $0xf0] sm:$0xff]
    %v1452 = vld [vmem:[%s776 + $0xf8] sm:$0xff]
    %v1453 = vld [vmem:[%s776 + $0x108] sm:$0xff]
    %v1454 = vld [vmem:[%s776 + $0x110] sm:$0xff]
    %v1455 = vld [vmem:[%s776 + $0x120] sm:$0xff]
    %v1456 = vld [vmem:[%s776 + $0x128] sm:$0xff]
    %v1457 = vld [vmem:[%s776 + $0x138] sm:$0xff]
    %v1458 = vld [vmem:[%s776 + $0x140] sm:$0xff]
    %v1459 = vld [vmem:[%s776 + $0x150] sm:$0xff]
    %v1460 = vld [vmem:[%s776 + $0x158] sm:$0xff]
    %v1461 = vld [vmem:[%s776 + $0x168] sm:$0xff]
    %v1462 = vld [vmem:[%s776 + $0x170] sm:$0xff]
    %v1463 = vld [vmem:[%s776 + $0x1b0] sm:$0xff]
    %v1464 = vld [vmem:[%s776 + $0x1b8] sm:$0xff]
    %v1465 = vld [vmem:[%s776 + $0x1c8] sm:$0xff]
    %v1466 = vld [vmem:[%s776 + $0x1d0] sm:$0xff]
    %v1467 = vld [vmem:[%s776 + $0x1e0] sm:$0xff]
    %v1468 = vld [vmem:[%s776 + $0x1e8] sm:$0xff]
    %v1469 = vld [vmem:[%s776 + $0x1f8] sm:$0xff]
    %v1470 = vld [vmem:[%s776 + $0x200] sm:$0xff]
    %v1471 = vld [vmem:[%s776 + $0x210] sm:$0xff]
    %v1472 = vld [vmem:[%s776 + $0x218] sm:$0xff]
    %v1473 = vld [vmem:[%s776 + $0x228] sm:$0xff]
    %v1474 = vld [vmem:[%s776 + $0x230] sm:$0xff]
    %v1475 = vld [vmem:[%s776 + $0x240] sm:$0xff]
    %v1476 = vld [vmem:[%s776 + $0x248] sm:$0xff]
    %v1477 = vld [vmem:[%s776 + $0x258] sm:$0xff]
    %v1478 = vld [vmem:[%s776 + $0x260] sm:$0xff]
    %v1479 = vld [vmem:[%s776 + $0x270] sm:$0xff]
    %v1480 = vld [vmem:[%s776 + $0x278] sm:$0xff]
    %v1481 = vld [vmem:[%s776 + $0x288] sm:$0xff]
    %v1482 = vld [vmem:[%s776 + $0x290] sm:$0xff]
    %v1483 = vld [vmem:[%s776 + $0x2a0] sm:$0xff]
    %v1484 = vld [vmem:[%s776 + $0x2a8] sm:$0xff]
    %v1485 = vld [vmem:[%s776 + $0x2b8] sm:$0xff]
    %v1486 = vld [vmem:[%s776 + $0x2c0] sm:$0xff]
    %v1487 = vld [vmem:[%s776 + $0x2d0] sm:$0xff]
    %v1488 = vld [vmem:[%s776 + $0x2d8] sm:$0xff]
    %v1489 = vld [vmem:[%s776 + $0x2e8] sm:$0xff]
    %v1490 = vld [vmem:[%s776 + $0x2f0] sm:$0xff]
    %v1491 = vld [vmem:[%s776 + $0x300] sm:$0xff]
    %v1492 = vld [vmem:[%s776 + $0x308] sm:$0xff]
    %v1493 = vld [vmem:[%s776 + $0x318] sm:$0xff]
    %v1494 = vld [vmem:[%s776 + $0x320] sm:$0xff]
    %v1495 = vlaneseq
    %v1496 = vshrl.u32 %v1495, 7
    %v1497 = vsub.s32 3, %v1496
    %v1498 = vrot.slane %v905, %v1497
    %v1499 = vmul.f32 %v1431, %v1498
    %v1500 = vmul.f32 %v1432, %v1498
    %v1501 = vmul.f32 %v1433, %v1498
    %v1502 = vmul.f32 %v1434, %v1498
    %v1503 = vmul.f32 %v1435, %v1498
    %v1504 = vmul.f32 %v1436, %v1498
    %v1505 = vmul.f32 %v1437, %v1498
    %v1506 = vmul.f32 %v1438, %v1498
    %v1507 = vmul.f32 %v1439, %v1498
    %v1508 = vmul.f32 %v1440, %v1498
    %v1509 = vmul.f32 %v1441, %v1498
    %v1510 = vmul.f32 %v1442, %v1498
    %v1511 = vmul.f32 %v1443, %v1498
    %v1512 = vmul.f32 %v1444, %v1498
    %v1513 = vmul.f32 %v1445, %v1498
    %v1514 = vmul.f32 %v1446, %v1498
    %v1515 = vmul.f32 %v1447, %v1498
    %v1516 = vmul.f32 %v1448, %v1498
    %v1517 = vmul.f32 %v1449, %v1498
    %v1518 = vmul.f32 %v1450, %v1498
    %v1519 = vmul.f32 %v1451, %v1498
    %v1520 = vmul.f32 %v1452, %v1498
    %v1521 = vmul.f32 %v1453, %v1498
    %v1522 = vmul.f32 %v1454, %v1498
    %v1523 = vmul.f32 %v1455, %v1498
    %v1524 = vmul.f32 %v1456, %v1498
    %v1525 = vmul.f32 %v1457, %v1498
    %v1526 = vmul.f32 %v1458, %v1498
    %v1527 = vmul.f32 %v1459, %v1498
    %v1528 = vmul.f32 %v1460, %v1498
    %v1529 = vmul.f32 %v1461, %v1498
    %v1530 = vmul.f32 %v1462, %v1498
    %v1531 = vmul.f32 %v1463, %v1498
    %v1532 = vmul.f32 %v1464, %v1498
    %v1533 = vmul.f32 %v1465, %v1498
    %v1534 = vmul.f32 %v1466, %v1498
    %v1535 = vmul.f32 %v1467, %v1498
    %v1536 = vmul.f32 %v1468, %v1498
    %v1537 = vmul.f32 %v1469, %v1498
    %v1538 = vmul.f32 %v1470, %v1498
    %v1539 = vmul.f32 %v1471, %v1498
    %v1540 = vmul.f32 %v1472, %v1498
    %v1541 = vmul.f32 %v1473, %v1498
    %v1542 = vmul.f32 %v1474, %v1498
    %v1543 = vmul.f32 %v1475, %v1498
    %v1544 = vmul.f32 %v1476, %v1498
    %v1545 = vmul.f32 %v1477, %v1498
    %v1546 = vmul.f32 %v1478, %v1498
    %v1547 = vmul.f32 %v1479, %v1498
    %v1548 = vmul.f32 %v1480, %v1498
    %v1549 = vmul.f32 %v1481, %v1498
    %v1550 = vmul.f32 %v1482, %v1498
    %v1551 = vmul.f32 %v1483, %v1498
    %v1552 = vmul.f32 %v1484, %v1498
    %v1553 = vmul.f32 %v1485, %v1498
    %v1554 = vmul.f32 %v1486, %v1498
    %v1555 = vmul.f32 %v1487, %v1498
    %v1556 = vmul.f32 %v1488, %v1498
    %v1557 = vmul.f32 %v1489, %v1498
    %v1558 = vmul.f32 %v1490, %v1498
    %v1559 = vmul.f32 %v1491, %v1498
    %v1560 = vmul.f32 %v1492, %v1498
    %v1561 = vmul.f32 %v1493, %v1498
    %v1562 = vmul.f32 %v1494, %v1498
    %v1563 = vadd.f32 %v1367, %v1499
    %v1564 = vadd.f32 %v1368, %v1500
    %v1565 = vadd.f32 %v1369, %v1501
    %v1566 = vadd.f32 %v1370, %v1502
    %v1567 = vadd.f32 %v1371, %v1503
    %v1568 = vadd.f32 %v1372, %v1504
    %v1569 = vadd.f32 %v1373, %v1505
    %v1570 = vadd.f32 %v1374, %v1506
    %v1571 = vadd.f32 %v1375, %v1507
    %v1572 = vadd.f32 %v1376, %v1508
    %v1573 = vadd.f32 %v1377, %v1509
    %v1574 = vadd.f32 %v1378, %v1510
    %v1575 = vadd.f32 %v1379, %v1511
    %v1576 = vadd.f32 %v1380, %v1512
    %v1577 = vadd.f32 %v1381, %v1513
    %v1578 = vadd.f32 %v1382, %v1514
    %v1579 = vadd.f32 %v1383, %v1515
    %v1580 = vadd.f32 %v1384, %v1516
    %v1581 = vadd.f32 %v1385, %v1517
    %v1582 = vadd.f32 %v1386, %v1518
    %v1583 = vadd.f32 %v1387, %v1519
    %v1584 = vadd.f32 %v1388, %v1520
    %v1585 = vadd.f32 %v1389, %v1521
    %v1586 = vadd.f32 %v1390, %v1522
    %v1587 = vadd.f32 %v1391, %v1523
    %v1588 = vadd.f32 %v1392, %v1524
    %v1589 = vadd.f32 %v1393, %v1525
    %v1590 = vadd.f32 %v1394, %v1526
    %v1591 = vadd.f32 %v1395, %v1527
    %v1592 = vadd.f32 %v1396, %v1528
    %v1593 = vadd.f32 %v1397, %v1529
    %v1594 = vadd.f32 %v1398, %v1530
    %v1595 = vadd.f32 %v1399, %v1531
    %v1596 = vadd.f32 %v1400, %v1532
    %v1597 = vadd.f32 %v1401, %v1533
    %v1598 = vadd.f32 %v1402, %v1534
    %v1599 = vadd.f32 %v1403, %v1535
    %v1600 = vadd.f32 %v1404, %v1536
    %v1601 = vadd.f32 %v1405, %v1537
    %v1602 = vadd.f32 %v1406, %v1538
    %v1603 = vadd.f32 %v1407, %v1539
    %v1604 = vadd.f32 %v1408, %v1540
    %v1605 = vadd.f32 %v1409, %v1541
    %v1606 = vadd.f32 %v1410, %v1542
    %v1607 = vadd.f32 %v1411, %v1543
    %v1608 = vadd.f32 %v1412, %v1544
    %v1609 = vadd.f32 %v1413, %v1545
    %v1610 = vadd.f32 %v1414, %v1546
    %v1611 = vadd.f32 %v1415, %v1547
    %v1612 = vadd.f32 %v1416, %v1548
    %v1613 = vadd.f32 %v1417, %v1549
    %v1614 = vadd.f32 %v1418, %v1550
    %v1615 = vadd.f32 %v1419, %v1551
    %v1616 = vadd.f32 %v1420, %v1552
    %v1617 = vadd.f32 %v1421, %v1553
    %v1618 = vadd.f32 %v1422, %v1554
    %v1619 = vadd.f32 %v1423, %v1555
    %v1620 = vadd.f32 %v1424, %v1556
    %v1621 = vadd.f32 %v1425, %v1557
    %v1622 = vadd.f32 %v1426, %v1558
    %v1623 = vadd.f32 %v1427, %v1559
    %v1624 = vadd.f32 %v1428, %v1560
    %v1625 = vadd.f32 %v1429, %v1561
    %v1626 = vadd.f32 %v1430, %v1562
    %v1627 = vld [vmem:[%s776 + $0x1] sm:$0xff]
    %v1628 = vld [vmem:[%s776 + $0x9] sm:$0xff]
    %v1629 = vld [vmem:[%s776 + $0x19] sm:$0xff]
    %v1630 = vld [vmem:[%s776 + $0x21] sm:$0xff]
    %v1631 = vld [vmem:[%s776 + $0x31] sm:$0xff]
    %v1632 = vld [vmem:[%s776 + $0x39] sm:$0xff]
    %v1633 = vld [vmem:[%s776 + $0x49] sm:$0xff]
    %v1634 = vld [vmem:[%s776 + $0x51] sm:$0xff]
    %v1635 = vld [vmem:[%s776 + $0x61] sm:$0xff]
    %v1636 = vld [vmem:[%s776 + $0x69] sm:$0xff]
    %v1637 = vld [vmem:[%s776 + $0x79] sm:$0xff]
    %v1638 = vld [vmem:[%s776 + $0x81] sm:$0xff]
    %v1639 = vld [vmem:[%s776 + $0x91] sm:$0xff]
    %v1640 = vld [vmem:[%s776 + $0x99] sm:$0xff]
    %v1641 = vld [vmem:[%s776 + $0xa9] sm:$0xff]
    %v1642 = vld [vmem:[%s776 + $0xb1] sm:$0xff]
    %v1643 = vld [vmem:[%s776 + $0xc1] sm:$0xff]
    %v1644 = vld [vmem:[%s776 + $0xc9] sm:$0xff]
    %v1645 = vld [vmem:[%s776 + $0xd9] sm:$0xff]
    %v1646 = vld [vmem:[%s776 + $0xe1] sm:$0xff]
    %v1647 = vld [vmem:[%s776 + $0xf1] sm:$0xff]
    %v1648 = vld [vmem:[%s776 + $0xf9] sm:$0xff]
    %v1649 = vld [vmem:[%s776 + $0x109] sm:$0xff]
    %v1650 = vld [vmem:[%s776 + $0x111] sm:$0xff]
    %v1651 = vld [vmem:[%s776 + $0x121] sm:$0xff]
    %v1652 = vld [vmem:[%s776 + $0x129] sm:$0xff]
    %v1653 = vld [vmem:[%s776 + $0x139] sm:$0xff]
    %v1654 = vld [vmem:[%s776 + $0x141] sm:$0xff]
    %v1655 = vld [vmem:[%s776 + $0x151] sm:$0xff]
    %v1656 = vld [vmem:[%s776 + $0x159] sm:$0xff]
    %v1657 = vld [vmem:[%s776 + $0x169] sm:$0xff]
    %v1658 = vld [vmem:[%s776 + $0x171] sm:$0xff]
    %v1659 = vld [vmem:[%s776 + $0x1b1] sm:$0xff]
    %v1660 = vld [vmem:[%s776 + $0x1b9] sm:$0xff]
    %v1661 = vld [vmem:[%s776 + $0x1c9] sm:$0xff]
    %v1662 = vld [vmem:[%s776 + $0x1d1] sm:$0xff]
    %v1663 = vld [vmem:[%s776 + $0x1e1] sm:$0xff]
    %v1664 = vld [vmem:[%s776 + $0x1e9] sm:$0xff]
    %v1665 = vld [vmem:[%s776 + $0x1f9] sm:$0xff]
    %v1666 = vld [vmem:[%s776 + $0x201] sm:$0xff]
    %v1667 = vld [vmem:[%s776 + $0x211] sm:$0xff]
    %v1668 = vld [vmem:[%s776 + $0x219] sm:$0xff]
    %v1669 = vld [vmem:[%s776 + $0x229] sm:$0xff]
    %v1670 = vld [vmem:[%s776 + $0x231] sm:$0xff]
    %v1671 = vld [vmem:[%s776 + $0x241] sm:$0xff]
    %v1672 = vld [vmem:[%s776 + $0x249] sm:$0xff]
    %v1673 = vld [vmem:[%s776 + $0x259] sm:$0xff]
    %v1674 = vld [vmem:[%s776 + $0x261] sm:$0xff]
    %v1675 = vld [vmem:[%s776 + $0x271] sm:$0xff]
    %v1676 = vld [vmem:[%s776 + $0x279] sm:$0xff]
    %v1677 = vld [vmem:[%s776 + $0x289] sm:$0xff]
    %v1678 = vld [vmem:[%s776 + $0x291] sm:$0xff]
    %v1679 = vld [vmem:[%s776 + $0x2a1] sm:$0xff]
    %v1680 = vld [vmem:[%s776 + $0x2a9] sm:$0xff]
    %v1681 = vld [vmem:[%s776 + $0x2b9] sm:$0xff]
    %v1682 = vld [vmem:[%s776 + $0x2c1] sm:$0xff]
    %v1683 = vld [vmem:[%s776 + $0x2d1] sm:$0xff]
    %v1684 = vld [vmem:[%s776 + $0x2d9] sm:$0xff]
    %v1685 = vld [vmem:[%s776 + $0x2e9] sm:$0xff]
    %v1686 = vld [vmem:[%s776 + $0x2f1] sm:$0xff]
    %v1687 = vld [vmem:[%s776 + $0x301] sm:$0xff]
    %v1688 = vld [vmem:[%s776 + $0x309] sm:$0xff]
    %v1689 = vld [vmem:[%s776 + $0x319] sm:$0xff]
    %v1690 = vld [vmem:[%s776 + $0x321] sm:$0xff]
    %v1691 = vlaneseq
    %v1692 = vshrl.u32 %v1691, 7
    %v1693 = vsub.s32 4, %v1692
    %v1694 = vrot.slane %v905, %v1693
    %v1695 = vmul.f32 %v1627, %v1694
    %v1696 = vmul.f32 %v1628, %v1694
    %v1697 = vmul.f32 %v1629, %v1694
    %v1698 = vmul.f32 %v1630, %v1694
    %v1699 = vmul.f32 %v1631, %v1694
    %v1700 = vmul.f32 %v1632, %v1694
    %v1701 = vmul.f32 %v1633, %v1694
    %v1702 = vmul.f32 %v1634, %v1694
    %v1703 = vmul.f32 %v1635, %v1694
    %v1704 = vmul.f32 %v1636, %v1694
    %v1705 = vmul.f32 %v1637, %v1694
    %v1706 = vmul.f32 %v1638, %v1694
    %v1707 = vmul.f32 %v1639, %v1694
    %v1708 = vmul.f32 %v1640, %v1694
    %v1709 = vmul.f32 %v1641, %v1694
    %v1710 = vmul.f32 %v1642, %v1694
    %v1711 = vmul.f32 %v1643, %v1694
    %v1712 = vmul.f32 %v1644, %v1694
    %v1713 = vmul.f32 %v1645, %v1694
    %v1714 = vmul.f32 %v1646, %v1694
    %v1715 = vmul.f32 %v1647, %v1694
    %v1716 = vmul.f32 %v1648, %v1694
    %v1717 = vmul.f32 %v1649, %v1694
    %v1718 = vmul.f32 %v1650, %v1694
    %v1719 = vmul.f32 %v1651, %v1694
    %v1720 = vmul.f32 %v1652, %v1694
    %v1721 = vmul.f32 %v1653, %v1694
    %v1722 = vmul.f32 %v1654, %v1694
    %v1723 = vmul.f32 %v1655, %v1694
    %v1724 = vmul.f32 %v1656, %v1694
    %v1725 = vmul.f32 %v1657, %v1694
    %v1726 = vmul.f32 %v1658, %v1694
    %v1727 = vmul.f32 %v1659, %v1694
    %v1728 = vmul.f32 %v1660, %v1694
    %v1729 = vmul.f32 %v1661, %v1694
    %v1730 = vmul.f32 %v1662, %v1694
    %v1731 = vmul.f32 %v1663, %v1694
    %v1732 = vmul.f32 %v1664, %v1694
    %v1733 = vmul.f32 %v1665, %v1694
    %v1734 = vmul.f32 %v1666, %v1694
    %v1735 = vmul.f32 %v1667, %v1694
    %v1736 = vmul.f32 %v1668, %v1694
    %v1737 = vmul.f32 %v1669, %v1694
    %v1738 = vmul.f32 %v1670, %v1694
    %v1739 = vmul.f32 %v1671, %v1694
    %v1740 = vmul.f32 %v1672, %v1694
    %v1741 = vmul.f32 %v1673, %v1694
    %v1742 = vmul.f32 %v1674, %v1694
    %v1743 = vmul.f32 %v1675, %v1694
    %v1744 = vmul.f32 %v1676, %v1694
    %v1745 = vmul.f32 %v1677, %v1694
    %v1746 = vmul.f32 %v1678, %v1694
    %v1747 = vmul.f32 %v1679, %v1694
    %v1748 = vmul.f32 %v1680, %v1694
    %v1749 = vmul.f32 %v1681, %v1694
    %v1750 = vmul.f32 %v1682, %v1694
    %v1751 = vmul.f32 %v1683, %v1694
    %v1752 = vmul.f32 %v1684, %v1694
    %v1753 = vmul.f32 %v1685, %v1694
    %v1754 = vmul.f32 %v1686, %v1694
    %v1755 = vmul.f32 %v1687, %v1694
    %v1756 = vmul.f32 %v1688, %v1694
    %v1757 = vmul.f32 %v1689, %v1694
    %v1758 = vmul.f32 %v1690, %v1694
    %v1759 = vadd.f32 %v1563, %v1695
    %v1760 = vadd.f32 %v1564, %v1696
    %v1761 = vadd.f32 %v1565, %v1697
    %v1762 = vadd.f32 %v1566, %v1698
    %v1763 = vadd.f32 %v1567, %v1699
    %v1764 = vadd.f32 %v1568, %v1700
    %v1765 = vadd.f32 %v1569, %v1701
    %v1766 = vadd.f32 %v1570, %v1702
    %v1767 = vadd.f32 %v1571, %v1703
    %v1768 = vadd.f32 %v1572, %v1704
    %v1769 = vadd.f32 %v1573, %v1705
    %v1770 = vadd.f32 %v1574, %v1706
    %v1771 = vadd.f32 %v1575, %v1707
    %v1772 = vadd.f32 %v1576, %v1708
    %v1773 = vadd.f32 %v1577, %v1709
    %v1774 = vadd.f32 %v1578, %v1710
    %v1775 = vadd.f32 %v1579, %v1711
    %v1776 = vadd.f32 %v1580, %v1712
    %v1777 = vadd.f32 %v1581, %v1713
    %v1778 = vadd.f32 %v1582, %v1714
    %v1779 = vadd.f32 %v1583, %v1715
    %v1780 = vadd.f32 %v1584, %v1716
    %v1781 = vadd.f32 %v1585, %v1717
    %v1782 = vadd.f32 %v1586, %v1718
    %v1783 = vadd.f32 %v1587, %v1719
    %v1784 = vadd.f32 %v1588, %v1720
    %v1785 = vadd.f32 %v1589, %v1721
    %v1786 = vadd.f32 %v1590, %v1722
    %v1787 = vadd.f32 %v1591, %v1723
    %v1788 = vadd.f32 %v1592, %v1724
    %v1789 = vadd.f32 %v1593, %v1725
    %v1790 = vadd.f32 %v1594, %v1726
    %v1791 = vadd.f32 %v1595, %v1727
    %v1792 = vadd.f32 %v1596, %v1728
    %v1793 = vadd.f32 %v1597, %v1729
    %v1794 = vadd.f32 %v1598, %v1730
    %v1795 = vadd.f32 %v1599, %v1731
    %v1796 = vadd.f32 %v1600, %v1732
    %v1797 = vadd.f32 %v1601, %v1733
    %v1798 = vadd.f32 %v1602, %v1734
    %v1799 = vadd.f32 %v1603, %v1735
    %v1800 = vadd.f32 %v1604, %v1736
    %v1801 = vadd.f32 %v1605, %v1737
    %v1802 = vadd.f32 %v1606, %v1738
    %v1803 = vadd.f32 %v1607, %v1739
    %v1804 = vadd.f32 %v1608, %v1740
    %v1805 = vadd.f32 %v1609, %v1741
    %v1806 = vadd.f32 %v1610, %v1742
    %v1807 = vadd.f32 %v1611, %v1743
    %v1808 = vadd.f32 %v1612, %v1744
    %v1809 = vadd.f32 %v1613, %v1745
    %v1810 = vadd.f32 %v1614, %v1746
    %v1811 = vadd.f32 %v1615, %v1747
    %v1812 = vadd.f32 %v1616, %v1748
    %v1813 = vadd.f32 %v1617, %v1749
    %v1814 = vadd.f32 %v1618, %v1750
    %v1815 = vadd.f32 %v1619, %v1751
    %v1816 = vadd.f32 %v1620, %v1752
    %v1817 = vadd.f32 %v1621, %v1753
    %v1818 = vadd.f32 %v1622, %v1754
    %v1819 = vadd.f32 %v1623, %v1755
    %v1820 = vadd.f32 %v1624, %v1756
    %v1821 = vadd.f32 %v1625, %v1757
    %v1822 = vadd.f32 %v1626, %v1758
    %v1823 = vld [vmem:[%s776 + $0x2] sm:$0xff]
    %v1824 = vld [vmem:[%s776 + $0xa] sm:$0xff]
    %v1825 = vld [vmem:[%s776 + $0x1a] sm:$0xff]
    %v1826 = vld [vmem:[%s776 + $0x22] sm:$0xff]
    %v1827 = vld [vmem:[%s776 + $0x32] sm:$0xff]
    %v1828 = vld [vmem:[%s776 + $0x3a] sm:$0xff]
    %v1829 = vld [vmem:[%s776 + $0x4a] sm:$0xff]
    %v1830 = vld [vmem:[%s776 + $0x52] sm:$0xff]
    %v1831 = vld [vmem:[%s776 + $0x62] sm:$0xff]
    %v1832 = vld [vmem:[%s776 + $0x6a] sm:$0xff]
    %v1833 = vld [vmem:[%s776 + $0x7a] sm:$0xff]
    %v1834 = vld [vmem:[%s776 + $0x82] sm:$0xff]
    %v1835 = vld [vmem:[%s776 + $0x92] sm:$0xff]
    %v1836 = vld [vmem:[%s776 + $0x9a] sm:$0xff]
    %v1837 = vld [vmem:[%s776 + $0xaa] sm:$0xff]
    %v1838 = vld [vmem:[%s776 + $0xb2] sm:$0xff]
    %v1839 = vld [vmem:[%s776 + $0xc2] sm:$0xff]
    %v1840 = vld [vmem:[%s776 + $0xca] sm:$0xff]
    %v1841 = vld [vmem:[%s776 + $0xda] sm:$0xff]
    %v1842 = vld [vmem:[%s776 + $0xe2] sm:$0xff]
    %v1843 = vld [vmem:[%s776 + $0xf2] sm:$0xff]
    %v1844 = vld [vmem:[%s776 + $0xfa] sm:$0xff]
    %v1845 = vld [vmem:[%s776 + $0x10a] sm:$0xff]
    %v1846 = vld [vmem:[%s776 + $0x112] sm:$0xff]
    %v1847 = vld [vmem:[%s776 + $0x122] sm:$0xff]
    %v1848 = vld [vmem:[%s776 + $0x12a] sm:$0xff]
    %v1849 = vld [vmem:[%s776 + $0x13a] sm:$0xff]
    %v1850 = vld [vmem:[%s776 + $0x142] sm:$0xff]
    %v1851 = vld [vmem:[%s776 + $0x152] sm:$0xff]
    %v1852 = vld [vmem:[%s776 + $0x15a] sm:$0xff]
    %v1853 = vld [vmem:[%s776 + $0x16a] sm:$0xff]
    %v1854 = vld [vmem:[%s776 + $0x172] sm:$0xff]
    %v1855 = vld [vmem:[%s776 + $0x1b2] sm:$0xff]
    %v1856 = vld [vmem:[%s776 + $0x1ba] sm:$0xff]
    %v1857 = vld [vmem:[%s776 + $0x1ca] sm:$0xff]
    %v1858 = vld [vmem:[%s776 + $0x1d2] sm:$0xff]
    %v1859 = vld [vmem:[%s776 + $0x1e2] sm:$0xff]
    %v1860 = vld [vmem:[%s776 + $0x1ea] sm:$0xff]
    %v1861 = vld [vmem:[%s776 + $0x1fa] sm:$0xff]
    %v1862 = vld [vmem:[%s776 + $0x202] sm:$0xff]
    %v1863 = vld [vmem:[%s776 + $0x212] sm:$0xff]
    %v1864 = vld [vmem:[%s776 + $0x21a] sm:$0xff]
    %v1865 = vld [vmem:[%s776 + $0x22a] sm:$0xff]
    %v1866 = vld [vmem:[%s776 + $0x232] sm:$0xff]
    %v1867 = vld [vmem:[%s776 + $0x242] sm:$0xff]
    %v1868 = vld [vmem:[%s776 + $0x24a] sm:$0xff]
    %v1869 = vld [vmem:[%s776 + $0x25a] sm:$0xff]
    %v1870 = vld [vmem:[%s776 + $0x262] sm:$0xff]
    %v1871 = vld [vmem:[%s776 + $0x272] sm:$0xff]
    %v1872 = vld [vmem:[%s776 + $0x27a] sm:$0xff]
    %v1873 = vld [vmem:[%s776 + $0x28a] sm:$0xff]
    %v1874 = vld [vmem:[%s776 + $0x292] sm:$0xff]
    %v1875 = vld [vmem:[%s776 + $0x2a2] sm:$0xff]
    %v1876 = vld [vmem:[%s776 + $0x2aa] sm:$0xff]
    %v1877 = vld [vmem:[%s776 + $0x2ba] sm:$0xff]
    %v1878 = vld [vmem:[%s776 + $0x2c2] sm:$0xff]
    %v1879 = vld [vmem:[%s776 + $0x2d2] sm:$0xff]
    %v1880 = vld [vmem:[%s776 + $0x2da] sm:$0xff]
    %v1881 = vld [vmem:[%s776 + $0x2ea] sm:$0xff]
    %v1882 = vld [vmem:[%s776 + $0x2f2] sm:$0xff]
    %v1883 = vld [vmem:[%s776 + $0x302] sm:$0xff]
    %v1884 = vld [vmem:[%s776 + $0x30a] sm:$0xff]
    %v1885 = vld [vmem:[%s776 + $0x31a] sm:$0xff]
    %v1886 = vld [vmem:[%s776 + $0x322] sm:$0xff]
    %v1887 = vlaneseq
    %v1888 = vshrl.u32 %v1887, 7
    %v1889 = vsub.s32 5, %v1888
    %v1890 = vrot.slane %v905, %v1889
    %v1891 = vmul.f32 %v1823, %v1890
    %v1892 = vmul.f32 %v1824, %v1890
    %v1893 = vmul.f32 %v1825, %v1890
    %v1894 = vmul.f32 %v1826, %v1890
    %v1895 = vmul.f32 %v1827, %v1890
    %v1896 = vmul.f32 %v1828, %v1890
    %v1897 = vmul.f32 %v1829, %v1890
    %v1898 = vmul.f32 %v1830, %v1890
    %v1899 = vmul.f32 %v1831, %v1890
    %v1900 = vmul.f32 %v1832, %v1890
    %v1901 = vmul.f32 %v1833, %v1890
    %v1902 = vmul.f32 %v1834, %v1890
    %v1903 = vmul.f32 %v1835, %v1890
    %v1904 = vmul.f32 %v1836, %v1890
    %v1905 = vmul.f32 %v1837, %v1890
    %v1906 = vmul.f32 %v1838, %v1890
    %v1907 = vmul.f32 %v1839, %v1890
    %v1908 = vmul.f32 %v1840, %v1890
    %v1909 = vmul.f32 %v1841, %v1890
    %v1910 = vmul.f32 %v1842, %v1890
    %v1911 = vmul.f32 %v1843, %v1890
    %v1912 = vmul.f32 %v1844, %v1890
    %v1913 = vmul.f32 %v1845, %v1890
    %v1914 = vmul.f32 %v1846, %v1890
    %v1915 = vmul.f32 %v1847, %v1890
    %v1916 = vmul.f32 %v1848, %v1890
    %v1917 = vmul.f32 %v1849, %v1890
    %v1918 = vmul.f32 %v1850, %v1890
    %v1919 = vmul.f32 %v1851, %v1890
    %v1920 = vmul.f32 %v1852, %v1890
    %v1921 = vmul.f32 %v1853, %v1890
    %v1922 = vmul.f32 %v1854, %v1890
    %v1923 = vmul.f32 %v1855, %v1890
    %v1924 = vmul.f32 %v1856, %v1890
    %v1925 = vmul.f32 %v1857, %v1890
    %v1926 = vmul.f32 %v1858, %v1890
    %v1927 = vmul.f32 %v1859, %v1890
    %v1928 = vmul.f32 %v1860, %v1890
    %v1929 = vmul.f32 %v1861, %v1890
    %v1930 = vmul.f32 %v1862, %v1890
    %v1931 = vmul.f32 %v1863, %v1890
    %v1932 = vmul.f32 %v1864, %v1890
    %v1933 = vmul.f32 %v1865, %v1890
    %v1934 = vmul.f32 %v1866, %v1890
    %v1935 = vmul.f32 %v1867, %v1890
    %v1936 = vmul.f32 %v1868, %v1890
    %v1937 = vmul.f32 %v1869, %v1890
    %v1938 = vmul.f32 %v1870, %v1890
    %v1939 = vmul.f32 %v1871, %v1890
    %v1940 = vmul.f32 %v1872, %v1890
    %v1941 = vmul.f32 %v1873, %v1890
    %v1942 = vmul.f32 %v1874, %v1890
    %v1943 = vmul.f32 %v1875, %v1890
    %v1944 = vmul.f32 %v1876, %v1890
    %v1945 = vmul.f32 %v1877, %v1890
    %v1946 = vmul.f32 %v1878, %v1890
    %v1947 = vmul.f32 %v1879, %v1890
    %v1948 = vmul.f32 %v1880, %v1890
    %v1949 = vmul.f32 %v1881, %v1890
    %v1950 = vmul.f32 %v1882, %v1890
    %v1951 = vmul.f32 %v1883, %v1890
    %v1952 = vmul.f32 %v1884, %v1890
    %v1953 = vmul.f32 %v1885, %v1890
    %v1954 = vmul.f32 %v1886, %v1890
    %v1955 = vadd.f32 %v1759, %v1891
    %v1956 = vadd.f32 %v1760, %v1892
    %v1957 = vadd.f32 %v1761, %v1893
    %v1958 = vadd.f32 %v1762, %v1894
    %v1959 = vadd.f32 %v1763, %v1895
    %v1960 = vadd.f32 %v1764, %v1896
    %v1961 = vadd.f32 %v1765, %v1897
    %v1962 = vadd.f32 %v1766, %v1898
    %v1963 = vadd.f32 %v1767, %v1899
    %v1964 = vadd.f32 %v1768, %v1900
    %v1965 = vadd.f32 %v1769, %v1901
    %v1966 = vadd.f32 %v1770, %v1902
    %v1967 = vadd.f32 %v1771, %v1903
    %v1968 = vadd.f32 %v1772, %v1904
    %v1969 = vadd.f32 %v1773, %v1905
    %v1970 = vadd.f32 %v1774, %v1906
    %v1971 = vadd.f32 %v1775, %v1907
    %v1972 = vadd.f32 %v1776, %v1908
    %v1973 = vadd.f32 %v1777, %v1909
    %v1974 = vadd.f32 %v1778, %v1910
    %v1975 = vadd.f32 %v1779, %v1911
    %v1976 = vadd.f32 %v1780, %v1912
    %v1977 = vadd.f32 %v1781, %v1913
    %v1978 = vadd.f32 %v1782, %v1914
    %v1979 = vadd.f32 %v1783, %v1915
    %v1980 = vadd.f32 %v1784, %v1916
    %v1981 = vadd.f32 %v1785, %v1917
    %v1982 = vadd.f32 %v1786, %v1918
    %v1983 = vadd.f32 %v1787, %v1919
    %v1984 = vadd.f32 %v1788, %v1920
    %v1985 = vadd.f32 %v1789, %v1921
    %v1986 = vadd.f32 %v1790, %v1922
    %v1987 = vadd.f32 %v1791, %v1923
    %v1988 = vadd.f32 %v1792, %v1924
    %v1989 = vadd.f32 %v1793, %v1925
    %v1990 = vadd.f32 %v1794, %v1926
    %v1991 = vadd.f32 %v1795, %v1927
    %v1992 = vadd.f32 %v1796, %v1928
    %v1993 = vadd.f32 %v1797, %v1929
    %v1994 = vadd.f32 %v1798, %v1930
    %v1995 = vadd.f32 %v1799, %v1931
    %v1996 = vadd.f32 %v1800, %v1932
    %v1997 = vadd.f32 %v1801, %v1933
    %v1998 = vadd.f32 %v1802, %v1934
    %v1999 = vadd.f32 %v1803, %v1935
    %v2000 = vadd.f32 %v1804, %v1936
    %v2001 = vadd.f32 %v1805, %v1937
    %v2002 = vadd.f32 %v1806, %v1938
    %v2003 = vadd.f32 %v1807, %v1939
    %v2004 = vadd.f32 %v1808, %v1940
    %v2005 = vadd.f32 %v1809, %v1941
    %v2006 = vadd.f32 %v1810, %v1942
    %v2007 = vadd.f32 %v1811, %v1943
    %v2008 = vadd.f32 %v1812, %v1944
    %v2009 = vadd.f32 %v1813, %v1945
    %v2010 = vadd.f32 %v1814, %v1946
    %v2011 = vadd.f32 %v1815, %v1947
    %v2012 = vadd.f32 %v1816, %v1948
    %v2013 = vadd.f32 %v1817, %v1949
    %v2014 = vadd.f32 %v1818, %v1950
    %v2015 = vadd.f32 %v1819, %v1951
    %v2016 = vadd.f32 %v1820, %v1952
    %v2017 = vadd.f32 %v1821, %v1953
    %v2018 = vadd.f32 %v1822, %v1954
    %s2019 = scalar_lea.vmem [#allocation2], 48
    %v2020 = vld [vmem:[%s2019] sm:$0xff]
    %v2021 = vld [vmem:[%s2019 + $0x8] sm:$0xff]
    %v2022 = vld [vmem:[%s2019 + $0x18] sm:$0xff]
    %v2023 = vld [vmem:[%s2019 + $0x20] sm:$0xff]
    %v2024 = vld [vmem:[%s2019 + $0x30] sm:$0xff]
    %v2025 = vld [vmem:[%s2019 + $0x38] sm:$0xff]
    %v2026 = vld [vmem:[%s2019 + $0x48] sm:$0xff]
    %v2027 = vld [vmem:[%s2019 + $0x50] sm:$0xff]
    %v2028 = vld [vmem:[%s2019 + $0x60] sm:$0xff]
    %v2029 = vld [vmem:[%s2019 + $0x68] sm:$0xff]
    %v2030 = vld [vmem:[%s2019 + $0x78] sm:$0xff]
    %v2031 = vld [vmem:[%s2019 + $0x80] sm:$0xff]
    %v2032 = vld [vmem:[%s2019 + $0x90] sm:$0xff]
    %v2033 = vld [vmem:[%s2019 + $0x98] sm:$0xff]
    %v2034 = vld [vmem:[%s2019 + $0xa8] sm:$0xff]
    %v2035 = vld [vmem:[%s2019 + $0xb0] sm:$0xff]
    %v2036 = vld [vmem:[%s2019 + $0xc0] sm:$0xff]
    %v2037 = vld [vmem:[%s2019 + $0xc8] sm:$0xff]
    %v2038 = vld [vmem:[%s2019 + $0xd8] sm:$0xff]
    %v2039 = vld [vmem:[%s2019 + $0xe0] sm:$0xff]
    %v2040 = vld [vmem:[%s2019 + $0xf0] sm:$0xff]
    %v2041 = vld [vmem:[%s2019 + $0xf8] sm:$0xff]
    %v2042 = vld [vmem:[%s2019 + $0x108] sm:$0xff]
    %v2043 = vld [vmem:[%s2019 + $0x110] sm:$0xff]
    %v2044 = vld [vmem:[%s2019 + $0x120] sm:$0xff]
    %v2045 = vld [vmem:[%s2019 + $0x128] sm:$0xff]
    %v2046 = vld [vmem:[%s2019 + $0x138] sm:$0xff]
    %v2047 = vld [vmem:[%s2019 + $0x140] sm:$0xff]
    %v2048 = vld [vmem:[%s2019 + $0x150] sm:$0xff]
    %v2049 = vld [vmem:[%s2019 + $0x158] sm:$0xff]
    %v2050 = vld [vmem:[%s2019 + $0x168] sm:$0xff]
    %v2051 = vld [vmem:[%s2019 + $0x170] sm:$0xff]
    %v2052 = vld [vmem:[%s2019 + $0x1b0] sm:$0xff]
    %v2053 = vld [vmem:[%s2019 + $0x1b8] sm:$0xff]
    %v2054 = vld [vmem:[%s2019 + $0x1c8] sm:$0xff]
    %v2055 = vld [vmem:[%s2019 + $0x1d0] sm:$0xff]
    %v2056 = vld [vmem:[%s2019 + $0x1e0] sm:$0xff]
    %v2057 = vld [vmem:[%s2019 + $0x1e8] sm:$0xff]
    %v2058 = vld [vmem:[%s2019 + $0x1f8] sm:$0xff]
    %v2059 = vld [vmem:[%s2019 + $0x200] sm:$0xff]
    %v2060 = vld [vmem:[%s2019 + $0x210] sm:$0xff]
    %v2061 = vld [vmem:[%s2019 + $0x218] sm:$0xff]
    %v2062 = vld [vmem:[%s2019 + $0x228] sm:$0xff]
    %v2063 = vld [vmem:[%s2019 + $0x230] sm:$0xff]
    %v2064 = vld [vmem:[%s2019 + $0x240] sm:$0xff]
    %v2065 = vld [vmem:[%s2019 + $0x248] sm:$0xff]
    %v2066 = vld [vmem:[%s2019 + $0x258] sm:$0xff]
    %v2067 = vld [vmem:[%s2019 + $0x260] sm:$0xff]
    %v2068 = vld [vmem:[%s2019 + $0x270] sm:$0xff]
    %v2069 = vld [vmem:[%s2019 + $0x278] sm:$0xff]
    %v2070 = vld [vmem:[%s2019 + $0x288] sm:$0xff]
    %v2071 = vld [vmem:[%s2019 + $0x290] sm:$0xff]
    %v2072 = vld [vmem:[%s2019 + $0x2a0] sm:$0xff]
    %v2073 = vld [vmem:[%s2019 + $0x2a8] sm:$0xff]
    %v2074 = vld [vmem:[%s2019 + $0x2b8] sm:$0xff]
    %v2075 = vld [vmem:[%s2019 + $0x2c0] sm:$0xff]
    %v2076 = vld [vmem:[%s2019 + $0x2d0] sm:$0xff]
    %v2077 = vld [vmem:[%s2019 + $0x2d8] sm:$0xff]
    %v2078 = vld [vmem:[%s2019 + $0x2e8] sm:$0xff]
    %v2079 = vld [vmem:[%s2019 + $0x2f0] sm:$0xff]
    %v2080 = vld [vmem:[%s2019 + $0x300] sm:$0xff]
    %v2081 = vld [vmem:[%s2019 + $0x308] sm:$0xff]
    %v2082 = vld [vmem:[%s2019 + $0x318] sm:$0xff]
    %v2083 = vld [vmem:[%s2019 + $0x320] sm:$0xff]
    %v2084 = vlaneseq
    %v2085 = vshrl.u32 %v2084, 7
    %v2086 = vsub.s32 6, %v2085
    %v2087 = vrot.slane %v905, %v2086
    %v2088 = vmul.f32 %v2020, %v2087
    %v2089 = vmul.f32 %v2021, %v2087
    %v2090 = vmul.f32 %v2022, %v2087
    %v2091 = vmul.f32 %v2023, %v2087
    %v2092 = vmul.f32 %v2024, %v2087
    %v2093 = vmul.f32 %v2025, %v2087
    %v2094 = vmul.f32 %v2026, %v2087
    %v2095 = vmul.f32 %v2027, %v2087
    %v2096 = vmul.f32 %v2028, %v2087
    %v2097 = vmul.f32 %v2029, %v2087
    %v2098 = vmul.f32 %v2030, %v2087
    %v2099 = vmul.f32 %v2031, %v2087
    %v2100 = vmul.f32 %v2032, %v2087
    %v2101 = vmul.f32 %v2033, %v2087
    %v2102 = vmul.f32 %v2034, %v2087
    %v2103 = vmul.f32 %v2035, %v2087
    %v2104 = vmul.f32 %v2036, %v2087
    %v2105 = vmul.f32 %v2037, %v2087
    %v2106 = vmul.f32 %v2038, %v2087
    %v2107 = vmul.f32 %v2039, %v2087
    %v2108 = vmul.f32 %v2040, %v2087
    %v2109 = vmul.f32 %v2041, %v2087
    %v2110 = vmul.f32 %v2042, %v2087
    %v2111 = vmul.f32 %v2043, %v2087
    %v2112 = vmul.f32 %v2044, %v2087
    %v2113 = vmul.f32 %v2045, %v2087
    %v2114 = vmul.f32 %v2046, %v2087
    %v2115 = vmul.f32 %v2047, %v2087
    %v2116 = vmul.f32 %v2048, %v2087
    %v2117 = vmul.f32 %v2049, %v2087
    %v2118 = vmul.f32 %v2050, %v2087
    %v2119 = vmul.f32 %v2051, %v2087
    %v2120 = vmul.f32 %v2052, %v2087
    %v2121 = vmul.f32 %v2053, %v2087
    %v2122 = vmul.f32 %v2054, %v2087
    %v2123 = vmul.f32 %v2055, %v2087
    %v2124 = vmul.f32 %v2056, %v2087
    %v2125 = vmul.f32 %v2057, %v2087
    %v2126 = vmul.f32 %v2058, %v2087
    %v2127 = vmul.f32 %v2059, %v2087
    %v2128 = vmul.f32 %v2060, %v2087
    %v2129 = vmul.f32 %v2061, %v2087
    %v2130 = vmul.f32 %v2062, %v2087
    %v2131 = vmul.f32 %v2063, %v2087
    %v2132 = vmul.f32 %v2064, %v2087
    %v2133 = vmul.f32 %v2065, %v2087
    %v2134 = vmul.f32 %v2066, %v2087
    %v2135 = vmul.f32 %v2067, %v2087
    %v2136 = vmul.f32 %v2068, %v2087
    %v2137 = vmul.f32 %v2069, %v2087
    %v2138 = vmul.f32 %v2070, %v2087
    %v2139 = vmul.f32 %v2071, %v2087
    %v2140 = vmul.f32 %v2072, %v2087
    %v2141 = vmul.f32 %v2073, %v2087
    %v2142 = vmul.f32 %v2074, %v2087
    %v2143 = vmul.f32 %v2075, %v2087
    %v2144 = vmul.f32 %v2076, %v2087
    %v2145 = vmul.f32 %v2077, %v2087
    %v2146 = vmul.f32 %v2078, %v2087
    %v2147 = vmul.f32 %v2079, %v2087
    %v2148 = vmul.f32 %v2080, %v2087
    %v2149 = vmul.f32 %v2081, %v2087
    %v2150 = vmul.f32 %v2082, %v2087
    %v2151 = vmul.f32 %v2083, %v2087
    %v2152 = vadd.f32 %v1955, %v2088
    %v2153 = vadd.f32 %v1956, %v2089
    %v2154 = vadd.f32 %v1957, %v2090
    %v2155 = vadd.f32 %v1958, %v2091
    %v2156 = vadd.f32 %v1959, %v2092
    %v2157 = vadd.f32 %v1960, %v2093
    %v2158 = vadd.f32 %v1961, %v2094
    %v2159 = vadd.f32 %v1962, %v2095
    %v2160 = vadd.f32 %v1963, %v2096
    %v2161 = vadd.f32 %v1964, %v2097
    %v2162 = vadd.f32 %v1965, %v2098
    %v2163 = vadd.f32 %v1966, %v2099
    %v2164 = vadd.f32 %v1967, %v2100
    %v2165 = vadd.f32 %v1968, %v2101
    %v2166 = vadd.f32 %v1969, %v2102
    %v2167 = vadd.f32 %v1970, %v2103
    %v2168 = vadd.f32 %v1971, %v2104
    %v2169 = vadd.f32 %v1972, %v2105
    %v2170 = vadd.f32 %v1973, %v2106
    %v2171 = vadd.f32 %v1974, %v2107
    %v2172 = vadd.f32 %v1975, %v2108
    %v2173 = vadd.f32 %v1976, %v2109
    %v2174 = vadd.f32 %v1977, %v2110
    %v2175 = vadd.f32 %v1978, %v2111
    %v2176 = vadd.f32 %v1979, %v2112
    %v2177 = vadd.f32 %v1980, %v2113
    %v2178 = vadd.f32 %v1981, %v2114
    %v2179 = vadd.f32 %v1982, %v2115
    %v2180 = vadd.f32 %v1983, %v2116
    %v2181 = vadd.f32 %v1984, %v2117
    %v2182 = vadd.f32 %v1985, %v2118
    %v2183 = vadd.f32 %v1986, %v2119
    %v2184 = vadd.f32 %v1987, %v2120
    %v2185 = vadd.f32 %v1988, %v2121
    %v2186 = vadd.f32 %v1989, %v2122
    %v2187 = vadd.f32 %v1990, %v2123
    %v2188 = vadd.f32 %v1991, %v2124
    %v2189 = vadd.f32 %v1992, %v2125
    %v2190 = vadd.f32 %v1993, %v2126
    %v2191 = vadd.f32 %v1994, %v2127
    %v2192 = vadd.f32 %v1995, %v2128
    %v2193 = vadd.f32 %v1996, %v2129
    %v2194 = vadd.f32 %v1997, %v2130
    %v2195 = vadd.f32 %v1998, %v2131
    %v2196 = vadd.f32 %v1999, %v2132
    %v2197 = vadd.f32 %v2000, %v2133
    %v2198 = vadd.f32 %v2001, %v2134
    %v2199 = vadd.f32 %v2002, %v2135
    %v2200 = vadd.f32 %v2003, %v2136
    %v2201 = vadd.f32 %v2004, %v2137
    %v2202 = vadd.f32 %v2005, %v2138
    %v2203 = vadd.f32 %v2006, %v2139
    %v2204 = vadd.f32 %v2007, %v2140
    %v2205 = vadd.f32 %v2008, %v2141
    %v2206 = vadd.f32 %v2009, %v2142
    %v2207 = vadd.f32 %v2010, %v2143
    %v2208 = vadd.f32 %v2011, %v2144
    %v2209 = vadd.f32 %v2012, %v2145
    %v2210 = vadd.f32 %v2013, %v2146
    %v2211 = vadd.f32 %v2014, %v2147
    %v2212 = vadd.f32 %v2015, %v2148
    %v2213 = vadd.f32 %v2016, %v2149
    %v2214 = vadd.f32 %v2017, %v2150
    %v2215 = vadd.f32 %v2018, %v2151
    %v2216 = vld [vmem:[%s2019 + $0x1] sm:$0xff]
    %v2217 = vld [vmem:[%s2019 + $0x9] sm:$0xff]
    %v2218 = vld [vmem:[%s2019 + $0x19] sm:$0xff]
    %v2219 = vld [vmem:[%s2019 + $0x21] sm:$0xff]
    %v2220 = vld [vmem:[%s2019 + $0x31] sm:$0xff]
    %v2221 = vld [vmem:[%s2019 + $0x39] sm:$0xff]
    %v2222 = vld [vmem:[%s2019 + $0x49] sm:$0xff]
    %v2223 = vld [vmem:[%s2019 + $0x51] sm:$0xff]
    %v2224 = vld [vmem:[%s2019 + $0x61] sm:$0xff]
    %v2225 = vld [vmem:[%s2019 + $0x69] sm:$0xff]
    %v2226 = vld [vmem:[%s2019 + $0x79] sm:$0xff]
    %v2227 = vld [vmem:[%s2019 + $0x81] sm:$0xff]
    %v2228 = vld [vmem:[%s2019 + $0x91] sm:$0xff]
    %v2229 = vld [vmem:[%s2019 + $0x99] sm:$0xff]
    %v2230 = vld [vmem:[%s2019 + $0xa9] sm:$0xff]
    %v2231 = vld [vmem:[%s2019 + $0xb1] sm:$0xff]
    %v2232 = vld [vmem:[%s2019 + $0xc1] sm:$0xff]
    %v2233 = vld [vmem:[%s2019 + $0xc9] sm:$0xff]
    %v2234 = vld [vmem:[%s2019 + $0xd9] sm:$0xff]
    %v2235 = vld [vmem:[%s2019 + $0xe1] sm:$0xff]
    %v2236 = vld [vmem:[%s2019 + $0xf1] sm:$0xff]
    %v2237 = vld [vmem:[%s2019 + $0xf9] sm:$0xff]
    %v2238 = vld [vmem:[%s2019 + $0x109] sm:$0xff]
    %v2239 = vld [vmem:[%s2019 + $0x111] sm:$0xff]
    %v2240 = vld [vmem:[%s2019 + $0x121] sm:$0xff]
    %v2241 = vld [vmem:[%s2019 + $0x129] sm:$0xff]
    %v2242 = vld [vmem:[%s2019 + $0x139] sm:$0xff]
    %v2243 = vld [vmem:[%s2019 + $0x141] sm:$0xff]
    %v2244 = vld [vmem:[%s2019 + $0x151] sm:$0xff]
    %v2245 = vld [vmem:[%s2019 + $0x159] sm:$0xff]
    %v2246 = vld [vmem:[%s2019 + $0x169] sm:$0xff]
    %v2247 = vld [vmem:[%s2019 + $0x171] sm:$0xff]
    %v2248 = vld [vmem:[%s2019 + $0x1b1] sm:$0xff]
    %v2249 = vld [vmem:[%s2019 + $0x1b9] sm:$0xff]
    %v2250 = vld [vmem:[%s2019 + $0x1c9] sm:$0xff]
    %v2251 = vld [vmem:[%s2019 + $0x1d1] sm:$0xff]
    %v2252 = vld [vmem:[%s2019 + $0x1e1] sm:$0xff]
    %v2253 = vld [vmem:[%s2019 + $0x1e9] sm:$0xff]
    %v2254 = vld [vmem:[%s2019 + $0x1f9] sm:$0xff]
    %v2255 = vld [vmem:[%s2019 + $0x201] sm:$0xff]
    %v2256 = vld [vmem:[%s2019 + $0x211] sm:$0xff]
    %v2257 = vld [vmem:[%s2019 + $0x219] sm:$0xff]
    %v2258 = vld [vmem:[%s2019 + $0x229] sm:$0xff]
    %v2259 = vld [vmem:[%s2019 + $0x231] sm:$0xff]
    %v2260 = vld [vmem:[%s2019 + $0x241] sm:$0xff]
    %v2261 = vld [vmem:[%s2019 + $0x249] sm:$0xff]
    %v2262 = vld [vmem:[%s2019 + $0x259] sm:$0xff]
    %v2263 = vld [vmem:[%s2019 + $0x261] sm:$0xff]
    %v2264 = vld [vmem:[%s2019 + $0x271] sm:$0xff]
    %v2265 = vld [vmem:[%s2019 + $0x279] sm:$0xff]
    %v2266 = vld [vmem:[%s2019 + $0x289] sm:$0xff]
    %v2267 = vld [vmem:[%s2019 + $0x291] sm:$0xff]
    %v2268 = vld [vmem:[%s2019 + $0x2a1] sm:$0xff]
    %v2269 = vld [vmem:[%s2019 + $0x2a9] sm:$0xff]
    %v2270 = vld [vmem:[%s2019 + $0x2b9] sm:$0xff]
    %v2271 = vld [vmem:[%s2019 + $0x2c1] sm:$0xff]
    %v2272 = vld [vmem:[%s2019 + $0x2d1] sm:$0xff]
    %v2273 = vld [vmem:[%s2019 + $0x2d9] sm:$0xff]
    %v2274 = vld [vmem:[%s2019 + $0x2e9] sm:$0xff]
    %v2275 = vld [vmem:[%s2019 + $0x2f1] sm:$0xff]
    %v2276 = vld [vmem:[%s2019 + $0x301] sm:$0xff]
    %v2277 = vld [vmem:[%s2019 + $0x309] sm:$0xff]
    %v2278 = vld [vmem:[%s2019 + $0x319] sm:$0xff]
    %v2279 = vld [vmem:[%s2019 + $0x321] sm:$0xff]
    %v2280 = vlaneseq
    %v2281 = vshrl.u32 %v2280, 7
    %v2282 = vsub.s32 7, %v2281
    %v2283 = vrot.slane %v905, %v2282
    %v2284 = vmul.f32 %v2216, %v2283
    %v2285 = vmul.f32 %v2217, %v2283
    %v2286 = vmul.f32 %v2218, %v2283
    %v2287 = vmul.f32 %v2219, %v2283
    %v2288 = vmul.f32 %v2220, %v2283
    %v2289 = vmul.f32 %v2221, %v2283
    %v2290 = vmul.f32 %v2222, %v2283
    %v2291 = vmul.f32 %v2223, %v2283
    %v2292 = vmul.f32 %v2224, %v2283
    %v2293 = vmul.f32 %v2225, %v2283
    %v2294 = vmul.f32 %v2226, %v2283
    %v2295 = vmul.f32 %v2227, %v2283
    %v2296 = vmul.f32 %v2228, %v2283
    %v2297 = vmul.f32 %v2229, %v2283
    %v2298 = vmul.f32 %v2230, %v2283
    %v2299 = vmul.f32 %v2231, %v2283
    %v2300 = vmul.f32 %v2232, %v2283
    %v2301 = vmul.f32 %v2233, %v2283
    %v2302 = vmul.f32 %v2234, %v2283
    %v2303 = vmul.f32 %v2235, %v2283
    %v2304 = vmul.f32 %v2236, %v2283
    %v2305 = vmul.f32 %v2237, %v2283
    %v2306 = vmul.f32 %v2238, %v2283
    %v2307 = vmul.f32 %v2239, %v2283
    %v2308 = vmul.f32 %v2240, %v2283
    %v2309 = vmul.f32 %v2241, %v2283
    %v2310 = vmul.f32 %v2242, %v2283
    %v2311 = vmul.f32 %v2243, %v2283
    %v2312 = vmul.f32 %v2244, %v2283
    %v2313 = vmul.f32 %v2245, %v2283
    %v2314 = vmul.f32 %v2246, %v2283
    %v2315 = vmul.f32 %v2247, %v2283
    %v2316 = vmul.f32 %v2248, %v2283
    %v2317 = vmul.f32 %v2249, %v2283
    %v2318 = vmul.f32 %v2250, %v2283
    %v2319 = vmul.f32 %v2251, %v2283
    %v2320 = vmul.f32 %v2252, %v2283
    %v2321 = vmul.f32 %v2253, %v2283
    %v2322 = vmul.f32 %v2254, %v2283
    %v2323 = vmul.f32 %v2255, %v2283
    %v2324 = vmul.f32 %v2256, %v2283
    %v2325 = vmul.f32 %v2257, %v2283
    %v2326 = vmul.f32 %v2258, %v2283
    %v2327 = vmul.f32 %v2259, %v2283
    %v2328 = vmul.f32 %v2260, %v2283
    %v2329 = vmul.f32 %v2261, %v2283
    %v2330 = vmul.f32 %v2262, %v2283
    %v2331 = vmul.f32 %v2263, %v2283
    %v2332 = vmul.f32 %v2264, %v2283
    %v2333 = vmul.f32 %v2265, %v2283
    %v2334 = vmul.f32 %v2266, %v2283
    %v2335 = vmul.f32 %v2267, %v2283
    %v2336 = vmul.f32 %v2268, %v2283
    %v2337 = vmul.f32 %v2269, %v2283
    %v2338 = vmul.f32 %v2270, %v2283
    %v2339 = vmul.f32 %v2271, %v2283
    %v2340 = vmul.f32 %v2272, %v2283
    %v2341 = vmul.f32 %v2273, %v2283
    %v2342 = vmul.f32 %v2274, %v2283
    %v2343 = vmul.f32 %v2275, %v2283
    %v2344 = vmul.f32 %v2276, %v2283
    %v2345 = vmul.f32 %v2277, %v2283
    %v2346 = vmul.f32 %v2278, %v2283
    %v2347 = vmul.f32 %v2279, %v2283
    %v2348 = vadd.f32 %v2152, %v2284
    %v2349 = vadd.f32 %v2153, %v2285
    %v2350 = vadd.f32 %v2154, %v2286
    %v2351 = vadd.f32 %v2155, %v2287
    %v2352 = vadd.f32 %v2156, %v2288
    %v2353 = vadd.f32 %v2157, %v2289
    %v2354 = vadd.f32 %v2158, %v2290
    %v2355 = vadd.f32 %v2159, %v2291
    %v2356 = vadd.f32 %v2160, %v2292
    %v2357 = vadd.f32 %v2161, %v2293
    %v2358 = vadd.f32 %v2162, %v2294
    %v2359 = vadd.f32 %v2163, %v2295
    %v2360 = vadd.f32 %v2164, %v2296
    %v2361 = vadd.f32 %v2165, %v2297
    %v2362 = vadd.f32 %v2166, %v2298
    %v2363 = vadd.f32 %v2167, %v2299
    %v2364 = vadd.f32 %v2168, %v2300
    %v2365 = vadd.f32 %v2169, %v2301
    %v2366 = vadd.f32 %v2170, %v2302
    %v2367 = vadd.f32 %v2171, %v2303
    %v2368 = vadd.f32 %v2172, %v2304
    %v2369 = vadd.f32 %v2173, %v2305
    %v2370 = vadd.f32 %v2174, %v2306
    %v2371 = vadd.f32 %v2175, %v2307
    %v2372 = vadd.f32 %v2176, %v2308
    %v2373 = vadd.f32 %v2177, %v2309
    %v2374 = vadd.f32 %v2178, %v2310
    %v2375 = vadd.f32 %v2179, %v2311
    %v2376 = vadd.f32 %v2180, %v2312
    %v2377 = vadd.f32 %v2181, %v2313
    %v2378 = vadd.f32 %v2182, %v2314
    %v2379 = vadd.f32 %v2183, %v2315
    %v2380 = vadd.f32 %v2184, %v2316
    %v2381 = vadd.f32 %v2185, %v2317
    %v2382 = vadd.f32 %v2186, %v2318
    %v2383 = vadd.f32 %v2187, %v2319
    %v2384 = vadd.f32 %v2188, %v2320
    %v2385 = vadd.f32 %v2189, %v2321
    %v2386 = vadd.f32 %v2190, %v2322
    %v2387 = vadd.f32 %v2191, %v2323
    %v2388 = vadd.f32 %v2192, %v2324
    %v2389 = vadd.f32 %v2193, %v2325
    %v2390 = vadd.f32 %v2194, %v2326
    %v2391 = vadd.f32 %v2195, %v2327
    %v2392 = vadd.f32 %v2196, %v2328
    %v2393 = vadd.f32 %v2197, %v2329
    %v2394 = vadd.f32 %v2198, %v2330
    %v2395 = vadd.f32 %v2199, %v2331
    %v2396 = vadd.f32 %v2200, %v2332
    %v2397 = vadd.f32 %v2201, %v2333
    %v2398 = vadd.f32 %v2202, %v2334
    %v2399 = vadd.f32 %v2203, %v2335
    %v2400 = vadd.f32 %v2204, %v2336
    %v2401 = vadd.f32 %v2205, %v2337
    %v2402 = vadd.f32 %v2206, %v2338
    %v2403 = vadd.f32 %v2207, %v2339
    %v2404 = vadd.f32 %v2208, %v2340
    %v2405 = vadd.f32 %v2209, %v2341
    %v2406 = vadd.f32 %v2210, %v2342
    %v2407 = vadd.f32 %v2211, %v2343
    %v2408 = vadd.f32 %v2212, %v2344
    %v2409 = vadd.f32 %v2213, %v2345
    %v2410 = vadd.f32 %v2214, %v2346
    %v2411 = vadd.f32 %v2215, %v2347
    %v2412 = vld [vmem:[%s2019 + $0x2] sm:$0xff]
    %v2413 = vld [vmem:[%s2019 + $0xa] sm:$0xff]
    %v2414 = vld [vmem:[%s2019 + $0x1a] sm:$0xff]
    %v2415 = vld [vmem:[%s2019 + $0x22] sm:$0xff]
    %v2416 = vld [vmem:[%s2019 + $0x32] sm:$0xff]
    %v2417 = vld [vmem:[%s2019 + $0x3a] sm:$0xff]
    %v2418 = vld [vmem:[%s2019 + $0x4a] sm:$0xff]
    %v2419 = vld [vmem:[%s2019 + $0x52] sm:$0xff]
    %v2420 = vld [vmem:[%s2019 + $0x62] sm:$0xff]
    %v2421 = vld [vmem:[%s2019 + $0x6a] sm:$0xff]
    %v2422 = vld [vmem:[%s2019 + $0x7a] sm:$0xff]
    %v2423 = vld [vmem:[%s2019 + $0x82] sm:$0xff]
    %v2424 = vld [vmem:[%s2019 + $0x92] sm:$0xff]
    %v2425 = vld [vmem:[%s2019 + $0x9a] sm:$0xff]
    %v2426 = vld [vmem:[%s2019 + $0xaa] sm:$0xff]
    %v2427 = vld [vmem:[%s2019 + $0xb2] sm:$0xff]
    %v2428 = vld [vmem:[%s2019 + $0xc2] sm:$0xff]
    %v2429 = vld [vmem:[%s2019 + $0xca] sm:$0xff]
    %v2430 = vld [vmem:[%s2019 + $0xda] sm:$0xff]
    %v2431 = vld [vmem:[%s2019 + $0xe2] sm:$0xff]
    %v2432 = vld [vmem:[%s2019 + $0xf2] sm:$0xff]
    %v2433 = vld [vmem:[%s2019 + $0xfa] sm:$0xff]
    %v2434 = vld [vmem:[%s2019 + $0x10a] sm:$0xff]
    %v2435 = vld [vmem:[%s2019 + $0x112] sm:$0xff]
    %v2436 = vld [vmem:[%s2019 + $0x122] sm:$0xff]
    %v2437 = vld [vmem:[%s2019 + $0x12a] sm:$0xff]
    %v2438 = vld [vmem:[%s2019 + $0x13a] sm:$0xff]
    %v2439 = vld [vmem:[%s2019 + $0x142] sm:$0xff]
    %v2440 = vld [vmem:[%s2019 + $0x152] sm:$0xff]
    %v2441 = vld [vmem:[%s2019 + $0x15a] sm:$0xff]
    %v2442 = vld [vmem:[%s2019 + $0x16a] sm:$0xff]
    %v2443 = vld [vmem:[%s2019 + $0x172] sm:$0xff]
    %v2444 = vld [vmem:[%s2019 + $0x1b2] sm:$0xff]
    %v2445 = vld [vmem:[%s2019 + $0x1ba] sm:$0xff]
    %v2446 = vld [vmem:[%s2019 + $0x1ca] sm:$0xff]
    %v2447 = vld [vmem:[%s2019 + $0x1d2] sm:$0xff]
    %v2448 = vld [vmem:[%s2019 + $0x1e2] sm:$0xff]
    %v2449 = vld [vmem:[%s2019 + $0x1ea] sm:$0xff]
    %v2450 = vld [vmem:[%s2019 + $0x1fa] sm:$0xff]
    %v2451 = vld [vmem:[%s2019 + $0x202] sm:$0xff]
    %v2452 = vld [vmem:[%s2019 + $0x212] sm:$0xff]
    %v2453 = vld [vmem:[%s2019 + $0x21a] sm:$0xff]
    %v2454 = vld [vmem:[%s2019 + $0x22a] sm:$0xff]
    %v2455 = vld [vmem:[%s2019 + $0x232] sm:$0xff]
    %v2456 = vld [vmem:[%s2019 + $0x242] sm:$0xff]
    %v2457 = vld [vmem:[%s2019 + $0x24a] sm:$0xff]
    %v2458 = vld [vmem:[%s2019 + $0x25a] sm:$0xff]
    %v2459 = vld [vmem:[%s2019 + $0x262] sm:$0xff]
    %v2460 = vld [vmem:[%s2019 + $0x272] sm:$0xff]
    %v2461 = vld [vmem:[%s2019 + $0x27a] sm:$0xff]
    %v2462 = vld [vmem:[%s2019 + $0x28a] sm:$0xff]
    %v2463 = vld [vmem:[%s2019 + $0x292] sm:$0xff]
    %v2464 = vld [vmem:[%s2019 + $0x2a2] sm:$0xff]
    %v2465 = vld [vmem:[%s2019 + $0x2aa] sm:$0xff]
    %v2466 = vld [vmem:[%s2019 + $0x2ba] sm:$0xff]
    %v2467 = vld [vmem:[%s2019 + $0x2c2] sm:$0xff]
    %v2468 = vld [vmem:[%s2019 + $0x2d2] sm:$0xff]
    %v2469 = vld [vmem:[%s2019 + $0x2da] sm:$0xff]
    %v2470 = vld [vmem:[%s2019 + $0x2ea] sm:$0xff]
    %v2471 = vld [vmem:[%s2019 + $0x2f2] sm:$0xff]
    %v2472 = vld [vmem:[%s2019 + $0x302] sm:$0xff]
    %v2473 = vld [vmem:[%s2019 + $0x30a] sm:$0xff]
    %v2474 = vld [vmem:[%s2019 + $0x31a] sm:$0xff]
    %v2475 = vld [vmem:[%s2019 + $0x322] sm:$0xff]
    %v2476 = vlaneseq
    %v2477 = vshrl.u32 %v2476, 7
    %v2478 = vsub.s32 0, %v2477
    %v2479 = vrot.slane %v906, %v2478
    %v2480 = vmul.f32 %v2412, %v2479
    %v2481 = vmul.f32 %v2413, %v2479
    %v2482 = vmul.f32 %v2414, %v2479
    %v2483 = vmul.f32 %v2415, %v2479
    %v2484 = vmul.f32 %v2416, %v2479
    %v2485 = vmul.f32 %v2417, %v2479
    %v2486 = vmul.f32 %v2418, %v2479
    %v2487 = vmul.f32 %v2419, %v2479
    %v2488 = vmul.f32 %v2420, %v2479
    %v2489 = vmul.f32 %v2421, %v2479
    %v2490 = vmul.f32 %v2422, %v2479
    %v2491 = vmul.f32 %v2423, %v2479
    %v2492 = vmul.f32 %v2424, %v2479
    %v2493 = vmul.f32 %v2425, %v2479
    %v2494 = vmul.f32 %v2426, %v2479
    %v2495 = vmul.f32 %v2427, %v2479
    %v2496 = vmul.f32 %v2428, %v2479
    %v2497 = vmul.f32 %v2429, %v2479
    %v2498 = vmul.f32 %v2430, %v2479
    %v2499 = vmul.f32 %v2431, %v2479
    %v2500 = vmul.f32 %v2432, %v2479
    %v2501 = vmul.f32 %v2433, %v2479
    %v2502 = vmul.f32 %v2434, %v2479
    %v2503 = vmul.f32 %v2435, %v2479
    %v2504 = vmul.f32 %v2436, %v2479
    %v2505 = vmul.f32 %v2437, %v2479
    %v2506 = vmul.f32 %v2438, %v2479
    %v2507 = vmul.f32 %v2439, %v2479
    %v2508 = vmul.f32 %v2440, %v2479
    %v2509 = vmul.f32 %v2441, %v2479
    %v2510 = vmul.f32 %v2442, %v2479
    %v2511 = vmul.f32 %v2443, %v2479
    %v2512 = vmul.f32 %v2444, %v2479
    %v2513 = vmul.f32 %v2445, %v2479
    %v2514 = vmul.f32 %v2446, %v2479
    %v2515 = vmul.f32 %v2447, %v2479
    %v2516 = vmul.f32 %v2448, %v2479
    %v2517 = vmul.f32 %v2449, %v2479
    %v2518 = vmul.f32 %v2450, %v2479
    %v2519 = vmul.f32 %v2451, %v2479
    %v2520 = vmul.f32 %v2452, %v2479
    %v2521 = vmul.f32 %v2453, %v2479
    %v2522 = vmul.f32 %v2454, %v2479
    %v2523 = vmul.f32 %v2455, %v2479
    %v2524 = vmul.f32 %v2456, %v2479
    %v2525 = vmul.f32 %v2457, %v2479
    %v2526 = vmul.f32 %v2458, %v2479
    %v2527 = vmul.f32 %v2459, %v2479
    %v2528 = vmul.f32 %v2460, %v2479
    %v2529 = vmul.f32 %v2461, %v2479
    %v2530 = vmul.f32 %v2462, %v2479
    %v2531 = vmul.f32 %v2463, %v2479
    %v2532 = vmul.f32 %v2464, %v2479
    %v2533 = vmul.f32 %v2465, %v2479
    %v2534 = vmul.f32 %v2466, %v2479
    %v2535 = vmul.f32 %v2467, %v2479
    %v2536 = vmul.f32 %v2468, %v2479
    %v2537 = vmul.f32 %v2469, %v2479
    %v2538 = vmul.f32 %v2470, %v2479
    %v2539 = vmul.f32 %v2471, %v2479
    %v2540 = vmul.f32 %v2472, %v2479
    %v2541 = vmul.f32 %v2473, %v2479
    %v2542 = vmul.f32 %v2474, %v2479
    %v2543 = vmul.f32 %v2475, %v2479
    %v2544 = vadd.f32 %v2348, %v2480
    %v2545 = vadd.f32 %v2349, %v2481
    %v2546 = vadd.f32 %v2350, %v2482
    %v2547 = vadd.f32 %v2351, %v2483
    %v2548 = vadd.f32 %v2352, %v2484
    %v2549 = vadd.f32 %v2353, %v2485
    %v2550 = vadd.f32 %v2354, %v2486
    %v2551 = vadd.f32 %v2355, %v2487
    %v2552 = vadd.f32 %v2356, %v2488
    %v2553 = vadd.f32 %v2357, %v2489
    %v2554 = vadd.f32 %v2358, %v2490
    %v2555 = vadd.f32 %v2359, %v2491
    %v2556 = vadd.f32 %v2360, %v2492
    %v2557 = vadd.f32 %v2361, %v2493
    %v2558 = vadd.f32 %v2362, %v2494
    %v2559 = vadd.f32 %v2363, %v2495
    %v2560 = vadd.f32 %v2364, %v2496
    %v2561 = vadd.f32 %v2365, %v2497
    %v2562 = vadd.f32 %v2366, %v2498
    %v2563 = vadd.f32 %v2367, %v2499
    %v2564 = vadd.f32 %v2368, %v2500
    %v2565 = vadd.f32 %v2369, %v2501
    %v2566 = vadd.f32 %v2370, %v2502
    %v2567 = vadd.f32 %v2371, %v2503
    %v2568 = vadd.f32 %v2372, %v2504
    %v2569 = vadd.f32 %v2373, %v2505
    %v2570 = vadd.f32 %v2374, %v2506
    %v2571 = vadd.f32 %v2375, %v2507
    %v2572 = vadd.f32 %v2376, %v2508
    %v2573 = vadd.f32 %v2377, %v2509
    %v2574 = vadd.f32 %v2378, %v2510
    %v2575 = vadd.f32 %v2379, %v2511
    %v2576 = vadd.f32 %v2380, %v2512
    %v2577 = vadd.f32 %v2381, %v2513
    %v2578 = vadd.f32 %v2382, %v2514
    %v2579 = vadd.f32 %v2383, %v2515
    %v2580 = vadd.f32 %v2384, %v2516
    %v2581 = vadd.f32 %v2385, %v2517
    %v2582 = vadd.f32 %v2386, %v2518
    %v2583 = vadd.f32 %v2387, %v2519
    %v2584 = vadd.f32 %v2388, %v2520
    %v2585 = vadd.f32 %v2389, %v2521
    %v2586 = vadd.f32 %v2390, %v2522
    %v2587 = vadd.f32 %v2391, %v2523
    %v2588 = vadd.f32 %v2392, %v2524
    %v2589 = vadd.f32 %v2393, %v2525
    %v2590 = vadd.f32 %v2394, %v2526
    %v2591 = vadd.f32 %v2395, %v2527
    %v2592 = vadd.f32 %v2396, %v2528
    %v2593 = vadd.f32 %v2397, %v2529
    %v2594 = vadd.f32 %v2398, %v2530
    %v2595 = vadd.f32 %v2399, %v2531
    %v2596 = vadd.f32 %v2400, %v2532
    %v2597 = vadd.f32 %v2401, %v2533
    %v2598 = vadd.f32 %v2402, %v2534
    %v2599 = vadd.f32 %v2403, %v2535
    %v2600 = vadd.f32 %v2404, %v2536
    %v2601 = vadd.f32 %v2405, %v2537
    %v2602 = vadd.f32 %v2406, %v2538
    %v2603 = vadd.f32 %v2407, %v2539
    %v2604 = vadd.f32 %v2408, %v2540
    %v2605 = vadd.f32 %v2409, %v2541
    %v2606 = vadd.f32 %v2410, %v2542
    %v2607 = vadd.f32 %v2411, %v2543
    %v2608 = vld [vmem:[%s4] sm:$0x1]
    %v2610 = vlaneseq
    %v2611 = vshrl.u32 %v2610, 7
    %v2612 = vsub.s32 0, %v2611
    %v2613 = vrot.slane %v2608, %v2612
    %v2615 = vadd.f32 %v2544, %v2613
    %v2616 = vadd.f32 %v2545, %v2613
    %v2617 = vadd.f32 %v2546, %v2613
    %v2618 = vadd.f32 %v2547, %v2613
    %v2619 = vadd.f32 %v2548, %v2613
    %v2620 = vadd.f32 %v2549, %v2613
    %v2621 = vadd.f32 %v2550, %v2613
    %v2622 = vadd.f32 %v2551, %v2613
    %v2623 = vadd.f32 %v2552, %v2613
    %v2624 = vadd.f32 %v2553, %v2613
    %v2625 = vadd.f32 %v2554, %v2613
    %v2626 = vadd.f32 %v2555, %v2613
    %v2627 = vadd.f32 %v2556, %v2613
    %v2628 = vadd.f32 %v2557, %v2613
    %v2629 = vadd.f32 %v2558, %v2613
    %v2630 = vadd.f32 %v2559, %v2613
    %v2631 = vadd.f32 %v2560, %v2613
    %v2632 = vadd.f32 %v2561, %v2613
    %v2633 = vadd.f32 %v2562, %v2613
    %v2634 = vadd.f32 %v2563, %v2613
    %v2635 = vadd.f32 %v2564, %v2613
    %v2636 = vadd.f32 %v2565, %v2613
    %v2637 = vadd.f32 %v2566, %v2613
    %v2638 = vadd.f32 %v2567, %v2613
    %v2639 = vadd.f32 %v2568, %v2613
    %v2640 = vadd.f32 %v2569, %v2613
    %v2641 = vadd.f32 %v2570, %v2613
    %v2642 = vadd.f32 %v2571, %v2613
    %v2643 = vadd.f32 %v2572, %v2613
    %v2644 = vadd.f32 %v2573, %v2613
    %v2645 = vadd.f32 %v2574, %v2613
    %v2646 = vadd.f32 %v2575, %v2613
    %v2647 = vadd.f32 %v2576, %v2613
    %v2648 = vadd.f32 %v2577, %v2613
    %v2649 = vadd.f32 %v2578, %v2613
    %v2650 = vadd.f32 %v2579, %v2613
    %v2651 = vadd.f32 %v2580, %v2613
    %v2652 = vadd.f32 %v2581, %v2613
    %v2653 = vadd.f32 %v2582, %v2613
    %v2654 = vadd.f32 %v2583, %v2613
    %v2655 = vadd.f32 %v2584, %v2613
    %v2656 = vadd.f32 %v2585, %v2613
    %v2657 = vadd.f32 %v2586, %v2613
    %v2658 = vadd.f32 %v2587, %v2613
    %v2659 = vadd.f32 %v2588, %v2613
    %v2660 = vadd.f32 %v2589, %v2613
    %v2661 = vadd.f32 %v2590, %v2613
    %v2662 = vadd.f32 %v2591, %v2613
    %v2663 = vadd.f32 %v2592, %v2613
    %v2664 = vadd.f32 %v2593, %v2613
    %v2665 = vadd.f32 %v2594, %v2613
    %v2666 = vadd.f32 %v2595, %v2613
    %v2667 = vadd.f32 %v2596, %v2613
    %v2668 = vadd.f32 %v2597, %v2613
    %v2669 = vadd.f32 %v2598, %v2613
    %v2670 = vadd.f32 %v2599, %v2613
    %v2671 = vadd.f32 %v2600, %v2613
    %v2672 = vadd.f32 %v2601, %v2613
    %v2673 = vadd.f32 %v2602, %v2613
    %v2674 = vadd.f32 %v2603, %v2613
    %v2675 = vadd.f32 %v2604, %v2613
    %v2676 = vadd.f32 %v2605, %v2613
    %v2677 = vadd.f32 %v2606, %v2613
    %v2678 = vadd.f32 %v2607, %v2613
    %v2679 = vmax.f32 %v2615, 0.0
    %v2680 = vmax.f32 %v2616, 0.0
    %v2681 = vmax.f32 %v2617, 0.0
    %v2682 = vmax.f32 %v2618, 0.0
    %v2683 = vmax.f32 %v2619, 0.0
    %v2684 = vmax.f32 %v2620, 0.0
    %v2685 = vmax.f32 %v2621, 0.0
    %v2686 = vmax.f32 %v2622, 0.0
    %v2687 = vmax.f32 %v2623, 0.0
    %v2688 = vmax.f32 %v2624, 0.0
    %v2689 = vmax.f32 %v2625, 0.0
    %v2690 = vmax.f32 %v2626, 0.0
    %v2691 = vmax.f32 %v2627, 0.0
    %v2692 = vmax.f32 %v2628, 0.0
    %v2693 = vmax.f32 %v2629, 0.0
    %v2694 = vmax.f32 %v2630, 0.0
    %v2695 = vmax.f32 %v2631, 0.0
    %v2696 = vmax.f32 %v2632, 0.0
    %v2697 = vmax.f32 %v2633, 0.0
    %v2698 = vmax.f32 %v2634, 0.0
    %v2699 = vmax.f32 %v2635, 0.0
    %v2700 = vmax.f32 %v2636, 0.0
    %v2701 = vmax.f32 %v2637, 0.0
    %v2702 = vmax.f32 %v2638, 0.0
    %v2703 = vmax.f32 %v2639, 0.0
    %v2704 = vmax.f32 %v2640, 0.0
    %v2705 = vmax.f32 %v2641, 0.0
    %v2706 = vmax.f32 %v2642, 0.0
    %v2707 = vmax.f32 %v2643, 0.0
    %v2708 = vmax.f32 %v2644, 0.0
    %v2709 = vmax.f32 %v2645, 0.0
    %v2710 = vmax.f32 %v2646, 0.0
    %v2711 = vmax.f32 %v2647, 0.0
    %v2712 = vmax.f32 %v2648, 0.0
    %v2713 = vmax.f32 %v2649, 0.0
    %v2714 = vmax.f32 %v2650, 0.0
    %v2715 = vmax.f32 %v2651, 0.0
    %v2716 = vmax.f32 %v2652, 0.0
    %v2717 = vmax.f32 %v2653, 0.0
    %v2718 = vmax.f32 %v2654, 0.0
    %v2719 = vmax.f32 %v2655, 0.0
    %v2720 = vmax.f32 %v2656, 0.0
    %v2721 = vmax.f32 %v2657, 0.0
    %v2722 = vmax.f32 %v2658, 0.0
    %v2723 = vmax.f32 %v2659, 0.0
    %v2724 = vmax.f32 %v2660, 0.0
    %v2725 = vmax.f32 %v2661, 0.0
    %v2726 = vmax.f32 %v2662, 0.0
    %v2727 = vmax.f32 %v2663, 0.0
    %v2728 = vmax.f32 %v2664, 0.0
    %v2729 = vmax.f32 %v2665, 0.0
    %v2730 = vmax.f32 %v2666, 0.0
    %v2731 = vmax.f32 %v2667, 0.0
    %v2732 = vmax.f32 %v2668, 0.0
    %v2733 = vmax.f32 %v2669, 0.0
    %v2734 = vmax.f32 %v2670, 0.0
    %v2735 = vmax.f32 %v2671, 0.0
    %v2736 = vmax.f32 %v2672, 0.0
    %v2737 = vmax.f32 %v2673, 0.0
    %v2738 = vmax.f32 %v2674, 0.0
    %v2739 = vmax.f32 %v2675, 0.0
    %v2740 = vmax.f32 %v2676, 0.0
    %v2741 = vmax.f32 %v2677, 0.0
    %v2742 = vmax.f32 %v2678, 0.0
    %v2743 = vpack.c.bf16 %v2680, %v2679
    %v2744 = vpack.c.bf16 %v2682, %v2681
    %v2745 = vpack.c.bf16 %v2684, %v2683
    %v2746 = vpack.c.bf16 %v2686, %v2685
    %v2747 = vpack.c.bf16 %v2688, %v2687
    %v2748 = vpack.c.bf16 %v2690, %v2689
    %v2749 = vpack.c.bf16 %v2692, %v2691
    %v2750 = vpack.c.bf16 %v2694, %v2693
    %v2751 = vpack.c.bf16 %v2696, %v2695
    %v2752 = vpack.c.bf16 %v2698, %v2697
    %v2753 = vpack.c.bf16 %v2700, %v2699
    %v2754 = vpack.c.bf16 %v2702, %v2701
    %v2755 = vpack.c.bf16 %v2704, %v2703
    %v2756 = vpack.c.bf16 %v2706, %v2705
    %v2757 = vpack.c.bf16 %v2708, %v2707
    %v2758 = vpack.c.bf16 %v2710, %v2709
    %v2759 = vpack.c.bf16 %v2712, %v2711
    %v2760 = vpack.c.bf16 %v2714, %v2713
    %v2761 = vpack.c.bf16 %v2716, %v2715
    %v2762 = vpack.c.bf16 %v2718, %v2717
    %v2763 = vpack.c.bf16 %v2720, %v2719
    %v2764 = vpack.c.bf16 %v2722, %v2721
    %v2765 = vpack.c.bf16 %v2724, %v2723
    %v2766 = vpack.c.bf16 %v2726, %v2725
    %v2767 = vpack.c.bf16 %v2728, %v2727
    %v2768 = vpack.c.bf16 %v2730, %v2729
    %v2769 = vpack.c.bf16 %v2732, %v2731
    %v2770 = vpack.c.bf16 %v2734, %v2733
    %v2771 = vpack.c.bf16 %v2736, %v2735
    %v2772 = vpack.c.bf16 %v2738, %v2737
    %v2773 = vpack.c.bf16 %v2740, %v2739
    %v2774 = vpack.c.bf16 %v2742, %v2741
    %v2775 = vld [vmem:[#allocation9] sm:$0xf]
    %v2776 = vld [vmem:[#allocation9 + $0x4] sm:$0xf]
    %v2777 = vld [vmem:[#allocation9 + $0x8] sm:$0xf]
    %v2778 = vld [vmem:[#allocation9 + $0xc] sm:$0xf]
    %v2779 = vld [vmem:[#allocation9 + $0x10] sm:$0xf]
    %v2780 = vld [vmem:[#allocation9 + $0x14] sm:$0xf]
    %v2781 = vld [vmem:[#allocation9 + $0x18] sm:$0xf]
    %v2782 = vld [vmem:[#allocation9 + $0x1c] sm:$0xf]
    %v2783 = vld [vmem:[#allocation9 + $0x20] sm:$0xf]
    %v2784 = vld [vmem:[#allocation9 + $0x24] sm:$0xf]
    %v2785 = vld [vmem:[#allocation9 + $0x28] sm:$0xf]
    %v2786 = vld [vmem:[#allocation9 + $0x2c] sm:$0xf]
    %v2787 = vld [vmem:[#allocation9 + $0x30] sm:$0xf]
    %v2788 = vld [vmem:[#allocation9 + $0x34] sm:$0xf]
    %v2789 = vld [vmem:[#allocation9 + $0x38] sm:$0xf]
    %v2790 = vld [vmem:[#allocation9 + $0x3c] sm:$0xf]
    %v2791 = vld [vmem:[%s6] sm:$0x1]
    %v2793 = vlaneseq
    %v2794 = vshrl.u32 %v2793, 7
    %v2795 = vsub.s32 0, %v2794
    %v2796 = vrot.slane %v2791, %v2795
    %v2814 = vunpack.c.l.b16 %v2775
    %v2815 = vunpack.c.l.b16 %v2776
    %v2816 = vunpack.c.l.b16 %v2777
    %v2817 = vunpack.c.l.b16 %v2778
    %v2818 = vunpack.c.l.b16 %v2779
    %v2819 = vunpack.c.l.b16 %v2780
    %v2820 = vunpack.c.l.b16 %v2781
    %v2821 = vunpack.c.l.b16 %v2782
    %v2822 = vunpack.c.l.b16 %v2783
    %v2823 = vunpack.c.l.b16 %v2784
    %v2824 = vunpack.c.l.b16 %v2785
    %v2825 = vunpack.c.l.b16 %v2786
    %v2826 = vunpack.c.l.b16 %v2787
    %v2827 = vunpack.c.l.b16 %v2788
    %v2828 = vunpack.c.l.b16 %v2789
    %v2829 = vunpack.c.l.b16 %v2790
    %v2830 = vpack.c.b16 %v2815, %v2814
    %v2831 = vpack.c.b16 %v2817, %v2816
    %v2832 = vpack.c.b16 %v2819, %v2818
    %v2833 = vpack.c.b16 %v2821, %v2820
    %v2834 = vpack.c.b16 %v2823, %v2822
    %v2835 = vpack.c.b16 %v2825, %v2824
    %v2836 = vpack.c.b16 %v2827, %v2826
    %v2837 = vpack.c.b16 %v2829, %v2828
    %2846 = vmatprep.subr.bf16.mxu0 0
    %2847 = vmatpush1.bf16.msra.mxu0 %v2830
    %2848 = vmatprep.subr.bf16.mxu0 0
    %2849 = vmatpush1.bf16.msra.mxu0 %v2831
    %2850 = vmatprep.subr.bf16.mxu0 0
    %2851 = vmatpush1.bf16.msra.mxu0 %v2832
    %2852 = vmatprep.subr.bf16.mxu0 0
    %2853 = vmatpush1.bf16.msra.mxu0 %v2833
    %2854 = vmatprep.subr.bf16.mxu0 0
    %2855 = vmatpush1.bf16.msra.mxu0 %v2834
    %2856 = vmatprep.subr.bf16.mxu0 0
    %2857 = vmatpush1.bf16.msra.mxu0 %v2835
    %2858 = vmatprep.subr.bf16.mxu0 0
    %2859 = vmatpush1.bf16.msra.mxu0 %v2836
    %2860 = vmatprep.subr.bf16.mxu0 0
    %2861 = vmatpush1.bf16.msra.mxu0 %v2837
    %2862 = vmatprep.subr.bf16.mxu0 0
    %2863 = vmatpush1.bf16.msra.mxu0 0
    %2864 = vmatprep.subr.bf16.mxu0 0
    %2865 = vmatpush1.bf16.msra.mxu0 0
    %2866 = vmatprep.subr.bf16.mxu0 0
    %2867 = vmatpush1.bf16.msra.mxu0 0
    %2868 = vmatprep.subr.bf16.mxu0 0
    %2869 = vmatpush1.bf16.msra.mxu0 0
    %2870 = vmatprep.subr.bf16.mxu0 0
    %2871 = vmatpush1.bf16.msra.mxu0 0
    %2872 = vmatprep.subr.bf16.mxu0 0
    %2873 = vmatpush1.bf16.msra.mxu0 0
    %2874 = vmatprep.subr.bf16.mxu0 0
    %2875 = vmatpush1.bf16.msra.mxu0 0
    %2876 = vmatprep.subr.bf16.mxu0 0
    %2877 = vmatpush1.bf16.msra.mxu0 0
    %2878 = vmatprep.mubr.bf16.mxu0 0
    %2879 = vmatmul.mubr.bf16.gmra.mrb[0].mxu0 %v2743
    %v2880 = vpop.f32.mrb[0].mxu0
    %v2881 = vadd.f32 %v2796, %v2880
    %v2882 = vpop.f32.mrb[0].mxu0
    %v2883 = vpop.f32.mrb[0].mxu0
    %v2884 = vadd.f32 %v2796, %v2883
    %v2885 = vpop.f32.mrb[0].mxu0
    %2886 = vmatprep.mubr.bf16.mxu0 0
    %2887 = vmatmul.mubr.bf16.gmra.mrb[0].mxu0 %v2744
    %v2888 = vpop.f32.mrb[0].mxu0
    %v2889 = vadd.f32 %v2796, %v2888
    %v2890 = vpop.f32.mrb[0].mxu0
    %v2891 = vpop.f32.mrb[0].mxu0
    %v2892 = vadd.f32 %v2796, %v2891
    %v2893 = vpop.f32.mrb[0].mxu0
    %2894 = vmatprep.mubr.bf16.mxu0 0
    %2895 = vmatmul.mubr.bf16.gmra.mrb[0].mxu0 %v2745
    %v2896 = vpop.f32.mrb[0].mxu0
    %v2897 = vadd.f32 %v2796, %v2896
    %v2898 = vpop.f32.mrb[0].mxu0
    %v2899 = vpop.f32.mrb[0].mxu0
    %v2900 = vadd.f32 %v2796, %v2899
    %v2901 = vpop.f32.mrb[0].mxu0
    %2902 = vmatprep.mubr.bf16.mxu0 0
    %2903 = vmatmul.mubr.bf16.gmra.mrb[0].mxu0 %v2746
    %v2904 = vpop.f32.mrb[0].mxu0
    %v2905 = vadd.f32 %v2796, %v2904
    %v2906 = vpop.f32.mrb[0].mxu0
    %v2907 = vpop.f32.mrb[0].mxu0
    %v2908 = vadd.f32 %v2796, %v2907
    %v2909 = vpop.f32.mrb[0].mxu0
    %2910 = vmatprep.mubr.bf16.mxu0 0
    %2911 = vmatmul.mubr.bf16.gmra.mrb[0].mxu0 %v2747
    %v2912 = vpop.f32.mrb[0].mxu0
    %v2913 = vadd.f32 %v2796, %v2912
    %v2914 = vpop.f32.mrb[0].mxu0
    %v2915 = vpop.f32.mrb[0].mxu0
    %v2916 = vadd.f32 %v2796, %v2915
    %v2917 = vpop.f32.mrb[0].mxu0
    %2918 = vmatprep.mubr.bf16.mxu0 0
    %2919 = vmatmul.mubr.bf16.gmra.mrb[0].mxu0 %v2748
    %v2920 = vpop.f32.mrb[0].mxu0
    %v2921 = vadd.f32 %v2796, %v2920
    %v2922 = vpop.f32.mrb[0].mxu0
    %v2923 = vpop.f32.mrb[0].mxu0
    %v2924 = vadd.f32 %v2796, %v2923
    %v2925 = vpop.f32.mrb[0].mxu0
    %2926 = vmatprep.mubr.bf16.mxu0 0
    %2927 = vmatmul.mubr.bf16.gmra.mrb[0].mxu0 %v2749
    %v2928 = vpop.f32.mrb[0].mxu0
    %v2929 = vadd.f32 %v2796, %v2928
    %v2930 = vpop.f32.mrb[0].mxu0
    %v2931 = vpop.f32.mrb[0].mxu0
    %v2932 = vadd.f32 %v2796, %v2931
    %v2933 = vpop.f32.mrb[0].mxu0
    %2934 = vmatprep.mubr.bf16.mxu0 0
    %2935 = vmatmul.mubr.bf16.gmra.mrb[0].mxu0 %v2750
    %v2936 = vpop.f32.mrb[0].mxu0
    %v2937 = vadd.f32 %v2796, %v2936
    %v2938 = vpop.f32.mrb[0].mxu0
    %v2939 = vpop.f32.mrb[0].mxu0
    %v2940 = vadd.f32 %v2796, %v2939
    %v2941 = vpop.f32.mrb[0].mxu0
    %2942 = vmatprep.mubr.bf16.mxu0 0
    %2943 = vmatmul.mubr.bf16.gmra.mrb[0].mxu0 %v2751
    %v2944 = vpop.f32.mrb[0].mxu0
    %v2945 = vadd.f32 %v2796, %v2944
    %v2946 = vpop.f32.mrb[0].mxu0
    %v2947 = vpop.f32.mrb[0].mxu0
    %v2948 = vadd.f32 %v2796, %v2947
    %v2949 = vpop.f32.mrb[0].mxu0
    %2950 = vmatprep.mubr.bf16.mxu0 0
    %2951 = vmatmul.mubr.bf16.gmra.mrb[0].mxu0 %v2752
    %v2952 = vpop.f32.mrb[0].mxu0
    %v2953 = vadd.f32 %v2796, %v2952
    %v2954 = vpop.f32.mrb[0].mxu0
    %v2955 = vpop.f32.mrb[0].mxu0
    %v2956 = vadd.f32 %v2796, %v2955
    %v2957 = vpop.f32.mrb[0].mxu0
    %2958 = vmatprep.mubr.bf16.mxu0 0
    %2959 = vmatmul.mubr.bf16.gmra.mrb[0].mxu0 %v2753
    %v2960 = vpop.f32.mrb[0].mxu0
    %v2961 = vadd.f32 %v2796, %v2960
    %v2962 = vpop.f32.mrb[0].mxu0
    %v2963 = vpop.f32.mrb[0].mxu0
    %v2964 = vadd.f32 %v2796, %v2963
    %v2965 = vpop.f32.mrb[0].mxu0
    %2966 = vmatprep.mubr.bf16.mxu0 0
    %2967 = vmatmul.mubr.bf16.gmra.mrb[0].mxu0 %v2754
    %v2968 = vpop.f32.mrb[0].mxu0
    %v2969 = vadd.f32 %v2796, %v2968
    %v2970 = vpop.f32.mrb[0].mxu0
    %v2971 = vpop.f32.mrb[0].mxu0
    %v2972 = vadd.f32 %v2796, %v2971
    %v2973 = vpop.f32.mrb[0].mxu0
    %2974 = vmatprep.mubr.bf16.mxu0 0
    %2975 = vmatmul.mubr.bf16.gmra.mrb[0].mxu0 %v2755
    %v2976 = vpop.f32.mrb[0].mxu0
    %v2977 = vadd.f32 %v2796, %v2976
    %v2978 = vpop.f32.mrb[0].mxu0
    %v2979 = vpop.f32.mrb[0].mxu0
    %v2980 = vadd.f32 %v2796, %v2979
    %v2981 = vpop.f32.mrb[0].mxu0
    %2982 = vmatprep.mubr.bf16.mxu0 0
    %2983 = vmatmul.mubr.bf16.gmra.mrb[0].mxu0 %v2756
    %v2984 = vpop.f32.mrb[0].mxu0
    %v2985 = vadd.f32 %v2796, %v2984
    %v2986 = vpop.f32.mrb[0].mxu0
    %v2987 = vpop.f32.mrb[0].mxu0
    %v2988 = vadd.f32 %v2796, %v2987
    %v2989 = vpop.f32.mrb[0].mxu0
    %2990 = vmatprep.mubr.bf16.mxu0 0
    %2991 = vmatmul.mubr.bf16.gmra.mrb[0].mxu0 %v2757
    %v2992 = vpop.f32.mrb[0].mxu0
    %v2993 = vadd.f32 %v2796, %v2992
    %v2994 = vpop.f32.mrb[0].mxu0
    %v2995 = vpop.f32.mrb[0].mxu0
    %v2996 = vadd.f32 %v2796, %v2995
    %v2997 = vpop.f32.mrb[0].mxu0
    %2998 = vmatprep.mubr.bf16.mxu0 0
    %2999 = vmatmul.mubr.bf16.gmra.mrb[0].mxu0 %v2758
    %v3000 = vpop.f32.mrb[0].mxu0
    %v3001 = vadd.f32 %v2796, %v3000
    %v3002 = vpop.f32.mrb[0].mxu0
    %v3003 = vpop.f32.mrb[0].mxu0
    %v3004 = vadd.f32 %v2796, %v3003
    %v3005 = vpop.f32.mrb[0].mxu0
    %3006 = vmatprep.mubr.bf16.mxu0 0
    %3007 = vmatmul.mubr.bf16.gmra.mrb[0].mxu0 %v2759
    %v3008 = vpop.f32.mrb[0].mxu0
    %v3009 = vadd.f32 %v2796, %v3008
    %v3010 = vpop.f32.mrb[0].mxu0
    %v3011 = vpop.f32.mrb[0].mxu0
    %v3012 = vadd.f32 %v2796, %v3011
    %v3013 = vpop.f32.mrb[0].mxu0
    %3014 = vmatprep.mubr.bf16.mxu0 0
    %3015 = vmatmul.mubr.bf16.gmra.mrb[0].mxu0 %v2760
    %v3016 = vpop.f32.mrb[0].mxu0
    %v3017 = vadd.f32 %v2796, %v3016
    %v3018 = vpop.f32.mrb[0].mxu0
    %v3019 = vpop.f32.mrb[0].mxu0
    %v3020 = vadd.f32 %v2796, %v3019
    %v3021 = vpop.f32.mrb[0].mxu0
    %3022 = vmatprep.mubr.bf16.mxu0 0
    %3023 = vmatmul.mubr.bf16.gmra.mrb[0].mxu0 %v2761
    %v3024 = vpop.f32.mrb[0].mxu0
    %v3025 = vadd.f32 %v2796, %v3024
    %v3026 = vpop.f32.mrb[0].mxu0
    %v3027 = vpop.f32.mrb[0].mxu0
    %v3028 = vadd.f32 %v2796, %v3027
    %v3029 = vpop.f32.mrb[0].mxu0
    %3030 = vmatprep.mubr.bf16.mxu0 0
    %3031 = vmatmul.mubr.bf16.gmra.mrb[0].mxu0 %v2762
    %v3032 = vpop.f32.mrb[0].mxu0
    %v3033 = vadd.f32 %v2796, %v3032
    %v3034 = vpop.f32.mrb[0].mxu0
    %v3035 = vpop.f32.mrb[0].mxu0
    %v3036 = vadd.f32 %v2796, %v3035
    %v3037 = vpop.f32.mrb[0].mxu0
    %3038 = vmatprep.mubr.bf16.mxu0 0
    %3039 = vmatmul.mubr.bf16.gmra.mrb[0].mxu0 %v2763
    %v3040 = vpop.f32.mrb[0].mxu0
    %v3041 = vadd.f32 %v2796, %v3040
    %v3042 = vpop.f32.mrb[0].mxu0
    %v3043 = vpop.f32.mrb[0].mxu0
    %v3044 = vadd.f32 %v2796, %v3043
    %v3045 = vpop.f32.mrb[0].mxu0
    %3046 = vmatprep.mubr.bf16.mxu0 0
    %3047 = vmatmul.mubr.bf16.gmra.mrb[0].mxu0 %v2764
    %v3048 = vpop.f32.mrb[0].mxu0
    %v3049 = vadd.f32 %v2796, %v3048
    %v3050 = vpop.f32.mrb[0].mxu0
    %v3051 = vpop.f32.mrb[0].mxu0
    %v3052 = vadd.f32 %v2796, %v3051
    %v3053 = vpop.f32.mrb[0].mxu0
    %3054 = vmatprep.mubr.bf16.mxu0 0
    %3055 = vmatmul.mubr.bf16.gmra.mrb[0].mxu0 %v2765
    %v3056 = vpop.f32.mrb[0].mxu0
    %v3057 = vadd.f32 %v2796, %v3056
    %v3058 = vpop.f32.mrb[0].mxu0
    %v3059 = vpop.f32.mrb[0].mxu0
    %v3060 = vadd.f32 %v2796, %v3059
    %v3061 = vpop.f32.mrb[0].mxu0
    %3062 = vmatprep.mubr.bf16.mxu0 0
    %3063 = vmatmul.mubr.bf16.gmra.mrb[0].mxu0 %v2766
    %v3064 = vpop.f32.mrb[0].mxu0
    %v3065 = vadd.f32 %v2796, %v3064
    %v3066 = vpop.f32.mrb[0].mxu0
    %v3067 = vpop.f32.mrb[0].mxu0
    %v3068 = vadd.f32 %v2796, %v3067
    %v3069 = vpop.f32.mrb[0].mxu0
    %3070 = vmatprep.mubr.bf16.mxu0 0
    %3071 = vmatmul.mubr.bf16.gmra.mrb[0].mxu0 %v2767
    %v3072 = vpop.f32.mrb[0].mxu0
    %v3073 = vadd.f32 %v2796, %v3072
    %v3074 = vpop.f32.mrb[0].mxu0
    %v3075 = vpop.f32.mrb[0].mxu0
    %v3076 = vadd.f32 %v2796, %v3075
    %v3077 = vpop.f32.mrb[0].mxu0
    %3078 = vmatprep.mubr.bf16.mxu0 0
    %3079 = vmatmul.mubr.bf16.gmra.mrb[0].mxu0 %v2768
    %v3080 = vpop.f32.mrb[0].mxu0
    %v3081 = vadd.f32 %v2796, %v3080
    %v3082 = vpop.f32.mrb[0].mxu0
    %v3083 = vpop.f32.mrb[0].mxu0
    %v3084 = vadd.f32 %v2796, %v3083
    %v3085 = vpop.f32.mrb[0].mxu0
    %3086 = vmatprep.mubr.bf16.mxu0 0
    %3087 = vmatmul.mubr.bf16.gmra.mrb[0].mxu0 %v2769
    %v3088 = vpop.f32.mrb[0].mxu0
    %v3089 = vadd.f32 %v2796, %v3088
    %v3090 = vpop.f32.mrb[0].mxu0
    %v3091 = vpop.f32.mrb[0].mxu0
    %v3092 = vadd.f32 %v2796, %v3091
    %v3093 = vpop.f32.mrb[0].mxu0
    %3094 = vmatprep.mubr.bf16.mxu0 0
    %3095 = vmatmul.mubr.bf16.gmra.mrb[0].mxu0 %v2770
    %v3096 = vpop.f32.mrb[0].mxu0
    %v3097 = vadd.f32 %v2796, %v3096
    %v3098 = vpop.f32.mrb[0].mxu0
    %v3099 = vpop.f32.mrb[0].mxu0
    %v3100 = vadd.f32 %v2796, %v3099
    %v3101 = vpop.f32.mrb[0].mxu0
    %3102 = vmatprep.mubr.bf16.mxu0 0
    %3103 = vmatmul.mubr.bf16.gmra.mrb[0].mxu0 %v2771
    %v3104 = vpop.f32.mrb[0].mxu0
    %v3105 = vadd.f32 %v2796, %v3104
    %v3106 = vpop.f32.mrb[0].mxu0
    %v3107 = vpop.f32.mrb[0].mxu0
    %v3108 = vadd.f32 %v2796, %v3107
    %v3109 = vpop.f32.mrb[0].mxu0
    %3110 = vmatprep.mubr.bf16.mxu0 0
    %3111 = vmatmul.mubr.bf16.gmra.mrb[0].mxu0 %v2772
    %v3112 = vpop.f32.mrb[0].mxu0
    %v3113 = vadd.f32 %v2796, %v3112
    %v3114 = vpop.f32.mrb[0].mxu0
    %v3115 = vpop.f32.mrb[0].mxu0
    %v3116 = vadd.f32 %v2796, %v3115
    %v3117 = vpop.f32.mrb[0].mxu0
    %3118 = vmatprep.mubr.bf16.mxu0 0
    %3119 = vmatmul.mubr.bf16.gmra.mrb[0].mxu0 %v2773
    %v3120 = vpop.f32.mrb[0].mxu0
    %v3121 = vadd.f32 %v2796, %v3120
    %v3122 = vpop.f32.mrb[0].mxu0
    %v3123 = vpop.f32.mrb[0].mxu0
    %v3124 = vadd.f32 %v2796, %v3123
    %v3125 = vpop.f32.mrb[0].mxu0
    %3126 = vmatprep.mubr.bf16.mxu0 0
    %3127 = vmatmul.mubr.bf16.gmra.mrb[0].mxu0 %v2774
    %v3128 = vpop.f32.mrb[0].mxu0
    %v3129 = vadd.f32 %v2796, %v3128
    %v3130 = vpop.f32.mrb[0].mxu0
    %v3131 = vpop.f32.mrb[0].mxu0
    %v3132 = vadd.f32 %v2796, %v3131
    %v3133 = vpop.f32.mrb[0].mxu0
    %3134 = vdwg.mxu0
    %v3135 = vunpack.c.l.bf16 %v83
    %v3136 = vunpack.c.l.bf16 %v84
    %v3137 = vunpack.c.l.bf16 %v85
    %v3138 = vunpack.c.l.bf16 %v86
    %v3139 = vunpack.c.l.bf16 %v87
    %v3140 = vunpack.c.l.bf16 %v88
    %v3141 = vunpack.c.l.bf16 %v89
    %v3142 = vunpack.c.l.bf16 %v90
    %v3143 = vunpack.c.l.bf16 %v91
    %v3144 = vunpack.c.l.bf16 %v92
    %v3145 = vunpack.c.l.bf16 %v93
    %v3146 = vunpack.c.l.bf16 %v94
    %v3147 = vunpack.c.l.bf16 %v95
    %v3148 = vunpack.c.l.bf16 %v96
    %v3149 = vunpack.c.l.bf16 %v97
    %v3150 = vunpack.c.l.bf16 %v98
    %v3151 = vunpack.c.l.bf16 %v99
    %v3152 = vunpack.c.l.bf16 %v100
    %v3153 = vunpack.c.l.bf16 %v101
    %v3154 = vunpack.c.l.bf16 %v102
    %v3155 = vunpack.c.l.bf16 %v103
    %v3156 = vunpack.c.l.bf16 %v104
    %v3157 = vunpack.c.l.bf16 %v105
    %v3158 = vunpack.c.l.bf16 %v106
    %v3159 = vunpack.c.l.bf16 %v107
    %v3160 = vunpack.c.l.bf16 %v108
    %v3161 = vunpack.c.l.bf16 %v109
    %v3162 = vunpack.c.l.bf16 %v110
    %v3163 = vunpack.c.l.bf16 %v111
    %v3164 = vunpack.c.l.bf16 %v112
    %v3165 = vunpack.c.l.bf16 %v113
    %v3166 = vunpack.c.l.bf16 %v114
    %v3167 = vunpack.c.l.bf16 %v115
    %v3168 = vunpack.c.l.bf16 %v116
    %v3169 = vunpack.c.l.bf16 %v117
    %v3170 = vunpack.c.l.bf16 %v118
    %v3171 = vunpack.c.l.bf16 %v119
    %v3172 = vunpack.c.l.bf16 %v120
    %v3173 = vunpack.c.l.bf16 %v121
    %v3174 = vunpack.c.l.bf16 %v122
    %v3175 = vunpack.c.l.bf16 %v123
    %v3176 = vunpack.c.l.bf16 %v124
    %v3177 = vunpack.c.l.bf16 %v125
    %v3178 = vunpack.c.l.bf16 %v126
    %v3179 = vunpack.c.l.bf16 %v127
    %v3180 = vunpack.c.l.bf16 %v128
    %v3181 = vunpack.c.l.bf16 %v129
    %v3182 = vunpack.c.l.bf16 %v130
    %v3183 = vunpack.c.l.bf16 %v131
    %v3184 = vunpack.c.l.bf16 %v132
    %v3185 = vunpack.c.l.bf16 %v133
    %v3186 = vunpack.c.l.bf16 %v134
    %v3187 = vunpack.c.l.bf16 %v135
    %v3188 = vunpack.c.l.bf16 %v136
    %v3189 = vunpack.c.l.bf16 %v137
    %v3190 = vunpack.c.l.bf16 %v138
    %v3191 = vunpack.c.l.bf16 %v139
    %v3192 = vunpack.c.l.bf16 %v140
    %v3193 = vunpack.c.l.bf16 %v141
    %v3194 = vunpack.c.l.bf16 %v142
    %v3195 = vunpack.c.l.bf16 %v143
    %v3196 = vunpack.c.l.bf16 %v144
    %v3197 = vunpack.c.l.bf16 %v145
    %v3198 = vunpack.c.l.bf16 %v146
    %v3199 = vadd.f32 %v2881, %v3135
    %v3200 = vadd.f32 %v2884, %v3136
    %v3201 = vadd.f32 %v2889, %v3137
    %v3202 = vadd.f32 %v2892, %v3138
    %v3203 = vadd.f32 %v2897, %v3139
    %v3204 = vadd.f32 %v2900, %v3140
    %v3205 = vadd.f32 %v2905, %v3141
    %v3206 = vadd.f32 %v2908, %v3142
    %v3207 = vadd.f32 %v2913, %v3143
    %v3208 = vadd.f32 %v2916, %v3144
    %v3209 = vadd.f32 %v2921, %v3145
    %v3210 = vadd.f32 %v2924, %v3146
    %v3211 = vadd.f32 %v2929, %v3147
    %v3212 = vadd.f32 %v2932, %v3148
    %v3213 = vadd.f32 %v2937, %v3149
    %v3214 = vadd.f32 %v2940, %v3150
    %v3215 = vadd.f32 %v2945, %v3151
    %v3216 = vadd.f32 %v2948, %v3152
    %v3217 = vadd.f32 %v2953, %v3153
    %v3218 = vadd.f32 %v2956, %v3154
    %v3219 = vadd.f32 %v2961, %v3155
    %v3220 = vadd.f32 %v2964, %v3156
    %v3221 = vadd.f32 %v2969, %v3157
    %v3222 = vadd.f32 %v2972, %v3158
    %v3223 = vadd.f32 %v2977, %v3159
    %v3224 = vadd.f32 %v2980, %v3160
    %v3225 = vadd.f32 %v2985, %v3161
    %v3226 = vadd.f32 %v2988, %v3162
    %v3227 = vadd.f32 %v2993, %v3163
    %v3228 = vadd.f32 %v2996, %v3164
    %v3229 = vadd.f32 %v3001, %v3165
    %v3230 = vadd.f32 %v3004, %v3166
    %v3231 = vadd.f32 %v3009, %v3167
    %v3232 = vadd.f32 %v3012, %v3168
    %v3233 = vadd.f32 %v3017, %v3169
    %v3234 = vadd.f32 %v3020, %v3170
    %v3235 = vadd.f32 %v3025, %v3171
    %v3236 = vadd.f32 %v3028, %v3172
    %v3237 = vadd.f32 %v3033, %v3173
    %v3238 = vadd.f32 %v3036, %v3174
    %v3239 = vadd.f32 %v3041, %v3175
    %v3240 = vadd.f32 %v3044, %v3176
    %v3241 = vadd.f32 %v3049, %v3177
    %v3242 = vadd.f32 %v3052, %v3178
    %v3243 = vadd.f32 %v3057, %v3179
    %v3244 = vadd.f32 %v3060, %v3180
    %v3245 = vadd.f32 %v3065, %v3181
    %v3246 = vadd.f32 %v3068, %v3182
    %v3247 = vadd.f32 %v3073, %v3183
    %v3248 = vadd.f32 %v3076, %v3184
    %v3249 = vadd.f32 %v3081, %v3185
    %v3250 = vadd.f32 %v3084, %v3186
    %v3251 = vadd.f32 %v3089, %v3187
    %v3252 = vadd.f32 %v3092, %v3188
    %v3253 = vadd.f32 %v3097, %v3189
    %v3254 = vadd.f32 %v3100, %v3190
    %v3255 = vadd.f32 %v3105, %v3191
    %v3256 = vadd.f32 %v3108, %v3192
    %v3257 = vadd.f32 %v3113, %v3193
    %v3258 = vadd.f32 %v3116, %v3194
    %v3259 = vadd.f32 %v3121, %v3195
    %v3260 = vadd.f32 %v3124, %v3196
    %v3261 = vadd.f32 %v3129, %v3197
    %v3262 = vadd.f32 %v3132, %v3198
    %v3263 = vpack.c.bf16 %v3200, %v3199
    %v3264 = vpack.c.bf16 %v3202, %v3201
    %v3265 = vpack.c.bf16 %v3204, %v3203
    %v3266 = vpack.c.bf16 %v3206, %v3205
    %v3267 = vpack.c.bf16 %v3208, %v3207
    %v3268 = vpack.c.bf16 %v3210, %v3209
    %v3269 = vpack.c.bf16 %v3212, %v3211
    %v3270 = vpack.c.bf16 %v3214, %v3213
    %v3271 = vpack.c.bf16 %v3216, %v3215
    %v3272 = vpack.c.bf16 %v3218, %v3217
    %v3273 = vpack.c.bf16 %v3220, %v3219
    %v3274 = vpack.c.bf16 %v3222, %v3221
    %v3275 = vpack.c.bf16 %v3224, %v3223
    %v3276 = vpack.c.bf16 %v3226, %v3225
    %v3277 = vpack.c.bf16 %v3228, %v3227
    %v3278 = vpack.c.bf16 %v3230, %v3229
    %v3279 = vpack.c.bf16 %v3232, %v3231
    %v3280 = vpack.c.bf16 %v3234, %v3233
    %v3281 = vpack.c.bf16 %v3236, %v3235
    %v3282 = vpack.c.bf16 %v3238, %v3237
    %v3283 = vpack.c.bf16 %v3240, %v3239
    %v3284 = vpack.c.bf16 %v3242, %v3241
    %v3285 = vpack.c.bf16 %v3244, %v3243
    %v3286 = vpack.c.bf16 %v3246, %v3245
    %v3287 = vpack.c.bf16 %v3248, %v3247
    %v3288 = vpack.c.bf16 %v3250, %v3249
    %v3289 = vpack.c.bf16 %v3252, %v3251
    %v3290 = vpack.c.bf16 %v3254, %v3253
    %v3291 = vpack.c.bf16 %v3256, %v3255
    %v3292 = vpack.c.bf16 %v3258, %v3257
    %v3293 = vpack.c.bf16 %v3260, %v3259
    %v3294 = vpack.c.bf16 %v3262, %v3261
    %v3327 = vunpack.c.l.b16 %v3263
    %v3328 = vunpack.c.h.b16 %v3263
    %v3329 = vunpack.c.l.b16 %v3264
    %v3330 = vunpack.c.h.b16 %v3264
    %v3331 = vunpack.c.l.b16 %v3265
    %v3332 = vunpack.c.h.b16 %v3265
    %v3333 = vunpack.c.l.b16 %v3266
    %v3334 = vunpack.c.h.b16 %v3266
    %v3335 = vunpack.c.l.b16 %v3267
    %v3336 = vunpack.c.h.b16 %v3267
    %v3337 = vunpack.c.l.b16 %v3268
    %v3338 = vunpack.c.h.b16 %v3268
    %v3339 = vunpack.c.l.b16 %v3269
    %v3340 = vunpack.c.h.b16 %v3269
    %v3341 = vunpack.c.l.b16 %v3270
    %v3342 = vunpack.c.h.b16 %v3270
    %v3343 = vunpack.c.l.b16 %v3271
    %v3344 = vunpack.c.h.b16 %v3271
    %v3345 = vunpack.c.l.b16 %v3272
    %v3346 = vunpack.c.h.b16 %v3272
    %v3347 = vunpack.c.l.b16 %v3273
    %v3348 = vunpack.c.h.b16 %v3273
    %v3349 = vunpack.c.l.b16 %v3274
    %v3350 = vunpack.c.h.b16 %v3274
    %v3351 = vunpack.c.l.b16 %v3275
    %v3352 = vunpack.c.h.b16 %v3275
    %v3353 = vunpack.c.l.b16 %v3276
    %v3354 = vunpack.c.h.b16 %v3276
    %v3355 = vunpack.c.l.b16 %v3277
    %v3356 = vunpack.c.h.b16 %v3277
    %v3357 = vunpack.c.l.b16 %v3278
    %v3358 = vunpack.c.h.b16 %v3278
    %v3359 = vunpack.c.l.b16 %v3279
    %v3360 = vunpack.c.h.b16 %v3279
    %v3361 = vunpack.c.l.b16 %v3280
    %v3362 = vunpack.c.h.b16 %v3280
    %v3363 = vunpack.c.l.b16 %v3281
    %v3364 = vunpack.c.h.b16 %v3281
    %v3365 = vunpack.c.l.b16 %v3282
    %v3366 = vunpack.c.h.b16 %v3282
    %v3367 = vunpack.c.l.b16 %v3283
    %v3368 = vunpack.c.h.b16 %v3283
    %v3369 = vunpack.c.l.b16 %v3284
    %v3370 = vunpack.c.h.b16 %v3284
    %v3371 = vunpack.c.l.b16 %v3285
    %v3372 = vunpack.c.h.b16 %v3285
    %v3373 = vunpack.c.l.b16 %v3286
    %v3374 = vunpack.c.h.b16 %v3286
    %v3375 = vunpack.c.l.b16 %v3287
    %v3376 = vunpack.c.h.b16 %v3287
    %v3377 = vunpack.c.l.b16 %v3288
    %v3378 = vunpack.c.h.b16 %v3288
    %v3379 = vunpack.c.l.b16 %v3289
    %v3380 = vunpack.c.h.b16 %v3289
    %v3381 = vunpack.c.l.b16 %v3290
    %v3382 = vunpack.c.h.b16 %v3290
    %v3383 = vunpack.c.l.b16 %v3291
    %v3384 = vunpack.c.h.b16 %v3291
    %v3385 = vunpack.c.l.b16 %v3292
    %v3386 = vunpack.c.h.b16 %v3292
    %v3387 = vunpack.c.l.b16 %v3293
    %v3388 = vunpack.c.h.b16 %v3293
    %v3389 = vunpack.c.l.b16 %v3294
    %v3390 = vunpack.c.h.b16 %v3294
    %v3391 = vpack.c.b16 %v3327, %v3327
    %v3392 = vpack.c.b16 %v3328, %v3328
    %v3393 = vpack.c.b16 %v3329, %v3329
    %v3394 = vpack.c.b16 %v3330, %v3330
    %v3395 = vpack.c.b16 %v3331, %v3331
    %v3396 = vpack.c.b16 %v3332, %v3332
    %v3397 = vpack.c.b16 %v3333, %v3333
    %v3398 = vpack.c.b16 %v3334, %v3334
    %v3399 = vpack.c.b16 %v3335, %v3335
    %v3400 = vpack.c.b16 %v3336, %v3336
    %v3401 = vpack.c.b16 %v3337, %v3337
    %v3402 = vpack.c.b16 %v3338, %v3338
    %v3403 = vpack.c.b16 %v3339, %v3339
    %v3404 = vpack.c.b16 %v3340, %v3340
    %v3405 = vpack.c.b16 %v3341, %v3341
    %v3406 = vpack.c.b16 %v3342, %v3342
    %v3407 = vpack.c.b16 %v3343, %v3343
    %v3408 = vpack.c.b16 %v3344, %v3344
    %v3409 = vpack.c.b16 %v3345, %v3345
    %v3410 = vpack.c.b16 %v3346, %v3346
    %v3411 = vpack.c.b16 %v3347, %v3347
    %v3412 = vpack.c.b16 %v3348, %v3348
    %v3413 = vpack.c.b16 %v3349, %v3349
    %v3414 = vpack.c.b16 %v3350, %v3350
    %v3415 = vpack.c.b16 %v3351, %v3351
    %v3416 = vpack.c.b16 %v3352, %v3352
    %v3417 = vpack.c.b16 %v3353, %v3353
    %v3418 = vpack.c.b16 %v3354, %v3354
    %v3419 = vpack.c.b16 %v3355, %v3355
    %v3420 = vpack.c.b16 %v3356, %v3356
    %v3421 = vpack.c.b16 %v3357, %v3357
    %v3422 = vpack.c.b16 %v3358, %v3358
    %v3423 = vpack.c.b16 %v3359, %v3359
    %v3424 = vpack.c.b16 %v3360, %v3360
    %v3425 = vpack.c.b16 %v3361, %v3361
    %v3426 = vpack.c.b16 %v3362, %v3362
    %v3427 = vpack.c.b16 %v3363, %v3363
    %v3428 = vpack.c.b16 %v3364, %v3364
    %v3429 = vpack.c.b16 %v3365, %v3365
    %v3430 = vpack.c.b16 %v3366, %v3366
    %v3431 = vpack.c.b16 %v3367, %v3367
    %v3432 = vpack.c.b16 %v3368, %v3368
    %v3433 = vpack.c.b16 %v3369, %v3369
    %v3434 = vpack.c.b16 %v3370, %v3370
    %v3435 = vpack.c.b16 %v3371, %v3371
    %v3436 = vpack.c.b16 %v3372, %v3372
    %v3437 = vpack.c.b16 %v3373, %v3373
    %v3438 = vpack.c.b16 %v3374, %v3374
    %v3439 = vpack.c.b16 %v3375, %v3375
    %v3440 = vpack.c.b16 %v3376, %v3376
    %v3441 = vpack.c.b16 %v3377, %v3377
    %v3442 = vpack.c.b16 %v3378, %v3378
    %v3443 = vpack.c.b16 %v3379, %v3379
    %v3444 = vpack.c.b16 %v3380, %v3380
    %v3445 = vpack.c.b16 %v3381, %v3381
    %v3446 = vpack.c.b16 %v3382, %v3382
    %v3447 = vpack.c.b16 %v3383, %v3383
    %v3448 = vpack.c.b16 %v3384, %v3384
    %v3449 = vpack.c.b16 %v3385, %v3385
    %v3450 = vpack.c.b16 %v3386, %v3386
    %v3451 = vpack.c.b16 %v3387, %v3387
    %v3452 = vpack.c.b16 %v3388, %v3388
    %v3453 = vpack.c.b16 %v3389, %v3389
    %v3454 = vpack.c.b16 %v3390, %v3390
    %3519 = vst [vmem:[#allocation11] sm:$0xf] %v3391
    %3520 = vst [vmem:[#allocation11 + $0x4] sm:$0xf] %v3392
    %3521 = vst [vmem:[#allocation11 + $0x8] sm:$0xf] %v3393
    %3522 = vst [vmem:[#allocation11 + $0xc] sm:$0xf] %v3394
    %3523 = vst [vmem:[#allocation11 + $0x10] sm:$0xf] %v3395
    %3524 = vst [vmem:[#allocation11 + $0x14] sm:$0xf] %v3396
    %3525 = vst [vmem:[#allocation11 + $0x18] sm:$0xf] %v3397
    %3526 = vst [vmem:[#allocation11 + $0x1c] sm:$0xf] %v3398
    %3527 = vst [vmem:[#allocation11 + $0x20] sm:$0xf] %v3399
    %3528 = vst [vmem:[#allocation11 + $0x24] sm:$0xf] %v3400
    %3529 = vst [vmem:[#allocation11 + $0x28] sm:$0xf] %v3401
    %3530 = vst [vmem:[#allocation11 + $0x2c] sm:$0xf] %v3402
    %3531 = vst [vmem:[#allocation11 + $0x30] sm:$0xf] %v3403
    %3532 = vst [vmem:[#allocation11 + $0x34] sm:$0xf] %v3404
    %3533 = vst [vmem:[#allocation11 + $0x38] sm:$0xf] %v3405
    %3534 = vst [vmem:[#allocation11 + $0x3c] sm:$0xf] %v3406
    %3535 = vst [vmem:[#allocation11 + $0x40] sm:$0xf] %v3407
    %3536 = vst [vmem:[#allocation11 + $0x44] sm:$0xf] %v3408
    %3537 = vst [vmem:[#allocation11 + $0x48] sm:$0xf] %v3409
    %3538 = vst [vmem:[#allocation11 + $0x4c] sm:$0xf] %v3410
    %3539 = vst [vmem:[#allocation11 + $0x50] sm:$0xf] %v3411
    %3540 = vst [vmem:[#allocation11 + $0x54] sm:$0xf] %v3412
    %3541 = vst [vmem:[#allocation11 + $0x58] sm:$0xf] %v3413
    %3542 = vst [vmem:[#allocation11 + $0x5c] sm:$0xf] %v3414
    %3543 = vst [vmem:[#allocation11 + $0x60] sm:$0xf] %v3415
    %3544 = vst [vmem:[#allocation11 + $0x64] sm:$0xf] %v3416
    %3545 = vst [vmem:[#allocation11 + $0x68] sm:$0xf] %v3417
    %3546 = vst [vmem:[#allocation11 + $0x6c] sm:$0xf] %v3418
    %3547 = vst [vmem:[#allocation11 + $0x70] sm:$0xf] %v3419
    %3548 = vst [vmem:[#allocation11 + $0x74] sm:$0xf] %v3420
    %3549 = vst [vmem:[#allocation11 + $0x78] sm:$0xf] %v3421
    %3550 = vst [vmem:[#allocation11 + $0x7c] sm:$0xf] %v3422
    %3551 = vst [vmem:[#allocation11 + $0x80] sm:$0xf] %v3423
    %3552 = vst [vmem:[#allocation11 + $0x84] sm:$0xf] %v3424
    %3553 = vst [vmem:[#allocation11 + $0x88] sm:$0xf] %v3425
    %3554 = vst [vmem:[#allocation11 + $0x8c] sm:$0xf] %v3426
    %3555 = vst [vmem:[#allocation11 + $0x90] sm:$0xf] %v3427
    %3556 = vst [vmem:[#allocation11 + $0x94] sm:$0xf] %v3428
    %3557 = vst [vmem:[#allocation11 + $0x98] sm:$0xf] %v3429
    %3558 = vst [vmem:[#allocation11 + $0x9c] sm:$0xf] %v3430
    %3559 = vst [vmem:[#allocation11 + $0xa0] sm:$0xf] %v3431
    %3560 = vst [vmem:[#allocation11 + $0xa4] sm:$0xf] %v3432
    %3561 = vst [vmem:[#allocation11 + $0xa8] sm:$0xf] %v3433
    %3562 = vst [vmem:[#allocation11 + $0xac] sm:$0xf] %v3434
    %3563 = vst [vmem:[#allocation11 + $0xb0] sm:$0xf] %v3435
    %3564 = vst [vmem:[#allocation11 + $0xb4] sm:$0xf] %v3436
    %3565 = vst [vmem:[#allocation11 + $0xb8] sm:$0xf] %v3437
    %3566 = vst [vmem:[#allocation11 + $0xbc] sm:$0xf] %v3438
    %3567 = vst [vmem:[#allocation11 + $0xc0] sm:$0xf] %v3439
    %3568 = vst [vmem:[#allocation11 + $0xc4] sm:$0xf] %v3440
    %3569 = vst [vmem:[#allocation11 + $0xc8] sm:$0xf] %v3441
    %3570 = vst [vmem:[#allocation11 + $0xcc] sm:$0xf] %v3442
    %3571 = vst [vmem:[#allocation11 + $0xd0] sm:$0xf] %v3443
    %3572 = vst [vmem:[#allocation11 + $0xd4] sm:$0xf] %v3444
    %3573 = vst [vmem:[#allocation11 + $0xd8] sm:$0xf] %v3445
    %3574 = vst [vmem:[#allocation11 + $0xdc] sm:$0xf] %v3446
    %3575 = vst [vmem:[#allocation11 + $0xe0] sm:$0xf] %v3447
    %3576 = vst [vmem:[#allocation11 + $0xe4] sm:$0xf] %v3448
    %3577 = vst [vmem:[#allocation11 + $0xe8] sm:$0xf] %v3449
    %3578 = vst [vmem:[#allocation11 + $0xec] sm:$0xf] %v3450
    %3579 = vst [vmem:[#allocation11 + $0xf0] sm:$0xf] %v3451
    %3580 = vst [vmem:[#allocation11 + $0xf4] sm:$0xf] %v3452
    %3581 = vst [vmem:[#allocation11 + $0xf8] sm:$0xf] %v3453
    %3582 = vst [vmem:[#allocation11 + $0xfc] sm:$0xf] %v3454
    // Predicated region
    $region46: #{tpu_custom_call.1} parent=1 // pred_check
      _
    $region47: #{tpu_custom_call.1} parent=1 // pred_check_branch
      %3584 = sbr.rel (0) target = $region49
    $region48: #{tpu_custom_call.1} parent=1 // pred_region
      %s3586 = ssub.s32 4096, 4096
      %3587 = vsyncadd [#allocation5], %s3586
      %s3588 = sshll.u32 [#allocation11], 4
      %s3589 = int_to_ptr.vmem [resolvable:$true] %s3588
      %3594 = dma.vmem_to_hbm [thread:$0]  %s3589, 4096, %s7, [#allocation5], 64, 64, 4
    $region49: #{tpu_custom_call.1} parent=1 // pred_fallthru
      _
    // Predicated region
    $region50: #{tpu_custom_call.1} parent=1 // pred_check
      _
    $region51: #{tpu_custom_call.1} parent=1 // pred_check_branch
      %3596 = sbr.rel (0) target = $region53
    $region52: #{tpu_custom_call.1} parent=1 // pred_region
      %3597 = dma.done [#allocation5], 4096
    $region53: #{tpu_custom_call.1} parent=1 // pred_fallthru
      _
    %3598 = vsyncpa [#allocation4], 1
    %3599 = vsyncpa [#allocation7], 1
    %3600 = vsyncpa [#allocation10], 1
    %3601 = vsyncpa [#allocation5], 1

</llo_original>
